<compile_context>
chip_gen: v7x
topology: tpu7x:2x2x1
jax: 0.10.0
libtpu: 0.0.40
codegen_flags: <defaults>
</compile_context>

<pallas_src>
import math

import jax
import jax.numpy as jnp
from jax.experimental import pallas as pl
from jax.experimental.pallas import tpu as pltpu

NEG_INF = -1e30
LN_EPS = 1e-5
MXU_DTYPE = jnp.bfloat16          # matmul operand dtype; accumulation stays f32
ROW_TILE_CAP = 256                # v7x / v5e safe, MXU-friendly on v6e/v7x
VMEM_LIMIT = 64 * 1024 * 1024     # explicit scoped-VMEM limit for matmul-heavy calls


# --------------------------- small shape helpers -----------------------------

def _round_up(x, m):
    return (x + m - 1) // m * m


def _row_blocking(m, cap=ROW_TILE_CAP):
    """Return (padded_M, row_tile): padded_M % row_tile == 0, row_tile % 8 == 0."""
    if m <= cap:
        mp = _round_up(m, 8)
        return mp, mp
    mp = _round_up(m, cap)
    return mp, cap


def _pick_col_tile(n, cap=512):
    if n <= cap:
        return n
    for t in (512, 256, 128):
        if n % t == 0:
            return t
    return n   # fall back to a single full-width block


def _pad_rows(x, mp):
    if x.shape[0] == mp:
        return x
    return jnp.pad(x, ((0, mp - x.shape[0]), (0, 0)))


# ---------------- Buffered(1) support probe (single-buffer invariants) -------

_BUFFERED_OK = None


def _buffered_supported():
    """Probe whether pipeline_mode=pl.Buffered(1) compiles, runs and is correct."""
    global _BUFFERED_OK
    if _BUFFERED_OK is None:
        try:
            def _k(c_ref, x_ref, o_ref):
                o_ref[...] = x_ref[...] + c_ref[...]

            f = pl.pallas_call(
                _k,
                out_shape=jax.ShapeDtypeStruct((16, 128), jnp.float32),
                grid=(2,),
                in_specs=[pl.BlockSpec((8, 128), lambda i: (0, 0),
                                       pipeline_mode=pl.Buffered(1)),
                          pl.BlockSpec((8, 128), lambda i: (i, 0))],
                out_specs=pl.BlockSpec((8, 128), lambda i: (i, 0)),
            )
            y = jax.block_until_ready(
                f(jnp.full((8, 128), 2.0, jnp.float32),
                  jnp.ones((16, 128), jnp.float32)))
            _BUFFERED_OK = bool(jnp.all(y == 3.0))
        except Exception:
            _BUFFERED_OK = False
    return _BUFFERED_OK


def _const_spec(shape):
    """BlockSpec for a grid-invariant operand: whole array, single-buffered if possible."""
    nd = len(shape)
    index_map = lambda *_: (0,) * nd
    if _buffered_supported():
        return pl.BlockSpec(shape, index_map, pipeline_mode=pl.Buffered(1))
    return pl.BlockSpec(shape, index_map)


# ------------------------------- Pallas kernels -------------------------------

def _make_mha_block_kernel(n_heads, scale, cross):
    """Fused per-batch MHA block: LayerNorm(x + OutProj(MultiHeadAttn(x, kv, kv)))."""

    def body(x, m_f32, wq_ref, wk_ref, wv_ref, bq_ref, bk_ref, bv_ref,
             wo_ref, bo_ref, mask_ref, pad_ref, g_ref, bb_ref, o_ref):
        xb = x.astype(MXU_DTYPE)                       # (Lq, E) bf16 (queries source)
        mb = xb if m_f32 is None else m_f32.astype(MXU_DTYPE)   # (Lk, E) keys/values src
        bias = mask_ref[...] + pad_ref[0]              # (Lq, Lk) + (1, Lk) -> (Lq, Lk)

        acc = bo_ref[...] + x                          # residual + out-proj bias, f32
        for h in range(n_heads):                       # head weights: leading-dim index
            q = jnp.dot(xb, wq_ref[h], preferred_element_type=jnp.float32) + bq_ref[h]
            k = jnp.dot(mb, wk_ref[h], preferred_element_type=jnp.float32) + bk_ref[h]
            v = jnp.dot(mb, wv_ref[h], preferred_element_type=jnp.float32) + bv_ref[h]
            s = jax.lax.dot_general(q.astype(MXU_DTYPE), k.astype(MXU_DTYPE),
                                    (((1,), (1,)), ((), ())),
                                    preferred_element_type=jnp.float32)
            s = s * scale + bias
            s = s - jnp.max(s, axis=-1, keepdims=True)
            p = jnp.exp(s)
            p = p * pl.reciprocal(jnp.sum(p, axis=-1, keepdims=True), approx=False)
            ctx = jnp.dot(p.astype(MXU_DTYPE), v.astype(MXU_DTYPE),
                          preferred_element_type=jnp.float32)        # (Lq, Dh)
            acc = acc + jnp.dot(ctx.astype(MXU_DTYPE), wo_ref[h],
                                preferred_element_type=jnp.float32)  # (Lq, E)

        mean = jnp.mean(acc, axis=-1, keepdims=True)
        c = acc - mean
        var = jnp.mean(c * c, axis=-1, keepdims=True)
        o_ref[0] = c * jax.lax.rsqrt(var + LN_EPS) * g_ref[...] + bb_ref[...]

    if cross:
        def kernel(x_ref, m_ref, *rest):
            body(x_ref[0], m_ref[0], *rest)
    else:
        def kernel(x_ref, *rest):
            body(x_ref[0], None, *rest)
    return kernel


def _ffn_add_ln_kernel(x_ref, w1_ref, b1_ref, w2_ref, b2_ref, g_ref, bb_ref, o_ref):
    """LayerNorm(relu(x @ w1 + b1) @ w2 + b2 + x); hidden activation never leaves VMEM."""
    x = x_ref[...]
    h = jnp.dot(x.astype(MXU_DTYPE), w1_ref[...],
                preferred_element_type=jnp.float32) + b1_ref[...]
    h = jnp.maximum(h, 0.0)
    y = (jnp.dot(h.astype(MXU_DTYPE), w2_ref[...],
                 preferred_element_type=jnp.float32) + b2_ref[...] + x)
    mean = jnp.mean(y, axis=-1, keepdims=True)
    c = y - mean
    var = jnp.mean(c * c, axis=-1, keepdims=True)
    o_ref[...] = c * jax.lax.rsqrt(var + LN_EPS) * g_ref[...] + bb_ref[...]


def _ln_kernel(x_ref, g_ref, b_ref, o_ref):
    x = x_ref[...]
    mean = jnp.mean(x, axis=-1, keepdims=True)
    c = x - mean
    var = jnp.mean(c * c, axis=-1, keepdims=True)
    o_ref[...] = c * jax.lax.rsqrt(var + LN_EPS) * g_ref[...] + b_ref[...]


def _linear_kernel(x_ref, w_ref, b_ref, o_ref):
    o_ref[...] = (jnp.dot(x_ref[...].astype(MXU_DTYPE), w_ref[...],
                          preferred_element_type=jnp.float32) + b_ref[...])


# ------------------------------ Pallas wrappers -------------------------------

def pallas_mha_block(x, kv, p, ln, n_heads, attn_mask_add, pad_bias):
    """Fused MHA block. kv=None -> self-attention (keys/values = x)."""
    B, Lq, E = x.shape
    cross = kv is not None
    Lk = kv.shape[1] if cross else Lq
    Dh = E // n_heads
    scale = 1.0 / math.sqrt(Dh)

    flops = int(2 * B * (E * E * (Lq + 2 * Lk + Lq) + 2 * Lq * Lk * E))
    bytes_acc = int(4 * B * Lq * E * 2 + (4 * B * Lk * E if cross else 0)
                    + 2 * 4 * E * E + 4 * (Lq * Lk + B * Lk))
    cost = pl.CostEstimate(flops=flops,
                           transcendentals=int(B * n_heads * Lq * Lk),
                           bytes_accessed=bytes_acc)

    in_arrays = [x] + ([kv] if cross else []) + [
        p["wq"], p["wk"], p["wv"], p["bq"], p["bk"], p["bv"],
        p["wo"], p["bo"], attn_mask_add, pad_bias, ln["g"], ln["b"]]

    in_specs = [pl.BlockSpec((1, Lq, E), lambda b: (b, 0, 0))]
    if cross:
        in_specs.append(pl.BlockSpec((1, Lk, E), lambda b: (b, 0, 0)))
    in_specs += [
        _const_spec((n_heads, E, Dh)),                    # wq
        _const_spec((n_heads, E, Dh)),                    # wk
        _const_spec((n_heads, E, Dh)),                    # wv
        _const_spec((n_heads, 1, Dh)),                    # bq
        _const_spec((n_heads, 1, Dh)),                    # bk
        _const_spec((n_heads, 1, Dh)),                    # bv
        _const_spec((n_heads, Dh, E)),                    # wo
        _const_spec((1, E)),                              # bo
        _const_spec((Lq, Lk)),                            # additive attention mask
        pl.BlockSpec((1, 1, Lk), lambda b: (b, 0, 0)),    # per-batch key padding bias
        _const_spec((1, E)),                              # gamma
        _const_spec((1, E)),                              # beta
    ]

    return pl.pallas_call(
        _make_mha_block_kernel(n_heads, scale, cross),
        out_shape=jax.ShapeDtypeStruct((B, Lq, E), jnp.float32),
        grid=(B,),
        in_specs=in_specs,
        out_specs=pl.BlockSpec((1, Lq, E), lambda b: (b, 0, 0)),
        compiler_params=pltpu.CompilerParams(
            dimension_semantics=("parallel",), vmem_limit_bytes=VMEM_LIMIT),
        cost_estimate=cost,
    )(*in_arrays)


def pallas_ffn_add_ln(x2d, w1, b1, w2, b2, gamma, beta):
    M, E = x2d.shape
    H = w1.shape[1]
    Mp, tm = _row_blocking(M)
    xp = _pad_rows(x2d, Mp)
    cost = pl.CostEstimate(flops=int(4 * Mp * E * H), transcendentals=0,
                           bytes_accessed=int(Mp * E * 8 + 2 * 2 * E * H))
    out = pl.pallas_call(
        _ffn_add_ln_kernel,
        out_shape=jax.ShapeDtypeStruct((Mp, E), jnp.float32),
        grid=(Mp // tm,),
        in_specs=[
            pl.BlockSpec((tm, E), lambda i: (i, 0)),
            _const_spec((E, H)),
            _const_spec((1, H)),
            _const_spec((H, E)),
            _const_spec((1, E)),
            _const_spec((1, E)),
            _const_spec((1, E)),
        ],
        out_specs=pl.BlockSpec((tm, E), lambda i: (i, 0)),
        compiler_params=pltpu.CompilerParams(
            dimension_semantics=("parallel",), vmem_limit_bytes=VMEM_LIMIT),
        cost_estimate=cost,
    )(xp, w1, b1, w2, b2, gamma, beta)
    return out[:M] if Mp != M else out


def pallas_layernorm(x2d, gamma, beta):
    M, E = x2d.shape
    Mp, tm = _row_blocking(M)
    xp = _pad_rows(x2d, Mp)
    out = pl.pallas_call(
        _ln_kernel,
        out_shape=jax.ShapeDtypeStruct((Mp, E), jnp.float32),
        grid=(Mp // tm,),
        in_specs=[
            pl.BlockSpec((tm, E), lambda i: (i, 0)),
            _const_spec((1, E)),
            _const_spec((1, E)),
        ],
        out_specs=pl.BlockSpec((tm, E), lambda i: (i, 0)),
        compiler_params=pltpu.CompilerParams(dimension_semantics=("parallel",)),
    )(xp, gamma, beta)
    return out[:M] if Mp != M else out


def pallas_linear(x2d, w, b):
    """y = x @ w + b with row (M) and, when divisible, column (N) tiling."""
    M, K = x2d.shape
    N = w.shape[1]
    Mp, tm = _row_blocking(M)
    tn = _pick_col_tile(N)
    n_tiles = N // tn
    xp = _pad_rows(x2d, Mp)

    w_spec = (_const_spec((K, N)) if n_tiles == 1
              else pl.BlockSpec((K, tn), lambda i, j: (0, j)))
    b_spec = (_const_spec((1, N)) if n_tiles == 1
              else pl.BlockSpec((1, tn), lambda i, j: (0, j)))
    cost = pl.CostEstimate(flops=int(2 * Mp * K * N), transcendentals=0,
                           bytes_accessed=int(Mp * (K + N) * 4 + K * N * 2))

    out = pl.pallas_call(
        _linear_kernel,
        out_shape=jax.ShapeDtypeStruct((Mp, N), jnp.float32),
        grid=(Mp // tm, n_tiles),
        in_specs=[pl.BlockSpec((tm, K), lambda i, j: (i, 0)), w_spec, b_spec],
        out_specs=pl.BlockSpec((tm, tn), lambda i, j: (i, j)),
        compiler_params=pltpu.CompilerParams(
            dimension_semantics=("parallel", "parallel"),
            vmem_limit_bytes=VMEM_LIMIT),
        cost_estimate=cost,
    )(xp, w, b)
    return out[:M] if Mp != M else out


# ------------------------------- model pieces ---------------------------------

def make_positional_encoding(max_len, emb_dim):
    position = jnp.arange(max_len, dtype=jnp.float32)[:, None]
    div_term = jnp.exp(
        jnp.arange(0, emb_dim, 2, dtype=jnp.float32) * (-math.log(10000.0) / emb_dim))
    pe = jnp.zeros((max_len, emb_dim), jnp.float32)
    pe = pe.at[:, 0::2].set(jnp.sin(position * div_term))
    pe = pe.at[:, 1::2].set(jnp.cos(position * div_term))
    return pe  # (max_len, emb_dim)


def _to_additive_attn_mask(mask, shape):
    if mask is None:
        return jnp.zeros(shape, jnp.float32)
    if mask.dtype == jnp.bool_:                 # PyTorch convention: True = disallowed
        return jnp.where(mask, NEG_INF, 0.0).astype(jnp.float32)
    return mask.astype(jnp.float32)


def _pad_bias(mask, B, L):
    if mask is None:
        return jnp.zeros((B, 1, L), jnp.float32)
    if mask.dtype == jnp.bool_:                 # True = padded key
        add = jnp.where(mask, NEG_INF, 0.0)
    else:
        add = mask
    return add.astype(jnp.float32)[:, None, :]


def encoder_layer_fwd(x, layer, n_heads, src_mask_add, src_pb):
    x = pallas_mha_block(x, None, layer["sa"], layer["norm1"], n_heads,
                         src_mask_add, src_pb)
    B, S, E = x.shape
    x2d = pallas_ffn_add_ln(x.reshape(B * S, E),
                            layer["lin1_w"], layer["lin1_b"],
                            layer["lin2_w"], layer["lin2_b"],
                            layer["norm2"]["g"], layer["norm2"]["b"])
    return x2d.reshape(B, S, E)


def decoder_layer_fwd(y, memory, layer, n_heads, tgt_mask_add, tgt_pb,
                      mem_mask_add, mem_pb):
    y = pallas_mha_block(y, None, layer["sa"], layer["norm1"], n_heads,
                         tgt_mask_add, tgt_pb)
    y = pallas_mha_block(y, memory, layer["ca"], layer["norm2"], n_heads,
                         mem_mask_add, mem_pb)
    B, T, E = y.shape
    y2d = pallas_ffn_add_ln(y.reshape(B * T, E),
                            layer["lin1_w"], layer["lin1_b"],
                            layer["lin2_w"], layer["lin2_b"],
                            layer["norm3"]["g"], layer["norm3"]["b"])
    return y2d.reshape(B, T, E)


def transformer_seq2seq_forward(params, src, src_mask, tgt, tgt_mask,
                                src_padding_mask, tgt_padding_mask,
                                memory_key_padding_mask):
    n_heads = params["n_heads"]
    pe = params["pe"]
    B, S = src.shape
    T = tgt.shape[1]
    E = pe.shape[1]

    # embeddings + positional encoding (gather stays in XLA; dropout = identity)
    src_emb = jnp.take(params["src_tok_emb"], src, axis=0) + pe[None, :S, :]
    tgt_emb = jnp.take(params["tgt_tok_emb"], tgt, axis=0) + pe[None, :T, :]

    src_mask_add = _to_additive_attn_mask(src_mask, (S, S))
    tgt_mask_add = _to_additive_attn_mask(tgt_mask, (T, T))
    mem_mask_add = jnp.zeros((T, S), jnp.float32)       # memory_mask=None in the module
    src_pb = _pad_bias(src_padding_mask, B, S)
    tgt_pb = _pad_bias(tgt_padding_mask, B, T)
    mem_pb = _pad_bias(memory_key_padding_mask, B, S)

    # encoder
    x = src_emb
    for layer in params["enc_layers"]:
        x = encoder_layer_fwd(x, layer, n_heads, src_mask_add, src_pb)
    memory = pallas_layernorm(x.reshape(B * S, E),
                              params["enc_norm"]["g"], params["enc_norm"]["b"]
                              ).reshape(B, S, E)

    # decoder
    y = tgt_emb
    for layer in params["dec_layers"]:
        y = decoder_layer_fwd(y, memory, layer, n_heads, tgt_mask_add, tgt_pb,
                              mem_mask_add, mem_pb)
    y2d = pallas_layernorm(y.reshape(B * T, E),
                           params["dec_norm"]["g"], params["dec_norm"]["b"])

    # final vocab projection (M and N tiled)
    out2d = pallas_linear(y2d, params["fc_out_w"], params["fc_out_b"])
    return out2d.reshape(B, T, -1)


# ------------------------------- parameter init -------------------------------

def init_params(key, input_dim, output_dim, emb_dim, n_heads, hid_dim, n_layers,
                max_len=100):
    keys = iter(jax.random.split(key, 512))
    Dh = emb_dim // n_heads

    def w(shape, scale=0.02, dtype=MXU_DTYPE):
        return (jax.random.normal(next(keys), shape, jnp.float32) * scale).astype(dtype)

    # Per-head projection weights (bf16), equivalent to PyTorch in_proj_weight.T
    # reshaped (E, H, Dh) -> (H, E, Dh), and out_proj.weight.T reshaped (H, Dh, E).
    # (A PyTorch checkpoint would be transposed/reshaped/cast ONCE here.)
    def mha_p():
        return dict(
            wq=w((n_heads, emb_dim, Dh)), wk=w((n_heads, emb_dim, Dh)),
            wv=w((n_heads, emb_dim, Dh)),
            bq=jnp.zeros((n_heads, 1, Dh), jnp.float32),
            bk=jnp.zeros((n_heads, 1, Dh), jnp.float32),
            bv=jnp.zeros((n_heads, 1, Dh), jnp.float32),
            wo=w((n_heads, Dh, emb_dim)),
            bo=jnp.zeros((1, emb_dim), jnp.float32))

    def ln_p():
        return dict(g=jnp.ones((1, emb_dim), jnp.float32),
                    b=jnp.zeros((1, emb_dim), jnp.float32))

    def ffn_p():
        return dict(lin1_w=w((emb_dim, hid_dim)),
                    lin1_b=jnp.zeros((1, hid_dim), jnp.float32),
                    lin2_w=w((hid_dim, emb_dim)),
                    lin2_b=jnp.zeros((1, emb_dim), jnp.float32))

    enc_layers = [dict(sa=mha_p(), **ffn_p(), norm1=ln_p(), norm2=ln_p())
                  for _ in range(n_layers)]
    dec_layers = [dict(sa=mha_p(), ca=mha_p(), **ffn_p(),
                       norm1=ln_p(), norm2=ln_p(), norm3=ln_p())
                  for _ in range(n_layers)]

    return dict(
        n_heads=n_heads,
        src_tok_emb=w((input_dim, emb_dim), scale=1.0, dtype=jnp.float32),
        tgt_tok_emb=w((output_dim, emb_dim), scale=1.0, dtype=jnp.float32),
        pe=make_positional_encoding(max_len, emb_dim),
        enc_layers=enc_layers,
        dec_layers=dec_layers,
        enc_norm=ln_p(),
        dec_norm=ln_p(),
        fc_out_w=w((emb_dim, output_dim)),
        fc_out_b=jnp.zeros((1, output_dim), jnp.float32),
    )


# ------------------------------------ main -------------------------------------

if __name__ == "__main__":
    # small config
    input_dim, output_dim = 50, 40     # vocab sizes
    emb_dim, n_heads, hid_dim, n_layers = 32, 4, 64, 2
    B, S_src, S_tgt = 2, 8, 6

    key = jax.random.PRNGKey(0)
    pkey, skey, tkey = jax.random.split(key, 3)
    params = init_params(pkey, input_dim, output_dim, emb_dim, n_heads,
                         hid_dim, n_layers, max_len=100)

    src = jax.random.randint(skey, (B, S_src), 0, input_dim, dtype=jnp.int32)
    tgt = jax.random.randint(tkey, (B, S_tgt), 0, output_dim, dtype=jnp.int32)

    # src_mask: no masking (additive zeros); tgt_mask: causal additive mask
    src_mask = jnp.zeros((S_src, S_src), jnp.float32)
    causal_allowed = jnp.tril(jnp.ones((S_tgt, S_tgt), dtype=bool))
    tgt_mask = jnp.where(causal_allowed, 0.0, NEG_INF).astype(jnp.float32)

    # key padding masks (True = padded key)
    src_padding_mask = jnp.zeros((B, S_src), dtype=bool).at[1, -2:].set(True)
    tgt_padding_mask = jnp.zeros((B, S_tgt), dtype=bool).at[1, -1:].set(True)
    memory_key_padding_mask = src_padding_mask

    out = transformer_seq2seq_forward(
        params, src, src_mask, tgt, tgt_mask,
        src_padding_mask, tgt_padding_mask, memory_key_padding_mask)
    out = jax.block_until_ready(out)

    assert out.shape == (B, S_tgt, output_dim), out.shape
    assert bool(jnp.all(jnp.isfinite(out)))
    print("KERNEL_OK")
</pallas_src>

<mosaic_0001>
module attributes {stable_mosaic.version = 11 : i64} {
  func.func @_k(%arg0: i32, %arg1: memref<8x128xf32, #tpu.memory_space<vmem>>, %arg2: memref<8x128xf32, #tpu.memory_space<vmem>>, %arg3: memref<8x128xf32, #tpu.memory_space<vmem>>) attributes {dimension_semantics = [#tpu.dimension_semantics<arbitrary>], iteration_bounds = array<i64: 2>, scalar_prefetch = 0 : i64, scratch_operands = 0 : i64, tpu.core_type = #tpu.core_type<tc>, window_params = [{pipeline_mode = #tpu.pipeline_mode<synchronous>, transform_indices = @transform_0, window_bounds = array<i64: 8, 128>}, {transform_indices = @transform_1, window_bounds = array<i64: 8, 128>}, {transform_indices = @transform_2, window_bounds = array<i64: 8, 128>}]} {
    %c0 = arith.constant 0 : index
    %c0_0 = arith.constant 0 : index
    %0 = vector.load %arg2[%c0, %c0_0] : memref<8x128xf32, #tpu.memory_space<vmem>>, vector<8x128xf32>
    %c0_1 = arith.constant 0 : index
    %c0_2 = arith.constant 0 : index
    %1 = vector.load %arg1[%c0_1, %c0_2] : memref<8x128xf32, #tpu.memory_space<vmem>>, vector<8x128xf32>
    %2 = arith.addf %0, %1 : vector<8x128xf32>
    %c0_3 = arith.constant 0 : index
    %c0_4 = arith.constant 0 : index
    %3 = vector.load %arg3[%c0_3, %c0_4] : memref<8x128xf32, #tpu.memory_space<vmem>>, vector<8x128xf32>
    tpu.vector_store %arg3[%c0_3, %c0_4], %2 {strides = array<i32>} : memref<8x128xf32, #tpu.memory_space<vmem>>, vector<8x128xf32>,
    return
  }
  func.func @transform_0(%arg0: i32) -> (i32, i32) {
    %c0_i32 = arith.constant 0 : i32
    %c0_i32_0 = arith.constant 0 : i32
    %c0_i32_1 = arith.constant 0 : i32
    return %c0_i32, %c0_i32_0 : i32, i32
  }
  func.func @transform_1(%arg0: i32) -> (i32, i32) {
    %c0_i32 = arith.constant 0 : i32
    %c0_i32_0 = arith.constant 0 : i32
    return %arg0, %c0_i32 : i32, i32
  }
  func.func @transform_2(%arg0: i32) -> (i32, i32) {
    %c0_i32 = arith.constant 0 : i32
    %c0_i32_0 = arith.constant 0 : i32
    return %arg0, %c0_i32 : i32, i32
  }
}

module attributes {stable_mosaic.version = 11 : i64} {
  func.func @kernel(%arg0: i32, %arg1: memref<1x8x32xf32, #tpu.memory_space<vmem>>, %arg2: memref<4x32x8xbf16, #tpu.memory_space<vmem>>, %arg3: memref<4x32x8xbf16, #tpu.memory_space<vmem>>, %arg4: memref<4x32x8xbf16, #tpu.memory_space<vmem>>, %arg5: memref<4x1x8xf32, #tpu.memory_space<vmem>>, %arg6: memref<4x1x8xf32, #tpu.memory_space<vmem>>, %arg7: memref<4x1x8xf32, #tpu.memory_space<vmem>>, %arg8: memref<4x8x32xbf16, #tpu.memory_space<vmem>>, %arg9: memref<1x32xf32, #tpu.memory_space<vmem>>, %arg10: memref<8x8xf32, #tpu.memory_space<vmem>>, %arg11: memref<1x1x8xf32, #tpu.memory_space<vmem>>, %arg12: memref<1x32xf32, #tpu.memory_space<vmem>>, %arg13: memref<1x32xf32, #tpu.memory_space<vmem>>, %arg14: memref<1x8x32xf32, #tpu.memory_space<vmem>>) attributes {dimension_semantics = [#tpu.dimension_semantics<parallel>], iteration_bounds = array<i64: 2>, scalar_prefetch = 0 : i64, scratch_operands = 0 : i64, tpu.core_type = #tpu.core_type<tc>, window_params = [{transform_indices = @transform_0, window_bounds = array<i64: 1, 8, 32>}, {pipeline_mode = #tpu.pipeline_mode<synchronous>, transform_indices = @transform_1, window_bounds = array<i64: 4, 32, 8>}, {pipeline_mode = #tpu.pipeline_mode<synchronous>, transform_indices = @transform_2, window_bounds = array<i64: 4, 32, 8>}, {pipeline_mode = #tpu.pipeline_mode<synchronous>, transform_indices = @transform_3, window_bounds = array<i64: 4, 32, 8>}, {pipeline_mode = #tpu.pipeline_mode<synchronous>, transform_indices = @transform_4, window_bounds = array<i64: 4, 1, 8>}, {pipeline_mode = #tpu.pipeline_mode<synchronous>, transform_indices = @transform_5, window_bounds = array<i64: 4, 1, 8>}, {pipeline_mode = #tpu.pipeline_mode<synchronous>, transform_indices = @transform_6, window_bounds = array<i64: 4, 1, 8>}, {pipeline_mode = #tpu.pipeline_mode<synchronous>, transform_indices = @transform_7, window_bounds = array<i64: 4, 8, 32>}, {pipeline_mode = #tpu.pipeline_mode<synchronous>, transform_indices = @transform_8, window_bounds = array<i64: 1, 32>}, {pipeline_mode = #tpu.pipeline_mode<synchronous>, transform_indices = @transform_9, window_bounds = array<i64: 8, 8>}, {transform_indices = @transform_10, window_bounds = array<i64: 1, 1, 8>}, {pipeline_mode = #tpu.pipeline_mode<synchronous>, transform_indices = @transform_11, window_bounds = array<i64: 1, 32>}, {pipeline_mode = #tpu.pipeline_mode<synchronous>, transform_indices = @transform_12, window_bounds = array<i64: 1, 32>}, {transform_indices = @transform_13, window_bounds = array<i64: 1, 8, 32>}]} {
    %c0 = arith.constant 0 : index
    %c0_0 = arith.constant 0 : index
    %c0_1 = arith.constant 0 : index
    %0 = vector.load %arg1[%c0, %c0_0, %c0_1] : memref<1x8x32xf32, #tpu.memory_space<vmem>>, vector<1x8x32xf32>
    %1 = vector.shape_cast %0 : vector<1x8x32xf32> to vector<8x32xf32>
    %2 = arith.truncf %1 : vector<8x32xf32> to vector<8x32xbf16>
    %c0_2 = arith.constant 0 : index
    %c0_3 = arith.constant 0 : index
    %3 = vector.load %arg10[%c0_2, %c0_3] : memref<8x8xf32, #tpu.memory_space<vmem>>, vector<8x8xf32>
    %c0_4 = arith.constant 0 : index
    %c0_5 = arith.constant 0 : index
    %c0_6 = arith.constant 0 : index
    %4 = vector.load %arg11[%c0_4, %c0_5, %c0_6] : memref<1x1x8xf32, #tpu.memory_space<vmem>>, vector<1x1x8xf32>
    %5 = vector.shape_cast %4 : vector<1x1x8xf32> to vector<1x8xf32>
    %6 = vector.broadcast %5 : vector<1x8xf32> to vector<8x8xf32>
    %7 = arith.addf %3, %6 : vector<8x8xf32>
    %c0_7 = arith.constant 0 : index
    %c0_8 = arith.constant 0 : index
    %8 = vector.load %arg9[%c0_7, %c0_8] : memref<1x32xf32, #tpu.memory_space<vmem>>, vector<1x32xf32>
    %9 = vector.broadcast %8 : vector<1x32xf32> to vector<8x32xf32>
    %10 = arith.addf %9, %1 : vector<8x32xf32>
    %c0_9 = arith.constant 0 : index
    %c0_10 = arith.constant 0 : index
    %c0_11 = arith.constant 0 : index
    %11 = vector.load %arg2[%c0_9, %c0_10, %c0_11] : memref<4x32x8xbf16, #tpu.memory_space<vmem>>, vector<1x32x8xbf16>
    %12 = vector.shape_cast %11 : vector<1x32x8xbf16> to vector<32x8xbf16>
    %cst = arith.constant dense<0.000000e+00> : vector<8x8xf32>
    %13 = tpu.matmul %2, %12, %cst {dimension_numbers = #tpu.dot_dimension_numbers<[1], [0], [0], [1], [0, 0, 1, 1], [], []>} : vector<8x32xbf16>, vector<32x8xbf16>, vector<8x8xf32> -> vector<8x8xf32>
    %c0_12 = arith.constant 0 : index
    %c0_13 = arith.constant 0 : index
    %c0_14 = arith.constant 0 : index
    %14 = vector.load %arg5[%c0_12, %c0_13, %c0_14] : memref<4x1x8xf32, #tpu.memory_space<vmem>>, vector<1x1x8xf32>
    %15 = vector.shape_cast %14 : vector<1x1x8xf32> to vector<1x8xf32>
    %16 = vector.broadcast %15 : vector<1x8xf32> to vector<8x8xf32>
    %17 = arith.addf %13, %16 : vector<8x8xf32>
    %c0_15 = arith.constant 0 : index
    %c0_16 = arith.constant 0 : index
    %c0_17 = arith.constant 0 : index
    %18 = vector.load %arg3[%c0_15, %c0_16, %c0_17] : memref<4x32x8xbf16, #tpu.memory_space<vmem>>, vector<1x32x8xbf16>
    %19 = vector.shape_cast %18 : vector<1x32x8xbf16> to vector<32x8xbf16>
    %cst_18 = arith.constant dense<0.000000e+00> : vector<8x8xf32>
    %20 = tpu.matmul %2, %19, %cst_18 {dimension_numbers = #tpu.dot_dimension_numbers<[1], [0], [0], [1], [0, 0, 1, 1], [], []>} : vector<8x32xbf16>, vector<32x8xbf16>, vector<8x8xf32> -> vector<8x8xf32>
    %c0_19 = arith.constant 0 : index
    %c0_20 = arith.constant 0 : index
    %c0_21 = arith.constant 0 : index
    %21 = vector.load %arg6[%c0_19, %c0_20, %c0_21] : memref<4x1x8xf32, #tpu.memory_space<vmem>>, vector<1x1x8xf32>
    %22 = vector.shape_cast %21 : vector<1x1x8xf32> to vector<1x8xf32>
    %23 = vector.broadcast %22 : vector<1x8xf32> to vector<8x8xf32>
    %24 = arith.addf %20, %23 : vector<8x8xf32>
    %c0_22 = arith.constant 0 : index
    %c0_23 = arith.constant 0 : index
    %c0_24 = arith.constant 0 : index
    %25 = vector.load %arg4[%c0_22, %c0_23, %c0_24] : memref<4x32x8xbf16, #tpu.memory_space<vmem>>, vector<1x32x8xbf16>
    %26 = vector.shape_cast %25 : vector<1x32x8xbf16> to vector<32x8xbf16>
    %cst_25 = arith.constant dense<0.000000e+00> : vector<8x8xf32>
    %27 = tpu.matmul %2, %26, %cst_25 {dimension_numbers = #tpu.dot_dimension_numbers<[1], [0], [0], [1], [0, 0, 1, 1], [], []>} : vector<8x32xbf16>, vector<32x8xbf16>, vector<8x8xf32> -> vector<8x8xf32>
    %c0_26 = arith.constant 0 : index
    %c0_27 = arith.constant 0 : index
    %c0_28 = arith.constant 0 : index
    %28 = vector.load %arg7[%c0_26, %c0_27, %c0_28] : memref<4x1x8xf32, #tpu.memory_space<vmem>>, vector<1x1x8xf32>
    %29 = vector.shape_cast %28 : vector<1x1x8xf32> to vector<1x8xf32>
    %30 = vector.broadcast %29 : vector<1x8xf32> to vector<8x8xf32>
    %31 = arith.addf %27, %30 : vector<8x8xf32>
    %32 = arith.truncf %17 : vector<8x8xf32> to vector<8x8xbf16>
    %33 = arith.truncf %24 : vector<8x8xf32> to vector<8x8xbf16>
    %cst_29 = arith.constant dense<0.000000e+00> : vector<8x8xf32>
    %34 = tpu.matmul %32, %33, %cst_29 {dimension_numbers = #tpu.dot_dimension_numbers<[1], [1], [0], [0], [0, 0, 1, 0], [], []>} : vector<8x8xbf16>, vector<8x8xbf16>, vector<8x8xf32> -> vector<8x8xf32>
    %cst_30 = arith.constant 0.353553385 : f32
    %35 = vector.broadcast %cst_30 : f32 to vector<8x8xf32>
    %36 = arith.mulf %34, %35 : vector<8x8xf32>
    %37 = arith.addf %36, %7 : vector<8x8xf32>
    %cst_31 = arith.constant dense<0xFF800000> : vector<8xf32>
    %38 = vector.multi_reduction <maximumf>, %37, %cst_31 [1] : vector<8x8xf32> to vector<8xf32>
    %39 = vector.shape_cast %38 : vector<8xf32> to vector<8x1xf32>
    %40 = vector.broadcast %39 : vector<8x1xf32> to vector<8x8xf32>
    %41 = arith.subf %37, %40 : vector<8x8xf32>
    %42 = math.exp %41 : vector<8x8xf32>
    %cst_32 = arith.constant dense<0.000000e+00> : vector<8xf32>
    %43 = vector.multi_reduction <add>, %42, %cst_32 [1] : vector<8x8xf32> to vector<8xf32>
    %44 = vector.shape_cast %43 : vector<8xf32> to vector<8x1xf32>
    %45 = tpu.reciprocal %44 : vector<8x1xf32> -> vector<8x1xf32>
    %46 = vector.broadcast %45 : vector<8x1xf32> to vector<8x8xf32>
    %47 = arith.mulf %42, %46 : vector<8x8xf32>
    %48 = arith.truncf %47 : vector<8x8xf32> to vector<8x8xbf16>
    %49 = arith.truncf %31 : vector<8x8xf32> to vector<8x8xbf16>
    %cst_33 = arith.constant dense<0.000000e+00> : vector<8x8xf32>
    %50 = tpu.matmul %48, %49, %cst_33 {dimension_numbers = #tpu.dot_dimension_numbers<[1], [0], [0], [1], [0, 0, 1, 1], [], []>} : vector<8x8xbf16>, vector<8x8xbf16>, vector<8x8xf32> -> vector<8x8xf32>
    %51 = arith.truncf %50 : vector<8x8xf32> to vector<8x8xbf16>
    %c0_34 = arith.constant 0 : index
    %c0_35 = arith.constant 0 : index
    %c0_36 = arith.constant 0 : index
    %52 = vector.load %arg8[%c0_34, %c0_35, %c0_36] : memref<4x8x32xbf16, #tpu.memory_space<vmem>>, vector<1x8x32xbf16>
    %53 = vector.shape_cast %52 : vector<1x8x32xbf16> to vector<8x32xbf16>
    %cst_37 = arith.constant dense<0.000000e+00> : vector<8x32xf32>
    %54 = tpu.matmul %51, %53, %cst_37 {dimension_numbers = #tpu.dot_dimension_numbers<[1], [0], [0], [1], [0, 0, 1, 1], [], []>} : vector<8x8xbf16>, vector<8x32xbf16>, vector<8x32xf32> -> vector<8x32xf32>
    %55 = arith.addf %10, %54 : vector<8x32xf32>
    %c1 = arith.constant 1 : index
    %c0_38 = arith.constant 0 : index
    %c0_39 = arith.constant 0 : index
    %56 = vector.load %arg2[%c1, %c0_38, %c0_39] : memref<4x32x8xbf16, #tpu.memory_space<vmem>>, vector<1x32x8xbf16>
    %57 = vector.shape_cast %56 : vector<1x32x8xbf16> to vector<32x8xbf16>
    %cst_40 = arith.constant dense<0.000000e+00> : vector<8x8xf32>
    %58 = tpu.matmul %2, %57, %cst_40 {dimension_numbers = #tpu.dot_dimension_numbers<[1], [0], [0], [1], [0, 0, 1, 1], [], []>} : vector<8x32xbf16>, vector<32x8xbf16>, vector<8x8xf32> -> vector<8x8xf32>
    %c1_41 = arith.constant 1 : index
    %c0_42 = arith.constant 0 : index
    %c0_43 = arith.constant 0 : index
    %59 = vector.load %arg5[%c1_41, %c0_42, %c0_43] : memref<4x1x8xf32, #tpu.memory_space<vmem>>, vector<1x1x8xf32>
    %60 = vector.shape_cast %59 : vector<1x1x8xf32> to vector<1x8xf32>
    %61 = vector.broadcast %60 : vector<1x8xf32> to vector<8x8xf32>
    %62 = arith.addf %58, %61 : vector<8x8xf32>
    %c1_44 = arith.constant 1 : index
    %c0_45 = arith.constant 0 : index
    %c0_46 = arith.constant 0 : index
    %63 = vector.load %arg3[%c1_44, %c0_45, %c0_46] : memref<4x32x8xbf16, #tpu.memory_space<vmem>>, vector<1x32x8xbf16>
    %64 = vector.shape_cast %63 : vector<1x32x8xbf16> to vector<32x8xbf16>
    %cst_47 = arith.constant dense<0.000000e+00> : vector<8x8xf32>
    %65 = tpu.matmul %2, %64, %cst_47 {dimension_numbers = #tpu.dot_dimension_numbers<[1], [0], [0], [1], [0, 0, 1, 1], [], []>} : vector<8x32xbf16>, vector<32x8xbf16>, vector<8x8xf32> -> vector<8x8xf32>
    %c1_48 = arith.constant 1 : index
    %c0_49 = arith.constant 0 : index
    %c0_50 = arith.constant 0 : index
    %66 = vector.load %arg6[%c1_48, %c0_49, %c0_50] : memref<4x1x8xf32, #tpu.memory_space<vmem>>, vector<1x1x8xf32>
    %67 = vector.shape_cast %66 : vector<1x1x8xf32> to vector<1x8xf32>
    %68 = vector.broadcast %67 : vector<1x8xf32> to vector<8x8xf32>
    %69 = arith.addf %65, %68 : vector<8x8xf32>
    %c1_51 = arith.constant 1 : index
    %c0_52 = arith.constant 0 : index
    %c0_53 = arith.constant 0 : index
    %70 = vector.load %arg4[%c1_51, %c0_52, %c0_53] : memref<4x32x8xbf16, #tpu.memory_space<vmem>>, vector<1x32x8xbf16>
    %71 = vector.shape_cast %70 : vector<1x32x8xbf16> to vector<32x8xbf16>
    %cst_54 = arith.constant dense<0.000000e+00> : vector<8x8xf32>
    %72 = tpu.matmul %2, %71, %cst_54 {dimension_numbers = #tpu.dot_dimension_numbers<[1], [0], [0], [1], [0, 0, 1, 1], [], []>} : vector<8x32xbf16>, vector<32x8xbf16>, vector<8x8xf32> -> vector<8x8xf32>
    %c1_55 = arith.constant 1 : index
    %c0_56 = arith.constant 0 : index
    %c0_57 = arith.constant 0 : index
    %73 = vector.load %arg7[%c1_55, %c0_56, %c0_57] : memref<4x1x8xf32, #tpu.memory_space<vmem>>, vector<1x1x8xf32>
    %74 = vector.shape_cast %73 : vector<1x1x8xf32> to vector<1x8xf32>
    %75 = vector.broadcast %74 : vector<1x8xf32> to vector<8x8xf32>
    %76 = arith.addf %72, %75 : vector<8x8xf32>
    %77 = arith.truncf %62 : vector<8x8xf32> to vector<8x8xbf16>
    %78 = arith.truncf %69 : vector<8x8xf32> to vector<8x8xbf16>
    %cst_58 = arith.constant dense<0.000000e+00> : vector<8x8xf32>
    %79 = tpu.matmul %77, %78, %cst_58 {dimension_numbers = #tpu.dot_dimension_numbers<[1], [1], [0], [0], [0, 0, 1, 0], [], []>} : vector<8x8xbf16>, vector<8x8xbf16>, vector<8x8xf32> -> vector<8x8xf32>
    %cst_59 = arith.constant 0.353553385 : f32
    %80 = vector.broadcast %cst_59 : f32 to vector<8x8xf32>
    %81 = arith.mulf %79, %80 : vector<8x8xf32>
    %82 = arith.addf %81, %7 : vector<8x8xf32>
    %cst_60 = arith.constant dense<0xFF800000> : vector<8xf32>
    %83 = vector.multi_reduction <maximumf>, %82, %cst_60 [1] : vector<8x8xf32> to vector<8xf32>
    %84 = vector.shape_cast %83 : vector<8xf32> to vector<8x1xf32>
    %85 = vector.broadcast %84 : vector<8x1xf32> to vector<8x8xf32>
    %86 = arith.subf %82, %85 : vector<8x8xf32>
    %87 = math.exp %86 : vector<8x8xf32>
    %cst_61 = arith.constant dense<0.000000e+00> : vector<8xf32>
    %88 = vector.multi_reduction <add>, %87, %cst_61 [1] : vector<8x8xf32> to vector<8xf32>
    %89 = vector.shape_cast %88 : vector<8xf32> to vector<8x1xf32>
    %90 = tpu.reciprocal %89 : vector<8x1xf32> -> vector<8x1xf32>
    %91 = vector.broadcast %90 : vector<8x1xf32> to vector<8x8xf32>
    %92 = arith.mulf %87, %91 : vector<8x8xf32>
    %93 = arith.truncf %92 : vector<8x8xf32> to vector<8x8xbf16>
    %94 = arith.truncf %76 : vector<8x8xf32> to vector<8x8xbf16>
    %cst_62 = arith.constant dense<0.000000e+00> : vector<8x8xf32>
    %95 = tpu.matmul %93, %94, %cst_62 {dimension_numbers = #tpu.dot_dimension_numbers<[1], [0], [0], [1], [0, 0, 1, 1], [], []>} : vector<8x8xbf16>, vector<8x8xbf16>, vector<8x8xf32> -> vector<8x8xf32>
    %96 = arith.truncf %95 : vector<8x8xf32> to vector<8x8xbf16>
    %c1_63 = arith.constant 1 : index
    %c0_64 = arith.constant 0 : index
    %c0_65 = arith.constant 0 : index
    %97 = vector.load %arg8[%c1_63, %c0_64, %c0_65] : memref<4x8x32xbf16, #tpu.memory_space<vmem>>, vector<1x8x32xbf16>
    %98 = vector.shape_cast %97 : vector<1x8x32xbf16> to vector<8x32xbf16>
    %cst_66 = arith.constant dense<0.000000e+00> : vector<8x32xf32>
    %99 = tpu.matmul %96, %98, %cst_66 {dimension_numbers = #tpu.dot_dimension_numbers<[1], [0], [0], [1], [0, 0, 1, 1], [], []>} : vector<8x8xbf16>, vector<8x32xbf16>, vector<8x32xf32> -> vector<8x32xf32>
    %100 = arith.addf %55, %99 : vector<8x32xf32>
    %c2 = arith.constant 2 : index
    %c0_67 = arith.constant 0 : index
    %c0_68 = arith.constant 0 : index
    %101 = vector.load %arg2[%c2, %c0_67, %c0_68] : memref<4x32x8xbf16, #tpu.memory_space<vmem>>, vector<1x32x8xbf16>
    %102 = vector.shape_cast %101 : vector<1x32x8xbf16> to vector<32x8xbf16>
    %cst_69 = arith.constant dense<0.000000e+00> : vector<8x8xf32>
    %103 = tpu.matmul %2, %102, %cst_69 {dimension_numbers = #tpu.dot_dimension_numbers<[1], [0], [0], [1], [0, 0, 1, 1], [], []>} : vector<8x32xbf16>, vector<32x8xbf16>, vector<8x8xf32> -> vector<8x8xf32>
    %c2_70 = arith.constant 2 : index
    %c0_71 = arith.constant 0 : index
    %c0_72 = arith.constant 0 : index
    %104 = vector.load %arg5[%c2_70, %c0_71, %c0_72] : memref<4x1x8xf32, #tpu.memory_space<vmem>>, vector<1x1x8xf32>
    %105 = vector.shape_cast %104 : vector<1x1x8xf32> to vector<1x8xf32>
    %106 = vector.broadcast %105 : vector<1x8xf32> to vector<8x8xf32>
    %107 = arith.addf %103, %106 : vector<8x8xf32>
    %c2_73 = arith.constant 2 : index
    %c0_74 = arith.constant 0 : index
    %c0_75 = arith.constant 0 : index
    %108 = vector.load %arg3[%c2_73, %c0_74, %c0_75] : memref<4x32x8xbf16, #tpu.memory_space<vmem>>, vector<1x32x8xbf16>
    %109 = vector.shape_cast %108 : vector<1x32x8xbf16> to vector<32x8xbf16>
    %cst_76 = arith.constant dense<0.000000e+00> : vector<8x8xf32>
    %110 = tpu.matmul %2, %109, %cst_76 {dimension_numbers = #tpu.dot_dimension_numbers<[1], [0], [0], [1], [0, 0, 1, 1], [], []>} : vector<8x32xbf16>, vector<32x8xbf16>, vector<8x8xf32> -> vector<8x8xf32>
    %c2_77 = arith.constant 2 : index
    %c0_78 = arith.constant 0 : index
    %c0_79 = arith.constant 0 : index
    %111 = vector.load %arg6[%c2_77, %c0_78, %c0_79] : memref<4x1x8xf32, #tpu.memory_space<vmem>>, vector<1x1x8xf32>
    %112 = vector.shape_cast %111 : vector<1x1x8xf32> to vector<1x8xf32>
    %113 = vector.broadcast %112 : vector<1x8xf32> to vector<8x8xf32>
    %114 = arith.addf %110, %113 : vector<8x8xf32>
    %c2_80 = arith.constant 2 : index
    %c0_81 = arith.constant 0 : index
    %c0_82 = arith.constant 0 : index
    %115 = vector.load %arg4[%c2_80, %c0_81, %c0_82] : memref<4x32x8xbf16, #tpu.memory_space<vmem>>, vector<1x32x8xbf16>
    %116 = vector.shape_cast %115 : vector<1x32x8xbf16> to vector<32x8xbf16>
    %cst_83 = arith.constant dense<0.000000e+00> : vector<8x8xf32>
    %117 = tpu.matmul %2, %116, %cst_83 {dimension_numbers = #tpu.dot_dimension_numbers<[1], [0], [0], [1], [0, 0, 1, 1], [], []>} : vector<8x32xbf16>, vector<32x8xbf16>, vector<8x8xf32> -> vector<8x8xf32>
    %c2_84 = arith.constant 2 : index
    %c0_85 = arith.constant 0 : index
    %c0_86 = arith.constant 0 : index
    %118 = vector.load %arg7[%c2_84, %c0_85, %c0_86] : memref<4x1x8xf32, #tpu.memory_space<vmem>>, vector<1x1x8xf32>
    %119 = vector.shape_cast %118 : vector<1x1x8xf32> to vector<1x8xf32>
    %120 = vector.broadcast %119 : vector<1x8xf32> to vector<8x8xf32>
    %121 = arith.addf %117, %120 : vector<8x8xf32>
    %122 = arith.truncf %107 : vector<8x8xf32> to vector<8x8xbf16>
    %123 = arith.truncf %114 : vector<8x8xf32> to vector<8x8xbf16>
    %cst_87 = arith.constant dense<0.000000e+00> : vector<8x8xf32>
    %124 = tpu.matmul %122, %123, %cst_87 {dimension_numbers = #tpu.dot_dimension_numbers<[1], [1], [0], [0], [0, 0, 1, 0], [], []>} : vector<8x8xbf16>, vector<8x8xbf16>, vector<8x8xf32> -> vector<8x8xf32>
    %cst_88 = arith.constant 0.353553385 : f32
    %125 = vector.broadcast %cst_88 : f32 to vector<8x8xf32>
    %126 = arith.mulf %124, %125 : vector<8x8xf32>
    %127 = arith.addf %126, %7 : vector<8x8xf32>
    %cst_89 = arith.constant dense<0xFF800000> : vector<8xf32>
    %128 = vector.multi_reduction <maximumf>, %127, %cst_89 [1] : vector<8x8xf32> to vector<8xf32>
    %129 = vector.shape_cast %128 : vector<8xf32> to vector<8x1xf32>
    %130 = vector.broadcast %129 : vector<8x1xf32> to vector<8x8xf32>
    %131 = arith.subf %127, %130 : vector<8x8xf32>
    %132 = math.exp %131 : vector<8x8xf32>
    %cst_90 = arith.constant dense<0.000000e+00> : vector<8xf32>
    %133 = vector.multi_reduction <add>, %132, %cst_90 [1] : vector<8x8xf32> to vector<8xf32>
    %134 = vector.shape_cast %133 : vector<8xf32> to vector<8x1xf32>
    %135 = tpu.reciprocal %134 : vector<8x1xf32> -> vector<8x1xf32>
    %136 = vector.broadcast %135 : vector<8x1xf32> to vector<8x8xf32>
    %137 = arith.mulf %132, %136 : vector<8x8xf32>
    %138 = arith.truncf %137 : vector<8x8xf32> to vector<8x8xbf16>
    %139 = arith.truncf %121 : vector<8x8xf32> to vector<8x8xbf16>
    %cst_91 = arith.constant dense<0.000000e+00> : vector<8x8xf32>
    %140 = tpu.matmul %138, %139, %cst_91 {dimension_numbers = #tpu.dot_dimension_numbers<[1], [0], [0], [1], [0, 0, 1, 1], [], []>} : vector<8x8xbf16>, vector<8x8xbf16>, vector<8x8xf32> -> vector<8x8xf32>
    %141 = arith.truncf %140 : vector<8x8xf32> to vector<8x8xbf16>
    %c2_92 = arith.constant 2 : index
    %c0_93 = arith.constant 0 : index
    %c0_94 = arith.constant 0 : index
    %142 = vector.load %arg8[%c2_92, %c0_93, %c0_94] : memref<4x8x32xbf16, #tpu.memory_space<vmem>>, vector<1x8x32xbf16>
    %143 = vector.shape_cast %142 : vector<1x8x32xbf16> to vector<8x32xbf16>
    %cst_95 = arith.constant dense<0.000000e+00> : vector<8x32xf32>
    %144 = tpu.matmul %141, %143, %cst_95 {dimension_numbers = #tpu.dot_dimension_numbers<[1], [0], [0], [1], [0, 0, 1, 1], [], []>} : vector<8x8xbf16>, vector<8x32xbf16>, vector<8x32xf32> -> vector<8x32xf32>
    %145 = arith.addf %100, %144 : vector<8x32xf32>
    %c3 = arith.constant 3 : index
    %c0_96 = arith.constant 0 : index
    %c0_97 = arith.constant 0 : index
    %146 = vector.load %arg2[%c3, %c0_96, %c0_97] : memref<4x32x8xbf16, #tpu.memory_space<vmem>>, vector<1x32x8xbf16>
    %147 = vector.shape_cast %146 : vector<1x32x8xbf16> to vector<32x8xbf16>
    %cst_98 = arith.constant dense<0.000000e+00> : vector<8x8xf32>
    %148 = tpu.matmul %2, %147, %cst_98 {dimension_numbers = #tpu.dot_dimension_numbers<[1], [0], [0], [1], [0, 0, 1, 1], [], []>} : vector<8x32xbf16>, vector<32x8xbf16>, vector<8x8xf32> -> vector<8x8xf32>
    %c3_99 = arith.constant 3 : index
    %c0_100 = arith.constant 0 : index
    %c0_101 = arith.constant 0 : index
    %149 = vector.load %arg5[%c3_99, %c0_100, %c0_101] : memref<4x1x8xf32, #tpu.memory_space<vmem>>, vector<1x1x8xf32>
    %150 = vector.shape_cast %149 : vector<1x1x8xf32> to vector<1x8xf32>
    %151 = vector.broadcast %150 : vector<1x8xf32> to vector<8x8xf32>
    %152 = arith.addf %148, %151 : vector<8x8xf32>
    %c3_102 = arith.constant 3 : index
    %c0_103 = arith.constant 0 : index
    %c0_104 = arith.constant 0 : index
    %153 = vector.load %arg3[%c3_102, %c0_103, %c0_104] : memref<4x32x8xbf16, #tpu.memory_space<vmem>>, vector<1x32x8xbf16>
    %154 = vector.shape_cast %153 : vector<1x32x8xbf16> to vector<32x8xbf16>
    %cst_105 = arith.constant dense<0.000000e+00> : vector<8x8xf32>
    %155 = tpu.matmul %2, %154, %cst_105 {dimension_numbers = #tpu.dot_dimension_numbers<[1], [0], [0], [1], [0, 0, 1, 1], [], []>} : vector<8x32xbf16>, vector<32x8xbf16>, vector<8x8xf32> -> vector<8x8xf32>
    %c3_106 = arith.constant 3 : index
    %c0_107 = arith.constant 0 : index
    %c0_108 = arith.constant 0 : index
    %156 = vector.load %arg6[%c3_106, %c0_107, %c0_108] : memref<4x1x8xf32, #tpu.memory_space<vmem>>, vector<1x1x8xf32>
    %157 = vector.shape_cast %156 : vector<1x1x8xf32> to vector<1x8xf32>
    %158 = vector.broadcast %157 : vector<1x8xf32> to vector<8x8xf32>
    %159 = arith.addf %155, %158 : vector<8x8xf32>
    %c3_109 = arith.constant 3 : index
    %c0_110 = arith.constant 0 : index
    %c0_111 = arith.constant 0 : index
    %160 = vector.load %arg4[%c3_109, %c0_110, %c0_111] : memref<4x32x8xbf16, #tpu.memory_space<vmem>>, vector<1x32x8xbf16>
    %161 = vector.shape_cast %160 : vector<1x32x8xbf16> to vector<32x8xbf16>
    %cst_112 = arith.constant dense<0.000000e+00> : vector<8x8xf32>
    %162 = tpu.matmul %2, %161, %cst_112 {dimension_numbers = #tpu.dot_dimension_numbers<[1], [0], [0], [1], [0, 0, 1, 1], [], []>} : vector<8x32xbf16>, vector<32x8xbf16>, vector<8x8xf32> -> vector<8x8xf32>
    %c3_113 = arith.constant 3 : index
    %c0_114 = arith.constant 0 : index
    %c0_115 = arith.constant 0 : index
    %163 = vector.load %arg7[%c3_113, %c0_114, %c0_115] : memref<4x1x8xf32, #tpu.memory_space<vmem>>, vector<1x1x8xf32>
    %164 = vector.shape_cast %163 : vector<1x1x8xf32> to vector<1x8xf32>
    %165 = vector.broadcast %164 : vector<1x8xf32> to vector<8x8xf32>
    %166 = arith.addf %162, %165 : vector<8x8xf32>
    %167 = arith.truncf %152 : vector<8x8xf32> to vector<8x8xbf16>
    %168 = arith.truncf %159 : vector<8x8xf32> to vector<8x8xbf16>
    %cst_116 = arith.constant dense<0.000000e+00> : vector<8x8xf32>
    %169 = tpu.matmul %167, %168, %cst_116 {dimension_numbers = #tpu.dot_dimension_numbers<[1], [1], [0], [0], [0, 0, 1, 0], [], []>} : vector<8x8xbf16>, vector<8x8xbf16>, vector<8x8xf32> -> vector<8x8xf32>
    %cst_117 = arith.constant 0.353553385 : f32
    %170 = vector.broadcast %cst_117 : f32 to vector<8x8xf32>
    %171 = arith.mulf %169, %170 : vector<8x8xf32>
    %172 = arith.addf %171, %7 : vector<8x8xf32>
    %cst_118 = arith.constant dense<0xFF800000> : vector<8xf32>
    %173 = vector.multi_reduction <maximumf>, %172, %cst_118 [1] : vector<8x8xf32> to vector<8xf32>
    %174 = vector.shape_cast %173 : vector<8xf32> to vector<8x1xf32>
    %175 = vector.broadcast %174 : vector<8x1xf32> to vector<8x8xf32>
    %176 = arith.subf %172, %175 : vector<8x8xf32>
    %177 = math.exp %176 : vector<8x8xf32>
    %cst_119 = arith.constant dense<0.000000e+00> : vector<8xf32>
    %178 = vector.multi_reduction <add>, %177, %cst_119 [1] : vector<8x8xf32> to vector<8xf32>
    %179 = vector.shape_cast %178 : vector<8xf32> to vector<8x1xf32>
    %180 = tpu.reciprocal %179 : vector<8x1xf32> -> vector<8x1xf32>
    %181 = vector.broadcast %180 : vector<8x1xf32> to vector<8x8xf32>
    %182 = arith.mulf %177, %181 : vector<8x8xf32>
    %183 = arith.truncf %182 : vector<8x8xf32> to vector<8x8xbf16>
    %184 = arith.truncf %166 : vector<8x8xf32> to vector<8x8xbf16>
    %cst_120 = arith.constant dense<0.000000e+00> : vector<8x8xf32>
    %185 = tpu.matmul %183, %184, %cst_120 {dimension_numbers = #tpu.dot_dimension_numbers<[1], [0], [0], [1], [0, 0, 1, 1], [], []>} : vector<8x8xbf16>, vector<8x8xbf16>, vector<8x8xf32> -> vector<8x8xf32>
    %186 = arith.truncf %185 : vector<8x8xf32> to vector<8x8xbf16>
    %c3_121 = arith.constant 3 : index
    %c0_122 = arith.constant 0 : index
    %c0_123 = arith.constant 0 : index
    %187 = vector.load %arg8[%c3_121, %c0_122, %c0_123] : memref<4x8x32xbf16, #tpu.memory_space<vmem>>, vector<1x8x32xbf16>
    %188 = vector.shape_cast %187 : vector<1x8x32xbf16> to vector<8x32xbf16>
    %cst_124 = arith.constant dense<0.000000e+00> : vector<8x32xf32>
    %189 = tpu.matmul %186, %188, %cst_124 {dimension_numbers = #tpu.dot_dimension_numbers<[1], [0], [0], [1], [0, 0, 1, 1], [], []>} : vector<8x8xbf16>, vector<8x32xbf16>, vector<8x32xf32> -> vector<8x32xf32>
    %190 = arith.addf %145, %189 : vector<8x32xf32>
    %cst_125 = arith.constant dense<0.000000e+00> : vector<8xf32>
    %191 = vector.multi_reduction <add>, %190, %cst_125 [1] : vector<8x32xf32> to vector<8xf32>
    %192 = vector.shape_cast %191 : vector<8xf32> to vector<8x1xf32>
    %cst_126 = arith.constant 3.200000e+01 : f32
    %193 = vector.broadcast %cst_126 : f32 to vector<8x1xf32>
    %194 = arith.divf %192, %193 : vector<8x1xf32>
    %195 = vector.broadcast %194 : vector<8x1xf32> to vector<8x32xf32>
    %196 = arith.subf %190, %195 : vector<8x32xf32>
    %197 = arith.mulf %196, %196 : vector<8x32xf32>
    %cst_127 = arith.constant dense<0.000000e+00> : vector<8xf32>
    %198 = vector.multi_reduction <add>, %197, %cst_127 [1] : vector<8x32xf32> to vector<8xf32>
    %199 = vector.shape_cast %198 : vector<8xf32> to vector<8x1xf32>
    %cst_128 = arith.constant 3.200000e+01 : f32
    %200 = vector.broadcast %cst_128 : f32 to vector<8x1xf32>
    %201 = arith.divf %199, %200 : vector<8x1xf32>
    %cst_129 = arith.constant 9.99999974E-6 : f32
    %202 = vector.broadcast %cst_129 : f32 to vector<8x1xf32>
    %203 = arith.addf %201, %202 : vector<8x1xf32>
    %204 = math.rsqrt %203 : vector<8x1xf32>
    %205 = vector.broadcast %204 : vector<8x1xf32> to vector<8x32xf32>
    %206 = arith.mulf %196, %205 : vector<8x32xf32>
    %c0_130 = arith.constant 0 : index
    %c0_131 = arith.constant 0 : index
    %207 = vector.load %arg12[%c0_130, %c0_131] : memref<1x32xf32, #tpu.memory_space<vmem>>, vector<1x32xf32>
    %208 = vector.broadcast %207 : vector<1x32xf32> to vector<8x32xf32>
    %209 = arith.mulf %206, %208 : vector<8x32xf32>
    %c0_132 = arith.constant 0 : index
    %c0_133 = arith.constant 0 : index
    %210 = vector.load %arg13[%c0_132, %c0_133] : memref<1x32xf32, #tpu.memory_space<vmem>>, vector<1x32xf32>
    %211 = vector.broadcast %210 : vector<1x32xf32> to vector<8x32xf32>
    %212 = arith.addf %209, %211 : vector<8x32xf32>
    %c0_134 = arith.constant 0 : index
    %c0_135 = arith.constant 0 : index
    %c0_136 = arith.constant 0 : index
    %213 = vector.load %arg14[%c0_134, %c0_135, %c0_136] : memref<1x8x32xf32, #tpu.memory_space<vmem>>, vector<1x8x32xf32>
    %214 = vector.shape_cast %213 : vector<1x8x32xf32> to vector<8x32xf32>
    %215 = vector.shape_cast %212 : vector<8x32xf32> to vector<1x8x32xf32>
    tpu.vector_store %arg14[%c0_134, %c0_135, %c0_136], %215 {strides = array<i32>} : memref<1x8x32xf32, #tpu.memory_space<vmem>>, vector<1x8x32xf32>,
    return
  }
  func.func @transform_0(%arg0: i32) -> (i32, i32, i32) {
    %c0_i32 = arith.constant 0 : i32
    %c0_i32_0 = arith.constant 0 : i32
    %c0_i32_1 = arith.constant 0 : i32
    return %arg0, %c0_i32, %c0_i32_0 : i32, i32, i32
  }
  func.func @transform_1(%arg0: i32) -> (i32, i32, i32) {
    %c0_i32 = arith.constant 0 : i32
    %c0_i32_0 = arith.constant 0 : i32
    %c0_i32_1 = arith.constant 0 : i32
    %c0_i32_2 = arith.constant 0 : i32
    return %c0_i32, %c0_i32_0, %c0_i32_1 : i32, i32, i32
  }
  func.func @transform_2(%arg0: i32) -> (i32, i32, i32) {
    %c0_i32 = arith.constant 0 : i32
    %c0_i32_0 = arith.constant 0 : i32
    %c0_i32_1 = arith.constant 0 : i32
    %c0_i32_2 = arith.constant 0 : i32
    return %c0_i32, %c0_i32_0, %c0_i32_1 : i32, i32, i32
  }
  func.func @transform_3(%arg0: i32) -> (i32, i32, i32) {
    %c0_i32 = arith.constant 0 : i32
    %c0_i32_0 = arith.constant 0 : i32
    %c0_i32_1 = arith.constant 0 : i32
    %c0_i32_2 = arith.constant 0 : i32
    return %c0_i32, %c0_i32_0, %c0_i32_1 : i32, i32, i32
  }
  func.func @transform_4(%arg0: i32) -> (i32, i32, i32) {
    %c0_i32 = arith.constant 0 : i32
    %c0_i32_0 = arith.constant 0 : i32
    %c0_i32_1 = arith.constant 0 : i32
    %c0_i32_2 = arith.constant 0 : i32
    return %c0_i32, %c0_i32_0, %c0_i32_1 : i32, i32, i32
  }
  func.func @transform_5(%arg0: i32) -> (i32, i32, i32) {
    %c0_i32 = arith.constant 0 : i32
    %c0_i32_0 = arith.constant 0 : i32
    %c0_i32_1 = arith.constant 0 : i32
    %c0_i32_2 = arith.constant 0 : i32
    return %c0_i32, %c0_i32_0, %c0_i32_1 : i32, i32, i32
  }
  func.func @transform_6(%arg0: i32) -> (i32, i32, i32) {
    %c0_i32 = arith.constant 0 : i32
    %c0_i32_0 = arith.constant 0 : i32
    %c0_i32_1 = arith.constant 0 : i32
    %c0_i32_2 = arith.constant 0 : i32
    return %c0_i32, %c0_i32_0, %c0_i32_1 : i32, i32, i32
  }
  func.func @transform_7(%arg0: i32) -> (i32, i32, i32) {
    %c0_i32 = arith.constant 0 : i32
    %c0_i32_0 = arith.constant 0 : i32
    %c0_i32_1 = arith.constant 0 : i32
    %c0_i32_2 = arith.constant 0 : i32
    return %c0_i32, %c0_i32_0, %c0_i32_1 : i32, i32, i32
  }
  func.func @transform_8(%arg0: i32) -> (i32, i32) {
    %c0_i32 = arith.constant 0 : i32
    %c0_i32_0 = arith.constant 0 : i32
    %c0_i32_1 = arith.constant 0 : i32
    return %c0_i32, %c0_i32_0 : i32, i32
  }
  func.func @transform_9(%arg0: i32) -> (i32, i32) {
    %c0_i32 = arith.constant 0 : i32
    %c0_i32_0 = arith.constant 0 : i32
    %c0_i32_1 = arith.constant 0 : i32
    return %c0_i32, %c0_i32_0 : i32, i32
  }
  func.func @transform_10(%arg0: i32) -> (i32, i32, i32) {
    %c0_i32 = arith.constant 0 : i32
    %c0_i32_0 = arith.constant 0 : i32
    %c0_i32_1 = arith.constant 0 : i32
    return %arg0, %c0_i32, %c0_i32_0 : i32, i32, i32
  }
  func.func @transform_11(%arg0: i32) -> (i32, i32) {
    %c0_i32 = arith.constant 0 : i32
    %c0_i32_0 = arith.constant 0 : i32
    %c0_i32_1 = arith.constant 0 : i32
    return %c0_i32, %c0_i32_0 : i32, i32
  }
  func.func @transform_12(%arg0: i32) -> (i32, i32) {
    %c0_i32 = arith.constant 0 : i32
    %c0_i32_0 = arith.constant 0 : i32
    %c0_i32_1 = arith.constant 0 : i32
    return %c0_i32, %c0_i32_0 : i32, i32
  }
  func.func @transform_13(%arg0: i32) -> (i32, i32, i32) {
    %c0_i32 = arith.constant 0 : i32
    %c0_i32_0 = arith.constant 0 : i32
    %c0_i32_1 = arith.constant 0 : i32
    return %arg0, %c0_i32, %c0_i32_0 : i32, i32, i32
  }
}

</mosaic_0001>

<llo_original>
// kernel: tpu_custom_call.1
$region0: #{tpu_custom_call.1}
  #allocation0 [shape = 'u32[]', space=smem, size = 0x4, offset = 0x4, fixed_abs, tag = 'smem constant byte address 0x4 - core index']
  #allocation1 [shape = 'u32[144,128]{1,0:T(1,128)}', space=vmem, size = 0x12000, scoped, tag = 'internal scratch']
  %s0 = inlined_call_operand.hbm [shape: f32[8,128], index: 0, kind: input, shape index: {}]
  %s1 = inlined_call_operand.hbm [shape: f32[16,128], index: 1, kind: input, shape index: {}]
  %s2 = inlined_call_operand.hbm [shape: f32[16,128], index: 2, kind: output, shape index: {}]
  %s3 = sld [smem:[#allocation0]]
  $region49: #{tpu_custom_call.1} parent=0
    _
  %s5 = ssub.s32 1, %s3
  %s6 = scalar_select 0, %s5, %s3
  $region1: #{tpu_custom_call.1} parent=0
    #allocation2 [shape = 'u8[4096]{0}', space=vmem, size = 0x1000, scoped, tag = 'input window, operand 0, single buffered']
    #allocation3 [shape = 's32[2]{0}', space=sflag, size = 0x8, scoped, tag = 'scoped memory for tpu_custom_call.1']
    #allocation4 [shape = 's32[2]{0}', space=sflag, size = 0x8, scoped, tag = 'scoped memory for tpu_custom_call.1']
    #allocation5 [shape = 'u8[8192]{0}', space=vmem, size = 0x2000, scoped, tag = 'input window, operand 1']
    #allocation6 [shape = 's32[2]{0}', space=sflag, size = 0x8, scoped, tag = 'scoped memory for tpu_custom_call.1']
    #allocation7 [shape = 'u8[8192]{0}', space=vmem, size = 0x2000, scoped, tag = 'output window, operand 0']
    %7 = vsyncpa [#allocation3], 0
    %8 = vsyncpa [#allocation6], 0
    %s9 = scalar_lea.sflag [#allocation6], 1
    %10 = vsyncpa %s9, 0
    %11 = vsyncpa [#allocation4], 0
    %s12 = scalar_lea.sflag [#allocation4], 1
    %13 = vsyncpa %s12, 0
    loop: start=0, step=1, limit=4
    $region2: #{tpu_custom_call.1} parent=1 // loop_pre_header
      _
    $region3: #{tpu_custom_call.1} parent=1 // loop_header
      %s15 = sphi 0, %s19
      %p16 = scmp.ge.s32.totalorder %s15, 4
      %s23 = sphi 0, %s23
      %s25 = sphi 0, %s23
      %s26 = sphi 0, %s25
      %s40 = sphi 0, %s26
      %s46 = sphi 0, %s48
      %s49 = sphi 0, %s46
      %s50 = sphi 0, %s49
      %s66 = sphi 0, %s50
      %s72 = sphi 0, %s74
      %s75 = sphi 0, %s72
      %s76 = sphi 0, %s75
      %s92 = sphi 0, %s76
    $region4: #{tpu_custom_call.1} parent=1 // loop_header_branch
      %18 = sbr.rel (%p16) target = $region8
    $region5: #{tpu_custom_call.1} parent=1 // loop_body
      %s20 = ssub.s32 %s15, 1
      %s21 = ssub.s32 %s15, 2
      %s22 = sadd.s32 %s15, 1
      %s24 = sadd.s32 %s23, 1
      %p27 = scmp.eq.s32.totalorder %s15, 1
      %p28 = scmp.ne.s32.totalorder %s23, %s25
      %p29 = scmp.eq.s32.totalorder %s15, 0
      %p30 = por %p28, %p29
      %p31 = scmp.ne.s32.totalorder %s23, %s25
      %p32 = scmp.eq.s32.totalorder %s20, 1
      %p33 = por %p31, %p32
      %p34 = scmp.ne.s32.totalorder %s25, %s26
      %p35 = scmp.eq.s32.totalorder %s20, 0
      %p36 = por %p34, %p35
      %p37 = scmp.ne.s32.totalorder %s25, %s26
      %p38 = scmp.eq.s32.totalorder %s21, 1
      %p39 = por %p37, %p38
      %p41 = scmp.ne.s32.totalorder %s26, %s40
      %p42 = scmp.eq.s32.totalorder %s21, 0
      %p43 = por %p41, %p42
      %s44 = ssub.s32 %s15, %s22
      %p45 = scmp.eq.s32.totalorder %s44, 0
      %s47 = sadd.s32 %s46, 1
      %s48 = scalar_select %p45, %s46, %s47
      %p51 = pneg %p45
      %p52 = scmp.eq.s32.totalorder %s15, 1
      %p53 = por %p51, %p52
      %p54 = scmp.ne.s32.totalorder %s46, %s49
      %p55 = scmp.eq.s32.totalorder %s15, 0
      %p56 = por %p54, %p55
      %p57 = scmp.ne.s32.totalorder %s46, %s49
      %p58 = scmp.eq.s32.totalorder %s20, 1
      %p59 = por %p57, %p58
      %p60 = scmp.ne.s32.totalorder %s49, %s50
      %p61 = scmp.eq.s32.totalorder %s20, 0
      %p62 = por %p60, %p61
      %p63 = scmp.ne.s32.totalorder %s49, %s50
      %p64 = scmp.eq.s32.totalorder %s21, 1
      %p65 = por %p63, %p64
      %p67 = scmp.ne.s32.totalorder %s50, %s66
      %p68 = scmp.eq.s32.totalorder %s21, 0
      %p69 = por %p67, %p68
      %s70 = ssub.s32 %s15, %s22
      %p71 = scmp.eq.s32.totalorder %s70, 0
      %s73 = sadd.s32 %s72, 1
      %s74 = scalar_select %p71, %s72, %s73
      %p77 = pneg %p71
      %p78 = scmp.eq.s32.totalorder %s15, 1
      %p79 = por %p77, %p78
      %p80 = scmp.ne.s32.totalorder %s72, %s75
      %p81 = scmp.eq.s32.totalorder %s15, 0
      %p82 = por %p80, %p81
      %p83 = scmp.ne.s32.totalorder %s72, %s75
      %p84 = scmp.eq.s32.totalorder %s20, 1
      %p85 = por %p83, %p84
      %p86 = scmp.ne.s32.totalorder %s75, %s76
      %p87 = scmp.eq.s32.totalorder %s20, 0
      %p88 = por %p86, %p87
      %p89 = scmp.ne.s32.totalorder %s75, %s76
      %p90 = scmp.eq.s32.totalorder %s21, 1
      %p91 = por %p89, %p90
      %p93 = scmp.ne.s32.totalorder %s76, %s92
      %p94 = scmp.eq.s32.totalorder %s21, 0
      %p95 = por %p93, %p94
      %p96 = scmp.le.s32.totalorder 1, %s15
      %p97 = scmp.lt.s32.totalorder %s15, 3
      %p98 = pnand %p96, %p97
      %p99 = pneg %p98
      // Predicated region
      $region9: #{tpu_custom_call.1} parent=5 // pred_check
        _
      $region10: #{tpu_custom_call.1} parent=5 // pred_check_branch
        %101 = sbr.rel (%p98) target = $region12
      $region11: #{tpu_custom_call.1} parent=5 // pred_region
        %s102 = ssub.s32 %s15, 1
        // Predicated region
        $region13: #{tpu_custom_call.1} parent=11 // pred_check
          %p103 = pneg %p36
        $region14: #{tpu_custom_call.1} parent=11 // pred_check_branch
          %105 = sbr.rel (%p103) target = $region16
        $region15: #{tpu_custom_call.1} parent=11 // pred_region
          %s107 = ssub.s32 128, 128
          %108 = vsyncadd [#allocation3], %s107
          %s110 = sshll.u32 [#allocation2], 4
          %s111 = int_to_ptr.vmem [resolvable:$true] %s110
          %113 = dma.hbm_to_vmem [thread:$0]  %s0, 128, %s111, [#allocation3]
        $region16: #{tpu_custom_call.1} parent=11 // pred_fallthru
          _
      $region12: #{tpu_custom_call.1} parent=5 // pred_fallthru
        _
      %p114 = scmp.lt.s32.totalorder %s15, 2
      // Predicated region
      $region17: #{tpu_custom_call.1} parent=5 // pred_check
        %p115 = pneg %p114
      $region18: #{tpu_custom_call.1} parent=5 // pred_check_branch
        %117 = sbr.rel (%p115) target = $region20
      $region19: #{tpu_custom_call.1} parent=5 // pred_region
        // Predicated region
        $region21: #{tpu_custom_call.1} parent=19 // pred_check
          %p118 = pneg %p56
        $region22: #{tpu_custom_call.1} parent=19 // pred_check_branch
          %120 = sbr.rel (%p118) target = $region24
        $region23: #{tpu_custom_call.1} parent=19 // pred_region
          %s121 = sand.u32 %s46, 1
          %s122 = scalar_lea.sflag [#allocation6], %s121
          %s123 = sand.u32 %s46, 1
          %s124 = smul.addr %s123, 8
          %s125 = scalar_lea.vmem [#allocation5], %s124
          %s127 = ssub.s32 128, 128
          %128 = vsyncadd %s122, %s127
          %s129 = smul.addr %s15, 128
          %s130 = scalar_lea.hbm %s1, %s129
          %s132 = sshll.u32 %s125, 4
          %s133 = int_to_ptr.vmem [resolvable:$true] %s132
          %135 = dma.hbm_to_vmem [thread:$0]  %s130, 128, %s133, %s122
        $region24: #{tpu_custom_call.1} parent=19 // pred_fallthru
          _
      $region20: #{tpu_custom_call.1} parent=5 // pred_fallthru
        _
      %p136 = scmp.le.s32.totalorder 1, %s15
      %p137 = scmp.lt.s32.totalorder %s15, 3
      %p138 = pnand %p136, %p137
      %p139 = pneg %p138
      // Predicated region
      $region25: #{tpu_custom_call.1} parent=5 // pred_check
        _
      $region26: #{tpu_custom_call.1} parent=5 // pred_check_branch
        %141 = sbr.rel (%p138) target = $region28
      $region27: #{tpu_custom_call.1} parent=5 // pred_region
        %s142 = ssub.s32 %s15, 1
        // Predicated region
        $region29: #{tpu_custom_call.1} parent=27 // pred_check
          %p143 = pneg %p36
        $region30: #{tpu_custom_call.1} parent=27 // pred_check_branch
          %145 = sbr.rel (%p143) target = $region32
        $region31: #{tpu_custom_call.1} parent=27 // pred_region
          %146 = dma.done [#allocation3], 128
        $region32: #{tpu_custom_call.1} parent=27 // pred_fallthru
          _
        %s147 = sand.u32 %s49, 1
        %s148 = scalar_lea.sflag [#allocation6], %s147
        %s149 = sand.u32 %s49, 1
        %s150 = smul.addr %s149, 8
        %s151 = scalar_lea.vmem [#allocation5], %s150
        // Predicated region
        $region33: #{tpu_custom_call.1} parent=27 // pred_check
          %p152 = pneg %p62
        $region34: #{tpu_custom_call.1} parent=27 // pred_check_branch
          %154 = sbr.rel (%p152) target = $region36
        $region35: #{tpu_custom_call.1} parent=27 // pred_region
          %155 = dma.done %s148, 128
        $region36: #{tpu_custom_call.1} parent=27 // pred_fallthru
          _
        %p156 = pneg %p36
        %p157 = pneg %p33
        %s158 = sand.u32 %s49, 1
        %s159 = scalar_lea.sflag [#allocation6], %s158
        %s160 = sand.u32 %s49, 1
        %s161 = smul.addr %s160, 8
        %s162 = scalar_lea.vmem [#allocation5], %s161
        %p163 = pneg %p62
        %p164 = pneg %p59
        %p165 = pneg %p88
        %p166 = pneg %p85
        %s167 = sand.u32 %s75, 1
        %s168 = scalar_lea.sflag [#allocation4], %s167
        %s169 = sand.u32 %s75, 1
        %s170 = smul.addr %s169, 8
        %s171 = scalar_lea.vmem [#allocation7], %s170
        %v172 = vld [vmem:[%s151] sm:$0xff]
        %v173 = vld [vmem:[#allocation2] sm:$0xff]
        %v174 = vadd.f32 %v172, %v173
        %175 = vst [vmem:[%s171] sm:$0xff] %v174
        %s176 = sand.u32 %s75, 1
        %s177 = scalar_lea.sflag [#allocation4], %s176
        %s178 = sand.u32 %s75, 1
        %s179 = smul.addr %s178, 8
        %s180 = scalar_lea.vmem [#allocation7], %s179
        // Predicated region
        $region37: #{tpu_custom_call.1} parent=27 // pred_check
          %p181 = pneg %p85
        $region38: #{tpu_custom_call.1} parent=27 // pred_check_branch
          %183 = sbr.rel (%p181) target = $region40
        $region39: #{tpu_custom_call.1} parent=27 // pred_region
          %s185 = ssub.s32 128, 128
          %186 = vsyncadd %s177, %s185
          %s187 = smul.addr %s20, 128
          %s188 = scalar_lea.hbm %s2, %s187
          %s190 = sshll.u32 %s180, 4
          %s191 = int_to_ptr.vmem [resolvable:$true] %s190
          %193 = dma.vmem_to_hbm [thread:$0]  %s191, 128, %s188, %s177
        $region40: #{tpu_custom_call.1} parent=27 // pred_fallthru
          _
      $region28: #{tpu_custom_call.1} parent=5 // pred_fallthru
        _
      %p194 = scmp.le.s32.totalorder 2, %s15
      // Predicated region
      $region41: #{tpu_custom_call.1} parent=5 // pred_check
        %p195 = pneg %p194
      $region42: #{tpu_custom_call.1} parent=5 // pred_check_branch
        %197 = sbr.rel (%p195) target = $region44
      $region43: #{tpu_custom_call.1} parent=5 // pred_region
        %s198 = ssub.s32 %s15, 2
        // Predicated region
        $region45: #{tpu_custom_call.1} parent=43 // pred_check
          %p199 = pneg %p91
        $region46: #{tpu_custom_call.1} parent=43 // pred_check_branch
          %201 = sbr.rel (%p199) target = $region48
        $region47: #{tpu_custom_call.1} parent=43 // pred_region
          %s202 = sand.u32 %s76, 1
          %s203 = scalar_lea.sflag [#allocation4], %s202
          %s204 = sand.u32 %s76, 1
          %s205 = smul.addr %s204, 8
          %s206 = scalar_lea.vmem [#allocation7], %s205
          %207 = dma.done %s203, 128
        $region48: #{tpu_custom_call.1} parent=43 // pred_fallthru
          _
      $region44: #{tpu_custom_call.1} parent=5 // pred_fallthru
        _
    $region6: #{tpu_custom_call.1} parent=1 // loop_footer
      %s19 = sadd.s32 1, %s15
    $region7: #{tpu_custom_call.1} parent=1 // loop_footer_branch
      %14 = sbr.rel target = $region3
    $region8: #{tpu_custom_call.1} parent=1 // loop_exit
      _
    %208 = vsyncpa [#allocation3], 1
    %s209 = scalar_lea.sflag [#allocation3], 1
    %210 = vsyncpa %s209, 1
    %211 = vsyncpa [#allocation6], 1
    %s212 = scalar_lea.sflag [#allocation6], 1
    %213 = vsyncpa %s212, 1
    %214 = vsyncpa [#allocation4], 1
    %s215 = scalar_lea.sflag [#allocation4], 1
    %216 = vsyncpa %s215, 1

// kernel: tpu_custom_call.1
$region0: #{tpu_custom_call.1}
  #allocation0 [shape = 'u32[]', space=smem, size = 0x4, offset = 0x4, fixed_abs, tag = 'smem constant byte address 0x4 - core index']
  #allocation1 [shape = 'u32[144,128]{1,0:T(1,128)}', space=vmem, size = 0x12000, scoped, tag = 'internal scratch']
  %s0 = inlined_call_operand.hbm [shape: f32[2,8,32], index: 0, kind: input, shape index: {}]
  %s1 = inlined_call_operand.hbm [shape: bf16[4,32,8], index: 1, kind: input, shape index: {}]
  %s2 = inlined_call_operand.hbm [shape: bf16[4,32,8], index: 2, kind: input, shape index: {}]
  %s3 = inlined_call_operand.hbm [shape: bf16[4,32,8], index: 3, kind: input, shape index: {}]
  %s4 = inlined_call_operand.hbm [shape: f32[4,1,8], index: 4, kind: input, shape index: {}]
  %s5 = inlined_call_operand.hbm [shape: f32[4,1,8], index: 5, kind: input, shape index: {}]
  %s6 = inlined_call_operand.hbm [shape: f32[4,1,8], index: 6, kind: input, shape index: {}]
  %s7 = inlined_call_operand.hbm [shape: bf16[4,8,32], index: 7, kind: input, shape index: {}]
  %s8 = inlined_call_operand.hbm [shape: f32[1,32], index: 8, kind: input, shape index: {}]
  %s9 = inlined_call_operand.hbm [shape: f32[8,8], index: 9, kind: input, shape index: {}]
  %s10 = inlined_call_operand.hbm [shape: f32[2,1,8], index: 10, kind: input, shape index: {}]
  %s11 = inlined_call_operand.hbm [shape: f32[1,32], index: 11, kind: input, shape index: {}]
  %s12 = inlined_call_operand.hbm [shape: f32[1,32], index: 12, kind: input, shape index: {}]
  %s13 = inlined_call_operand.hbm [shape: f32[2,8,32], index: 13, kind: output, shape index: {}]
  %s14 = sld [smem:[#allocation0]]
  $region137: #{tpu_custom_call.1} parent=0
    _
  %s16 = ssub.s32 1, %s14
  %s17 = scalar_select 0, %s16, %s14
  $region1: #{tpu_custom_call.1} parent=0
    #allocation2 [shape = 'u8[8192]{0}', space=vmem, size = 0x2000, scoped, tag = 'input window, operand 0']
    #allocation3 [shape = 's32[2]{0}', space=sflag, size = 0x8, scoped, tag = 'scoped memory for tpu_custom_call.1']
    #allocation4 [shape = 's32[2]{0}', space=sflag, size = 0x8, scoped, tag = 'scoped memory for tpu_custom_call.1']
    #allocation5 [shape = 'u8[32768]{0}', space=vmem, size = 0x8000, scoped, tag = 'input window, operand 1, single buffered']
    #allocation6 [shape = 's32[1]{0}', space=sflag, size = 0x4, scoped, tag = 'scoped memory for tpu_custom_call.1']
    #allocation7 [shape = 'u8[32768]{0}', space=vmem, size = 0x8000, scoped, tag = 'input window, operand 2, single buffered']
    #allocation8 [shape = 'u8[32768]{0}', space=vmem, size = 0x8000, scoped, tag = 'input window, operand 3, single buffered']
    #allocation9 [shape = 's32[1]{0}', space=sflag, size = 0x4, scoped, tag = 'scoped memory for tpu_custom_call.1']
    #allocation10 [shape = 'u8[2048]{0}', space=vmem, size = 0x800, scoped, tag = 'input window, operand 4, single buffered']
    #allocation11 [shape = 'u8[2048]{0}', space=vmem, size = 0x800, scoped, tag = 'input window, operand 5, single buffered']
    #allocation12 [shape = 's32[1]{0}', space=sflag, size = 0x4, scoped, tag = 'scoped memory for tpu_custom_call.1']
    #allocation13 [shape = 'u8[2048]{0}', space=vmem, size = 0x800, scoped, tag = 'input window, operand 6, single buffered']
    #allocation14 [shape = 'u8[8192]{0}', space=vmem, size = 0x2000, scoped, tag = 'input window, operand 7, single buffered']
    #allocation15 [shape = 's32[1]{0}', space=sflag, size = 0x4, scoped, tag = 'scoped memory for tpu_custom_call.1']
    #allocation16 [shape = 'u8[512]{0}', space=vmem, size = 0x400, scoped, tag = 'input window, operand 8, single buffered']
    #allocation17 [shape = 'u8[4096]{0}', space=vmem, size = 0x1000, scoped, tag = 'input window, operand 9, single buffered']
    #allocation18 [shape = 's32[1]{0}', space=sflag, size = 0x4, scoped, tag = 'scoped memory for tpu_custom_call.1']
    #allocation19 [shape = 'u8[1024]{0}', space=vmem, size = 0x400, scoped, tag = 'input window, operand 10']
    #allocation20 [shape = 'u8[512]{0}', space=vmem, size = 0x400, scoped, tag = 'input window, operand 11, single buffered']
    #allocation21 [shape = 'u8[512]{0}', space=vmem, size = 0x400, scoped, tag = 'input window, operand 12, single buffered']
    #allocation22 [shape = 'u8[8192]{0}', space=vmem, size = 0x2000, scoped, tag = 'output window, operand 0']
    %18 = vsyncpa [#allocation3], 0
    %s19 = scalar_lea.sflag [#allocation3], 1
    %20 = vsyncpa %s19, 0
    %21 = vsyncpa [#allocation6], 0
    %22 = vsyncpa [#allocation9], 0
    %23 = vsyncpa [#allocation12], 0
    %24 = vsyncpa [#allocation15], 0
    %25 = vsyncpa [#allocation18], 0
    %26 = vsyncpa [#allocation4], 0
    %s27 = scalar_lea.sflag [#allocation4], 1
    %28 = vsyncpa %s27, 0
    loop: start=0, step=1, limit=4
    $region2: #{tpu_custom_call.1} parent=1 // loop_pre_header
      _
    $region3: #{tpu_custom_call.1} parent=1 // loop_header
      %s30 = sphi 0, %s34
      %p31 = scmp.ge.s32.totalorder %s30, 4
      %s40 = sphi 0, %s42
      %s43 = sphi 0, %s40
      %s44 = sphi 0, %s43
      %s60 = sphi 0, %s44
      %s64 = sphi 0, %s64
      %s66 = sphi 0, %s64
      %s67 = sphi 0, %s66
      %s81 = sphi 0, %s67
      %s85 = sphi 0, %s85
      %s87 = sphi 0, %s85
      %s88 = sphi 0, %s87
      %s102 = sphi 0, %s88
      %s106 = sphi 0, %s106
      %s108 = sphi 0, %s106
      %s109 = sphi 0, %s108
      %s123 = sphi 0, %s109
      %s127 = sphi 0, %s127
      %s129 = sphi 0, %s127
      %s130 = sphi 0, %s129
      %s144 = sphi 0, %s130
      %s148 = sphi 0, %s148
      %s150 = sphi 0, %s148
      %s151 = sphi 0, %s150
      %s165 = sphi 0, %s151
      %s169 = sphi 0, %s169
      %s171 = sphi 0, %s169
      %s172 = sphi 0, %s171
      %s186 = sphi 0, %s172
      %s190 = sphi 0, %s190
      %s192 = sphi 0, %s190
      %s193 = sphi 0, %s192
      %s207 = sphi 0, %s193
      %s211 = sphi 0, %s211
      %s213 = sphi 0, %s211
      %s214 = sphi 0, %s213
      %s228 = sphi 0, %s214
      %s232 = sphi 0, %s232
      %s234 = sphi 0, %s232
      %s235 = sphi 0, %s234
      %s249 = sphi 0, %s235
      %s255 = sphi 0, %s257
      %s258 = sphi 0, %s255
      %s259 = sphi 0, %s258
      %s275 = sphi 0, %s259
      %s279 = sphi 0, %s279
      %s281 = sphi 0, %s279
      %s282 = sphi 0, %s281
      %s296 = sphi 0, %s282
      %s300 = sphi 0, %s300
      %s302 = sphi 0, %s300
      %s303 = sphi 0, %s302
      %s317 = sphi 0, %s303
      %s323 = sphi 0, %s325
      %s326 = sphi 0, %s323
      %s327 = sphi 0, %s326
      %s343 = sphi 0, %s327
    $region4: #{tpu_custom_call.1} parent=1 // loop_header_branch
      %33 = sbr.rel (%p31) target = $region8
    $region5: #{tpu_custom_call.1} parent=1 // loop_body
      %s35 = ssub.s32 %s30, 1
      %s36 = ssub.s32 %s30, 2
      %s37 = sadd.s32 %s30, 1
      %s38 = ssub.s32 %s30, %s37
      %p39 = scmp.eq.s32.totalorder %s38, 0
      %s41 = sadd.s32 %s40, 1
      %s42 = scalar_select %p39, %s40, %s41
      %p45 = pneg %p39
      %p46 = scmp.eq.s32.totalorder %s30, 1
      %p47 = por %p45, %p46
      %p48 = scmp.ne.s32.totalorder %s40, %s43
      %p49 = scmp.eq.s32.totalorder %s30, 0
      %p50 = por %p48, %p49
      %p51 = scmp.ne.s32.totalorder %s40, %s43
      %p52 = scmp.eq.s32.totalorder %s35, 1
      %p53 = por %p51, %p52
      %p54 = scmp.ne.s32.totalorder %s43, %s44
      %p55 = scmp.eq.s32.totalorder %s35, 0
      %p56 = por %p54, %p55
      %p57 = scmp.ne.s32.totalorder %s43, %s44
      %p58 = scmp.eq.s32.totalorder %s36, 1
      %p59 = por %p57, %p58
      %p61 = scmp.ne.s32.totalorder %s44, %s60
      %p62 = scmp.eq.s32.totalorder %s36, 0
      %p63 = por %p61, %p62
      %s65 = sadd.s32 %s64, 1
      %p68 = scmp.eq.s32.totalorder %s30, 1
      %p69 = scmp.ne.s32.totalorder %s64, %s66
      %p70 = scmp.eq.s32.totalorder %s30, 0
      %p71 = por %p69, %p70
      %p72 = scmp.ne.s32.totalorder %s64, %s66
      %p73 = scmp.eq.s32.totalorder %s35, 1
      %p74 = por %p72, %p73
      %p75 = scmp.ne.s32.totalorder %s66, %s67
      %p76 = scmp.eq.s32.totalorder %s35, 0
      %p77 = por %p75, %p76
      %p78 = scmp.ne.s32.totalorder %s66, %s67
      %p79 = scmp.eq.s32.totalorder %s36, 1
      %p80 = por %p78, %p79
      %p82 = scmp.ne.s32.totalorder %s67, %s81
      %p83 = scmp.eq.s32.totalorder %s36, 0
      %p84 = por %p82, %p83
      %s86 = sadd.s32 %s85, 1
      %p89 = scmp.eq.s32.totalorder %s30, 1
      %p90 = scmp.ne.s32.totalorder %s85, %s87
      %p91 = scmp.eq.s32.totalorder %s30, 0
      %p92 = por %p90, %p91
      %p93 = scmp.ne.s32.totalorder %s85, %s87
      %p94 = scmp.eq.s32.totalorder %s35, 1
      %p95 = por %p93, %p94
      %p96 = scmp.ne.s32.totalorder %s87, %s88
      %p97 = scmp.eq.s32.totalorder %s35, 0
      %p98 = por %p96, %p97
      %p99 = scmp.ne.s32.totalorder %s87, %s88
      %p100 = scmp.eq.s32.totalorder %s36, 1
      %p101 = por %p99, %p100
      %p103 = scmp.ne.s32.totalorder %s88, %s102
      %p104 = scmp.eq.s32.totalorder %s36, 0
      %p105 = por %p103, %p104
      %s107 = sadd.s32 %s106, 1
      %p110 = scmp.eq.s32.totalorder %s30, 1
      %p111 = scmp.ne.s32.totalorder %s106, %s108
      %p112 = scmp.eq.s32.totalorder %s30, 0
      %p113 = por %p111, %p112
      %p114 = scmp.ne.s32.totalorder %s106, %s108
      %p115 = scmp.eq.s32.totalorder %s35, 1
      %p116 = por %p114, %p115
      %p117 = scmp.ne.s32.totalorder %s108, %s109
      %p118 = scmp.eq.s32.totalorder %s35, 0
      %p119 = por %p117, %p118
      %p120 = scmp.ne.s32.totalorder %s108, %s109
      %p121 = scmp.eq.s32.totalorder %s36, 1
      %p122 = por %p120, %p121
      %p124 = scmp.ne.s32.totalorder %s109, %s123
      %p125 = scmp.eq.s32.totalorder %s36, 0
      %p126 = por %p124, %p125
      %s128 = sadd.s32 %s127, 1
      %p131 = scmp.eq.s32.totalorder %s30, 1
      %p132 = scmp.ne.s32.totalorder %s127, %s129
      %p133 = scmp.eq.s32.totalorder %s30, 0
      %p134 = por %p132, %p133
      %p135 = scmp.ne.s32.totalorder %s127, %s129
      %p136 = scmp.eq.s32.totalorder %s35, 1
      %p137 = por %p135, %p136
      %p138 = scmp.ne.s32.totalorder %s129, %s130
      %p139 = scmp.eq.s32.totalorder %s35, 0
      %p140 = por %p138, %p139
      %p141 = scmp.ne.s32.totalorder %s129, %s130
      %p142 = scmp.eq.s32.totalorder %s36, 1
      %p143 = por %p141, %p142
      %p145 = scmp.ne.s32.totalorder %s130, %s144
      %p146 = scmp.eq.s32.totalorder %s36, 0
      %p147 = por %p145, %p146
      %s149 = sadd.s32 %s148, 1
      %p152 = scmp.eq.s32.totalorder %s30, 1
      %p153 = scmp.ne.s32.totalorder %s148, %s150
      %p154 = scmp.eq.s32.totalorder %s30, 0
      %p155 = por %p153, %p154
      %p156 = scmp.ne.s32.totalorder %s148, %s150
      %p157 = scmp.eq.s32.totalorder %s35, 1
      %p158 = por %p156, %p157
      %p159 = scmp.ne.s32.totalorder %s150, %s151
      %p160 = scmp.eq.s32.totalorder %s35, 0
      %p161 = por %p159, %p160
      %p162 = scmp.ne.s32.totalorder %s150, %s151
      %p163 = scmp.eq.s32.totalorder %s36, 1
      %p164 = por %p162, %p163
      %p166 = scmp.ne.s32.totalorder %s151, %s165
      %p167 = scmp.eq.s32.totalorder %s36, 0
      %p168 = por %p166, %p167
      %s170 = sadd.s32 %s169, 1
      %p173 = scmp.eq.s32.totalorder %s30, 1
      %p174 = scmp.ne.s32.totalorder %s169, %s171
      %p175 = scmp.eq.s32.totalorder %s30, 0
      %p176 = por %p174, %p175
      %p177 = scmp.ne.s32.totalorder %s169, %s171
      %p178 = scmp.eq.s32.totalorder %s35, 1
      %p179 = por %p177, %p178
      %p180 = scmp.ne.s32.totalorder %s171, %s172
      %p181 = scmp.eq.s32.totalorder %s35, 0
      %p182 = por %p180, %p181
      %p183 = scmp.ne.s32.totalorder %s171, %s172
      %p184 = scmp.eq.s32.totalorder %s36, 1
      %p185 = por %p183, %p184
      %p187 = scmp.ne.s32.totalorder %s172, %s186
      %p188 = scmp.eq.s32.totalorder %s36, 0
      %p189 = por %p187, %p188
      %s191 = sadd.s32 %s190, 1
      %p194 = scmp.eq.s32.totalorder %s30, 1
      %p195 = scmp.ne.s32.totalorder %s190, %s192
      %p196 = scmp.eq.s32.totalorder %s30, 0
      %p197 = por %p195, %p196
      %p198 = scmp.ne.s32.totalorder %s190, %s192
      %p199 = scmp.eq.s32.totalorder %s35, 1
      %p200 = por %p198, %p199
      %p201 = scmp.ne.s32.totalorder %s192, %s193
      %p202 = scmp.eq.s32.totalorder %s35, 0
      %p203 = por %p201, %p202
      %p204 = scmp.ne.s32.totalorder %s192, %s193
      %p205 = scmp.eq.s32.totalorder %s36, 1
      %p206 = por %p204, %p205
      %p208 = scmp.ne.s32.totalorder %s193, %s207
      %p209 = scmp.eq.s32.totalorder %s36, 0
      %p210 = por %p208, %p209
      %s212 = sadd.s32 %s211, 1
      %p215 = scmp.eq.s32.totalorder %s30, 1
      %p216 = scmp.ne.s32.totalorder %s211, %s213
      %p217 = scmp.eq.s32.totalorder %s30, 0
      %p218 = por %p216, %p217
      %p219 = scmp.ne.s32.totalorder %s211, %s213
      %p220 = scmp.eq.s32.totalorder %s35, 1
      %p221 = por %p219, %p220
      %p222 = scmp.ne.s32.totalorder %s213, %s214
      %p223 = scmp.eq.s32.totalorder %s35, 0
      %p224 = por %p222, %p223
      %p225 = scmp.ne.s32.totalorder %s213, %s214
      %p226 = scmp.eq.s32.totalorder %s36, 1
      %p227 = por %p225, %p226
      %p229 = scmp.ne.s32.totalorder %s214, %s228
      %p230 = scmp.eq.s32.totalorder %s36, 0
      %p231 = por %p229, %p230
      %s233 = sadd.s32 %s232, 1
      %p236 = scmp.eq.s32.totalorder %s30, 1
      %p237 = scmp.ne.s32.totalorder %s232, %s234
      %p238 = scmp.eq.s32.totalorder %s30, 0
      %p239 = por %p237, %p238
      %p240 = scmp.ne.s32.totalorder %s232, %s234
      %p241 = scmp.eq.s32.totalorder %s35, 1
      %p242 = por %p240, %p241
      %p243 = scmp.ne.s32.totalorder %s234, %s235
      %p244 = scmp.eq.s32.totalorder %s35, 0
      %p245 = por %p243, %p244
      %p246 = scmp.ne.s32.totalorder %s234, %s235
      %p247 = scmp.eq.s32.totalorder %s36, 1
      %p248 = por %p246, %p247
      %p250 = scmp.ne.s32.totalorder %s235, %s249
      %p251 = scmp.eq.s32.totalorder %s36, 0
      %p252 = por %p250, %p251
      %s253 = ssub.s32 %s30, %s37
      %p254 = scmp.eq.s32.totalorder %s253, 0
      %s256 = sadd.s32 %s255, 1
      %s257 = scalar_select %p254, %s255, %s256
      %p260 = pneg %p254
      %p261 = scmp.eq.s32.totalorder %s30, 1
      %p262 = por %p260, %p261
      %p263 = scmp.ne.s32.totalorder %s255, %s258
      %p264 = scmp.eq.s32.totalorder %s30, 0
      %p265 = por %p263, %p264
      %p266 = scmp.ne.s32.totalorder %s255, %s258
      %p267 = scmp.eq.s32.totalorder %s35, 1
      %p268 = por %p266, %p267
      %p269 = scmp.ne.s32.totalorder %s258, %s259
      %p270 = scmp.eq.s32.totalorder %s35, 0
      %p271 = por %p269, %p270
      %p272 = scmp.ne.s32.totalorder %s258, %s259
      %p273 = scmp.eq.s32.totalorder %s36, 1
      %p274 = por %p272, %p273
      %p276 = scmp.ne.s32.totalorder %s259, %s275
      %p277 = scmp.eq.s32.totalorder %s36, 0
      %p278 = por %p276, %p277
      %s280 = sadd.s32 %s279, 1
      %p283 = scmp.eq.s32.totalorder %s30, 1
      %p284 = scmp.ne.s32.totalorder %s279, %s281
      %p285 = scmp.eq.s32.totalorder %s30, 0
      %p286 = por %p284, %p285
      %p287 = scmp.ne.s32.totalorder %s279, %s281
      %p288 = scmp.eq.s32.totalorder %s35, 1
      %p289 = por %p287, %p288
      %p290 = scmp.ne.s32.totalorder %s281, %s282
      %p291 = scmp.eq.s32.totalorder %s35, 0
      %p292 = por %p290, %p291
      %p293 = scmp.ne.s32.totalorder %s281, %s282
      %p294 = scmp.eq.s32.totalorder %s36, 1
      %p295 = por %p293, %p294
      %p297 = scmp.ne.s32.totalorder %s282, %s296
      %p298 = scmp.eq.s32.totalorder %s36, 0
      %p299 = por %p297, %p298
      %s301 = sadd.s32 %s300, 1
      %p304 = scmp.eq.s32.totalorder %s30, 1
      %p305 = scmp.ne.s32.totalorder %s300, %s302
      %p306 = scmp.eq.s32.totalorder %s30, 0
      %p307 = por %p305, %p306
      %p308 = scmp.ne.s32.totalorder %s300, %s302
      %p309 = scmp.eq.s32.totalorder %s35, 1
      %p310 = por %p308, %p309
      %p311 = scmp.ne.s32.totalorder %s302, %s303
      %p312 = scmp.eq.s32.totalorder %s35, 0
      %p313 = por %p311, %p312
      %p314 = scmp.ne.s32.totalorder %s302, %s303
      %p315 = scmp.eq.s32.totalorder %s36, 1
      %p316 = por %p314, %p315
      %p318 = scmp.ne.s32.totalorder %s303, %s317
      %p319 = scmp.eq.s32.totalorder %s36, 0
      %p320 = por %p318, %p319
      %s321 = ssub.s32 %s30, %s37
      %p322 = scmp.eq.s32.totalorder %s321, 0
      %s324 = sadd.s32 %s323, 1
      %s325 = scalar_select %p322, %s323, %s324
      %p328 = pneg %p322
      %p329 = scmp.eq.s32.totalorder %s30, 1
      %p330 = por %p328, %p329
      %p331 = scmp.ne.s32.totalorder %s323, %s326
      %p332 = scmp.eq.s32.totalorder %s30, 0
      %p333 = por %p331, %p332
      %p334 = scmp.ne.s32.totalorder %s323, %s326
      %p335 = scmp.eq.s32.totalorder %s35, 1
      %p336 = por %p334, %p335
      %p337 = scmp.ne.s32.totalorder %s326, %s327
      %p338 = scmp.eq.s32.totalorder %s35, 0
      %p339 = por %p337, %p338
      %p340 = scmp.ne.s32.totalorder %s326, %s327
      %p341 = scmp.eq.s32.totalorder %s36, 1
      %p342 = por %p340, %p341
      %p344 = scmp.ne.s32.totalorder %s327, %s343
      %p345 = scmp.eq.s32.totalorder %s36, 0
      %p346 = por %p344, %p345
      %p347 = scmp.le.s32.totalorder 1, %s30
      %p348 = scmp.lt.s32.totalorder %s30, 3
      %p349 = pnand %p347, %p348
      %p350 = pneg %p349
      // Predicated region
      $region9: #{tpu_custom_call.1} parent=5 // pred_check
        _
      $region10: #{tpu_custom_call.1} parent=5 // pred_check_branch
        %352 = sbr.rel (%p349) target = $region12
      $region11: #{tpu_custom_call.1} parent=5 // pred_region
        %s353 = ssub.s32 %s30, 1
        // Predicated region
        $region13: #{tpu_custom_call.1} parent=11 // pred_check
          %p354 = pneg %p77
        $region14: #{tpu_custom_call.1} parent=11 // pred_check_branch
          %356 = sbr.rel (%p354) target = $region16
        $region15: #{tpu_custom_call.1} parent=11 // pred_region
          %s358 = ssub.s32 1024, 1024
          %359 = vsyncadd [#allocation6], %s358
          %s360 = sshll.u32 [#allocation5], 4
          %s361 = int_to_ptr.vmem [resolvable:$true] %s360
          %366 = dma.hbm_to_vmem [thread:$0]  %s1, 1024, %s361, [#allocation6], 64, 64, 4
        $region16: #{tpu_custom_call.1} parent=11 // pred_fallthru
          _
        // Predicated region
        $region17: #{tpu_custom_call.1} parent=11 // pred_check
          %p367 = pneg %p98
        $region18: #{tpu_custom_call.1} parent=11 // pred_check_branch
          %369 = sbr.rel (%p367) target = $region20
        $region19: #{tpu_custom_call.1} parent=11 // pred_region
          %s371 = ssub.s32 1024, 1024
          %372 = vsyncadd [#allocation6], %s371
          %s373 = sshll.u32 [#allocation7], 4
          %s374 = int_to_ptr.vmem [resolvable:$true] %s373
          %379 = dma.hbm_to_vmem [thread:$0]  %s2, 1024, %s374, [#allocation6], 64, 64, 4
        $region20: #{tpu_custom_call.1} parent=11 // pred_fallthru
          _
        // Predicated region
        $region21: #{tpu_custom_call.1} parent=11 // pred_check
          %p380 = pneg %p119
        $region22: #{tpu_custom_call.1} parent=11 // pred_check_branch
          %382 = sbr.rel (%p380) target = $region24
        $region23: #{tpu_custom_call.1} parent=11 // pred_region
          %s384 = ssub.s32 1024, 1024
          %385 = vsyncadd [#allocation9], %s384
          %s386 = sshll.u32 [#allocation8], 4
          %s387 = int_to_ptr.vmem [resolvable:$true] %s386
          %392 = dma.hbm_to_vmem [thread:$0]  %s3, 1024, %s387, [#allocation9], 64, 64, 4
        $region24: #{tpu_custom_call.1} parent=11 // pred_fallthru
          _
        // Predicated region
        $region25: #{tpu_custom_call.1} parent=11 // pred_check
          %p393 = pneg %p140
        $region26: #{tpu_custom_call.1} parent=11 // pred_check_branch
          %395 = sbr.rel (%p393) target = $region28
        $region27: #{tpu_custom_call.1} parent=11 // pred_region
          %s397 = ssub.s32 64, 64
          %398 = vsyncadd [#allocation9], %s397
          %s399 = sshll.u32 [#allocation10], 4
          %s400 = int_to_ptr.vmem [resolvable:$true] %s399
          %405 = dma.hbm_to_vmem [thread:$0]  %s4, 64, %s400, [#allocation9], 16, 16, 1
        $region28: #{tpu_custom_call.1} parent=11 // pred_fallthru
          _
        // Predicated region
        $region29: #{tpu_custom_call.1} parent=11 // pred_check
          %p406 = pneg %p161
        $region30: #{tpu_custom_call.1} parent=11 // pred_check_branch
          %408 = sbr.rel (%p406) target = $region32
        $region31: #{tpu_custom_call.1} parent=11 // pred_region
          %s410 = ssub.s32 64, 64
          %411 = vsyncadd [#allocation12], %s410
          %s412 = sshll.u32 [#allocation11], 4
          %s413 = int_to_ptr.vmem [resolvable:$true] %s412
          %418 = dma.hbm_to_vmem [thread:$0]  %s5, 64, %s413, [#allocation12], 16, 16, 1
        $region32: #{tpu_custom_call.1} parent=11 // pred_fallthru
          _
        // Predicated region
        $region33: #{tpu_custom_call.1} parent=11 // pred_check
          %p419 = pneg %p182
        $region34: #{tpu_custom_call.1} parent=11 // pred_check_branch
          %421 = sbr.rel (%p419) target = $region36
        $region35: #{tpu_custom_call.1} parent=11 // pred_region
          %s423 = ssub.s32 64, 64
          %424 = vsyncadd [#allocation12], %s423
          %s425 = sshll.u32 [#allocation13], 4
          %s426 = int_to_ptr.vmem [resolvable:$true] %s425
          %431 = dma.hbm_to_vmem [thread:$0]  %s6, 64, %s426, [#allocation12], 16, 16, 1
        $region36: #{tpu_custom_call.1} parent=11 // pred_fallthru
          _
        // Predicated region
        $region37: #{tpu_custom_call.1} parent=11 // pred_check
          %p432 = pneg %p203
        $region38: #{tpu_custom_call.1} parent=11 // pred_check_branch
          %434 = sbr.rel (%p432) target = $region40
        $region39: #{tpu_custom_call.1} parent=11 // pred_region
          %s436 = ssub.s32 256, 256
          %437 = vsyncadd [#allocation15], %s436
          %s438 = sshll.u32 [#allocation14], 4
          %s439 = int_to_ptr.vmem [resolvable:$true] %s438
          %444 = dma.hbm_to_vmem [thread:$0]  %s7, 256, %s439, [#allocation15], 64, 64, 4
        $region40: #{tpu_custom_call.1} parent=11 // pred_fallthru
          _
        // Predicated region
        $region41: #{tpu_custom_call.1} parent=11 // pred_check
          %p445 = pneg %p224
        $region42: #{tpu_custom_call.1} parent=11 // pred_check_branch
          %447 = sbr.rel (%p445) target = $region44
        $region43: #{tpu_custom_call.1} parent=11 // pred_region
          %s449 = ssub.s32 16, 16
          %450 = vsyncadd [#allocation15], %s449
          %s452 = sshll.u32 [#allocation16], 4
          %s453 = int_to_ptr.vmem [resolvable:$true] %s452
          %455 = dma.hbm_to_vmem [thread:$0]  %s8, 16, %s453, [#allocation15]
        $region44: #{tpu_custom_call.1} parent=11 // pred_fallthru
          _
        // Predicated region
        $region45: #{tpu_custom_call.1} parent=11 // pred_check
          %p456 = pneg %p245
        $region46: #{tpu_custom_call.1} parent=11 // pred_check_branch
          %458 = sbr.rel (%p456) target = $region48
        $region47: #{tpu_custom_call.1} parent=11 // pred_region
          %s460 = ssub.s32 128, 128
          %461 = vsyncadd [#allocation18], %s460
          %s463 = sshll.u32 [#allocation17], 4
          %s464 = int_to_ptr.vmem [resolvable:$true] %s463
          %466 = dma.hbm_to_vmem [thread:$0]  %s9, 128, %s464, [#allocation18]
        $region48: #{tpu_custom_call.1} parent=11 // pred_fallthru
          _
        // Predicated region
        $region49: #{tpu_custom_call.1} parent=11 // pred_check
          %p467 = pneg %p292
        $region50: #{tpu_custom_call.1} parent=11 // pred_check_branch
          %469 = sbr.rel (%p467) target = $region52
        $region51: #{tpu_custom_call.1} parent=11 // pred_region
          %s471 = ssub.s32 16, 16
          %472 = vsyncadd [#allocation6], %s471
          %s474 = sshll.u32 [#allocation20], 4
          %s475 = int_to_ptr.vmem [resolvable:$true] %s474
          %477 = dma.hbm_to_vmem [thread:$0]  %s11, 16, %s475, [#allocation6]
        $region52: #{tpu_custom_call.1} parent=11 // pred_fallthru
          _
        // Predicated region
        $region53: #{tpu_custom_call.1} parent=11 // pred_check
          %p478 = pneg %p313
        $region54: #{tpu_custom_call.1} parent=11 // pred_check_branch
          %480 = sbr.rel (%p478) target = $region56
        $region55: #{tpu_custom_call.1} parent=11 // pred_region
          %s482 = ssub.s32 16, 16
          %483 = vsyncadd [#allocation9], %s482
          %s485 = sshll.u32 [#allocation21], 4
          %s486 = int_to_ptr.vmem [resolvable:$true] %s485
          %488 = dma.hbm_to_vmem [thread:$0]  %s12, 16, %s486, [#allocation9]
        $region56: #{tpu_custom_call.1} parent=11 // pred_fallthru
          _
      $region12: #{tpu_custom_call.1} parent=5 // pred_fallthru
        _
      %p489 = scmp.lt.s32.totalorder %s30, 2
      // Predicated region
      $region57: #{tpu_custom_call.1} parent=5 // pred_check
        %p490 = pneg %p489
      $region58: #{tpu_custom_call.1} parent=5 // pred_check_branch
        %492 = sbr.rel (%p490) target = $region60
      $region59: #{tpu_custom_call.1} parent=5 // pred_region
        // Predicated region
        $region61: #{tpu_custom_call.1} parent=59 // pred_check
          %p493 = pneg %p50
        $region62: #{tpu_custom_call.1} parent=59 // pred_check_branch
          %495 = sbr.rel (%p493) target = $region64
        $region63: #{tpu_custom_call.1} parent=59 // pred_region
          %s496 = sand.u32 %s30, 1
          %s497 = scalar_lea.sflag [#allocation3], %s496
          %s498 = sand.u32 %s40, 1
          %s499 = smul.addr %s498, 8
          %s500 = scalar_lea.vmem [#allocation2], %s499
          %s502 = ssub.s32 128, 128
          %503 = vsyncadd %s497, %s502
          %s504 = smul.addr %s30, 128
          %s505 = scalar_lea.hbm %s0, %s504
          %s507 = sshll.u32 %s500, 4
          %s508 = int_to_ptr.vmem [resolvable:$true] %s507
          %510 = dma.hbm_to_vmem [thread:$0]  %s505, 128, %s508, %s497
        $region64: #{tpu_custom_call.1} parent=59 // pred_fallthru
          _
        // Predicated region
        $region65: #{tpu_custom_call.1} parent=59 // pred_check
          %p511 = pneg %p265
        $region66: #{tpu_custom_call.1} parent=59 // pred_check_branch
          %513 = sbr.rel (%p511) target = $region68
        $region67: #{tpu_custom_call.1} parent=59 // pred_region
          %s514 = sand.u32 %s30, 1
          %s515 = scalar_lea.sflag [#allocation3], %s514
          %s516 = sand.u32 %s255, 1
          %s517 = scalar_lea.vmem [#allocation19], %s516
          %s519 = ssub.s32 16, 16
          %520 = vsyncadd %s515, %s519
          %s521 = smul.addr %s30, 16
          %s522 = scalar_lea.hbm %s10, %s521
          %s524 = sshll.u32 %s517, 4
          %s525 = int_to_ptr.vmem [resolvable:$true] %s524
          %527 = dma.hbm_to_vmem [thread:$0]  %s522, 16, %s525, %s515
        $region68: #{tpu_custom_call.1} parent=59 // pred_fallthru
          _
      $region60: #{tpu_custom_call.1} parent=5 // pred_fallthru
        _
      %p528 = scmp.le.s32.totalorder 1, %s30
      %p529 = scmp.lt.s32.totalorder %s30, 3
      %p530 = pnand %p528, %p529
      %p531 = pneg %p530
      // Predicated region
      $region69: #{tpu_custom_call.1} parent=5 // pred_check
        _
      $region70: #{tpu_custom_call.1} parent=5 // pred_check_branch
        %533 = sbr.rel (%p530) target = $region72
      $region71: #{tpu_custom_call.1} parent=5 // pred_region
        %s534 = ssub.s32 %s30, 1
        %s535 = sand.u32 %s35, 1
        %s536 = scalar_lea.sflag [#allocation3], %s535
        %s537 = sand.u32 %s43, 1
        %s538 = smul.addr %s537, 8
        %s539 = scalar_lea.vmem [#allocation2], %s538
        // Predicated region
        $region73: #{tpu_custom_call.1} parent=71 // pred_check
          %p540 = pneg %p56
        $region74: #{tpu_custom_call.1} parent=71 // pred_check_branch
          %542 = sbr.rel (%p540) target = $region76
        $region75: #{tpu_custom_call.1} parent=71 // pred_region
          %543 = dma.done %s536, 128
        $region76: #{tpu_custom_call.1} parent=71 // pred_fallthru
          _
        // Predicated region
        $region77: #{tpu_custom_call.1} parent=71 // pred_check
          %p544 = pneg %p77
        $region78: #{tpu_custom_call.1} parent=71 // pred_check_branch
          %546 = sbr.rel (%p544) target = $region80
        $region79: #{tpu_custom_call.1} parent=71 // pred_region
          %547 = dma.done [#allocation6], 1024
        $region80: #{tpu_custom_call.1} parent=71 // pred_fallthru
          _
        // Predicated region
        $region81: #{tpu_custom_call.1} parent=71 // pred_check
          %p548 = pneg %p98
        $region82: #{tpu_custom_call.1} parent=71 // pred_check_branch
          %550 = sbr.rel (%p548) target = $region84
        $region83: #{tpu_custom_call.1} parent=71 // pred_region
          %551 = dma.done [#allocation6], 1024
        $region84: #{tpu_custom_call.1} parent=71 // pred_fallthru
          _
        // Predicated region
        $region85: #{tpu_custom_call.1} parent=71 // pred_check
          %p552 = pneg %p119
        $region86: #{tpu_custom_call.1} parent=71 // pred_check_branch
          %554 = sbr.rel (%p552) target = $region88
        $region87: #{tpu_custom_call.1} parent=71 // pred_region
          %555 = dma.done [#allocation9], 1024
        $region88: #{tpu_custom_call.1} parent=71 // pred_fallthru
          _
        // Predicated region
        $region89: #{tpu_custom_call.1} parent=71 // pred_check
          %p556 = pneg %p140
        $region90: #{tpu_custom_call.1} parent=71 // pred_check_branch
          %558 = sbr.rel (%p556) target = $region92
        $region91: #{tpu_custom_call.1} parent=71 // pred_region
          %559 = dma.done [#allocation9], 64
        $region92: #{tpu_custom_call.1} parent=71 // pred_fallthru
          _
        // Predicated region
        $region93: #{tpu_custom_call.1} parent=71 // pred_check
          %p560 = pneg %p161
        $region94: #{tpu_custom_call.1} parent=71 // pred_check_branch
          %562 = sbr.rel (%p560) target = $region96
        $region95: #{tpu_custom_call.1} parent=71 // pred_region
          %563 = dma.done [#allocation12], 64
        $region96: #{tpu_custom_call.1} parent=71 // pred_fallthru
          _
        // Predicated region
        $region97: #{tpu_custom_call.1} parent=71 // pred_check
          %p564 = pneg %p182
        $region98: #{tpu_custom_call.1} parent=71 // pred_check_branch
          %566 = sbr.rel (%p564) target = $region100
        $region99: #{tpu_custom_call.1} parent=71 // pred_region
          %567 = dma.done [#allocation12], 64
        $region100: #{tpu_custom_call.1} parent=71 // pred_fallthru
          _
        // Predicated region
        $region101: #{tpu_custom_call.1} parent=71 // pred_check
          %p568 = pneg %p203
        $region102: #{tpu_custom_call.1} parent=71 // pred_check_branch
          %570 = sbr.rel (%p568) target = $region104
        $region103: #{tpu_custom_call.1} parent=71 // pred_region
          %571 = dma.done [#allocation15], 256
        $region104: #{tpu_custom_call.1} parent=71 // pred_fallthru
          _
        // Predicated region
        $region105: #{tpu_custom_call.1} parent=71 // pred_check
          %p572 = pneg %p224
        $region106: #{tpu_custom_call.1} parent=71 // pred_check_branch
          %574 = sbr.rel (%p572) target = $region108
        $region107: #{tpu_custom_call.1} parent=71 // pred_region
          %575 = dma.done [#allocation15], 16
        $region108: #{tpu_custom_call.1} parent=71 // pred_fallthru
          _
        // Predicated region
        $region109: #{tpu_custom_call.1} parent=71 // pred_check
          %p576 = pneg %p245
        $region110: #{tpu_custom_call.1} parent=71 // pred_check_branch
          %578 = sbr.rel (%p576) target = $region112
        $region111: #{tpu_custom_call.1} parent=71 // pred_region
          %579 = dma.done [#allocation18], 128
        $region112: #{tpu_custom_call.1} parent=71 // pred_fallthru
          _
        %s580 = sand.u32 %s35, 1
        %s581 = scalar_lea.sflag [#allocation3], %s580
        %s582 = sand.u32 %s258, 1
        %s583 = scalar_lea.vmem [#allocation19], %s582
        // Predicated region
        $region113: #{tpu_custom_call.1} parent=71 // pred_check
          %p584 = pneg %p271
        $region114: #{tpu_custom_call.1} parent=71 // pred_check_branch
          %586 = sbr.rel (%p584) target = $region116
        $region115: #{tpu_custom_call.1} parent=71 // pred_region
          %587 = dma.done %s581, 16
        $region116: #{tpu_custom_call.1} parent=71 // pred_fallthru
          _
        // Predicated region
        $region117: #{tpu_custom_call.1} parent=71 // pred_check
          %p588 = pneg %p292
        $region118: #{tpu_custom_call.1} parent=71 // pred_check_branch
          %590 = sbr.rel (%p588) target = $region120
        $region119: #{tpu_custom_call.1} parent=71 // pred_region
          %591 = dma.done [#allocation6], 16
        $region120: #{tpu_custom_call.1} parent=71 // pred_fallthru
          _
        // Predicated region
        $region121: #{tpu_custom_call.1} parent=71 // pred_check
          %p592 = pneg %p313
        $region122: #{tpu_custom_call.1} parent=71 // pred_check_branch
          %594 = sbr.rel (%p592) target = $region124
        $region123: #{tpu_custom_call.1} parent=71 // pred_region
          %595 = dma.done [#allocation9], 16
        $region124: #{tpu_custom_call.1} parent=71 // pred_fallthru
          _
        %s596 = sand.u32 %s35, 1
        %s597 = scalar_lea.sflag [#allocation3], %s596
        %s598 = sand.u32 %s43, 1
        %s599 = smul.addr %s598, 8
        %s600 = scalar_lea.vmem [#allocation2], %s599
        %p601 = pneg %p56
        %p602 = pneg %p53
        %p603 = pneg %p77
        %p604 = pneg %p74
        %p605 = pneg %p98
        %p606 = pneg %p95
        %p607 = pneg %p119
        %p608 = pneg %p116
        %p609 = pneg %p140
        %p610 = pneg %p137
        %p611 = pneg %p161
        %p612 = pneg %p158
        %p613 = pneg %p182
        %p614 = pneg %p179
        %p615 = pneg %p203
        %p616 = pneg %p200
        %p617 = pneg %p224
        %p618 = pneg %p221
        %p619 = pneg %p245
        %p620 = pneg %p242
        %s621 = sand.u32 %s35, 1
        %s622 = scalar_lea.sflag [#allocation3], %s621
        %s623 = sand.u32 %s258, 1
        %s624 = scalar_lea.vmem [#allocation19], %s623
        %p625 = pneg %p271
        %p626 = pneg %p268
        %p627 = pneg %p292
        %p628 = pneg %p289
        %p629 = pneg %p313
        %p630 = pneg %p310
        %p631 = pneg %p339
        %p632 = pneg %p336
        %s633 = sand.u32 %s326, 1
        %s634 = scalar_lea.sflag [#allocation4], %s633
        %s635 = sand.u32 %s326, 1
        %s636 = smul.addr %s635, 8
        %s637 = scalar_lea.vmem [#allocation22], %s636
        %v639 = vld [vmem:[%s539] sm:$0xff]
        %v640 = vpack.c.bf16 %v639, %v639
        %v641 = vld [vmem:[#allocation17] sm:$0xff]
        %v642 = vld [vmem:[%s583] sm:$0x1]
        %v644 = vlaneseq
        %v645 = vshrl.u32 %v644, 7
        %v646 = vsub.s32 0, %v645
        %v647 = vrot.slane %v642, %v646
        %v649 = vadd.f32 %v641, %v647
        %v650 = vld [vmem:[#allocation16] sm:$0x1]
        %v652 = vlaneseq
        %v653 = vshrl.u32 %v652, 7
        %v654 = vsub.s32 0, %v653
        %v655 = vrot.slane %v650, %v654
        %v657 = vadd.f32 %v655, %v639
        %v658 = vld [vmem:[#allocation5] sm:$0xf]
        %v659 = vld [vmem:[#allocation5 + $0x4] sm:$0xf]
        %v660 = vld [vmem:[#allocation5 + $0x8] sm:$0xf]
        %v661 = vld [vmem:[#allocation5 + $0xc] sm:$0xf]
        %v662 = vld [vmem:[#allocation10] sm:$0x1]
        %v664 = vlaneseq
        %v665 = vshrl.u32 %v664, 7
        %v666 = vsub.s32 0, %v665
        %v667 = vrot.slane %v662, %v666
        %v673 = vunpack.c.l.b16 %v658
        %v674 = vunpack.c.l.b16 %v659
        %v675 = vunpack.c.l.b16 %v660
        %v676 = vunpack.c.l.b16 %v661
        %v677 = vpack.c.b16 %v674, %v673
        %v678 = vpack.c.b16 %v676, %v675
        %vm681 = vcmask 261120
        %v683 = vsel %vm681, %v640, 0
        %685 = vmatprep.subr.bf16.mxu0 0
        %686 = vmatpush1.bf16.msra.mxu0 %v677
        %687 = vmatprep.subr.bf16.mxu0 0
        %688 = vmatpush1.bf16.msra.mxu0 %v678
        %689 = vmatprep.subr.bf16.mxu0 0
        %690 = vmatpush1.bf16.msra.mxu0 0
        %691 = vmatprep.subr.bf16.mxu0 0
        %692 = vmatpush1.bf16.msra.mxu0 0
        %693 = vmatprep.subr.bf16.mxu0 0
        %694 = vmatpush1.bf16.msra.mxu0 0
        %695 = vmatprep.subr.bf16.mxu0 0
        %696 = vmatpush1.bf16.msra.mxu0 0
        %697 = vmatprep.subr.bf16.mxu0 0
        %698 = vmatpush1.bf16.msra.mxu0 0
        %699 = vmatprep.subr.bf16.mxu0 0
        %700 = vmatpush1.bf16.msra.mxu0 0
        %701 = vmatprep.subr.bf16.mxu0 0
        %702 = vmatpush1.bf16.msra.mxu0 0
        %703 = vmatprep.subr.bf16.mxu0 0
        %704 = vmatpush1.bf16.msra.mxu0 0
        %705 = vmatprep.subr.bf16.mxu0 0
        %706 = vmatpush1.bf16.msra.mxu0 0
        %707 = vmatprep.subr.bf16.mxu0 0
        %708 = vmatpush1.bf16.msra.mxu0 0
        %709 = vmatprep.subr.bf16.mxu0 0
        %710 = vmatpush1.bf16.msra.mxu0 0
        %711 = vmatprep.subr.bf16.mxu0 0
        %712 = vmatpush1.bf16.msra.mxu0 0
        %713 = vmatprep.subr.bf16.mxu0 0
        %714 = vmatpush1.bf16.msra.mxu0 0
        %715 = vmatprep.subr.bf16.mxu0 0
        %716 = vmatpush1.bf16.msra.mxu0 0
        %717 = vmatprep.mubr.bf16.mxu0 0
        %718 = vmatmul.mubr.bf16.gmra.mrb[0].mxu0 %v683
        %v719 = vpop.f32.mrb[0].mxu0
        %v720 = vadd.f32 %v667, %v719
        %v721 = vpop.f32.mrb[0].mxu0
        %v722 = vpop.f32.mrb[0].mxu0
        %v723 = vpop.f32.mrb[0].mxu0
        %724 = vdwg.mxu0
        %v725 = vld [vmem:[#allocation7] sm:$0xf]
        %v726 = vld [vmem:[#allocation7 + $0x4] sm:$0xf]
        %v727 = vld [vmem:[#allocation7 + $0x8] sm:$0xf]
        %v728 = vld [vmem:[#allocation7 + $0xc] sm:$0xf]
        %v729 = vld [vmem:[#allocation11] sm:$0x1]
        %v731 = vlaneseq
        %v732 = vshrl.u32 %v731, 7
        %v733 = vsub.s32 0, %v732
        %v734 = vrot.slane %v729, %v733
        %v740 = vunpack.c.l.b16 %v725
        %v741 = vunpack.c.l.b16 %v726
        %v742 = vunpack.c.l.b16 %v727
        %v743 = vunpack.c.l.b16 %v728
        %v744 = vpack.c.b16 %v741, %v740
        %v745 = vpack.c.b16 %v743, %v742
        %748 = vmatprep.subr.bf16.mxu0 0
        %749 = vmatpush1.bf16.msra.mxu0 %v744
        %750 = vmatprep.subr.bf16.mxu0 0
        %751 = vmatpush1.bf16.msra.mxu0 %v745
        %752 = vmatprep.subr.bf16.mxu0 0
        %753 = vmatpush1.bf16.msra.mxu0 0
        %754 = vmatprep.subr.bf16.mxu0 0
        %755 = vmatpush1.bf16.msra.mxu0 0
        %756 = vmatprep.subr.bf16.mxu0 0
        %757 = vmatpush1.bf16.msra.mxu0 0
        %758 = vmatprep.subr.bf16.mxu0 0
        %759 = vmatpush1.bf16.msra.mxu0 0
        %760 = vmatprep.subr.bf16.mxu0 0
        %761 = vmatpush1.bf16.msra.mxu0 0
        %762 = vmatprep.subr.bf16.mxu0 0
        %763 = vmatpush1.bf16.msra.mxu0 0
        %764 = vmatprep.subr.bf16.mxu0 0
        %765 = vmatpush1.bf16.msra.mxu0 0
        %766 = vmatprep.subr.bf16.mxu0 0
        %767 = vmatpush1.bf16.msra.mxu0 0
        %768 = vmatprep.subr.bf16.mxu0 0
        %769 = vmatpush1.bf16.msra.mxu0 0
        %770 = vmatprep.subr.bf16.mxu0 0
        %771 = vmatpush1.bf16.msra.mxu0 0
        %772 = vmatprep.subr.bf16.mxu0 0
        %773 = vmatpush1.bf16.msra.mxu0 0
        %774 = vmatprep.subr.bf16.mxu0 0
        %775 = vmatpush1.bf16.msra.mxu0 0
        %776 = vmatprep.subr.bf16.mxu0 0
        %777 = vmatpush1.bf16.msra.mxu0 0
        %778 = vmatprep.subr.bf16.mxu0 0
        %779 = vmatpush1.bf16.msra.mxu0 0
        %780 = vmatprep.mubr.bf16.mxu0 0
        %781 = vmatmul.mubr.bf16.gmra.mrb[0].mxu0 %v683
        %v782 = vpop.f32.mrb[0].mxu0
        %v783 = vadd.f32 %v734, %v782
        %v784 = vpop.f32.mrb[0].mxu0
        %v785 = vpop.f32.mrb[0].mxu0
        %v786 = vpop.f32.mrb[0].mxu0
        %787 = vdwg.mxu0
        %v788 = vld [vmem:[#allocation8] sm:$0xf]
        %v789 = vld [vmem:[#allocation8 + $0x4] sm:$0xf]
        %v790 = vld [vmem:[#allocation8 + $0x8] sm:$0xf]
        %v791 = vld [vmem:[#allocation8 + $0xc] sm:$0xf]
        %v792 = vld [vmem:[#allocation13] sm:$0x1]
        %v794 = vlaneseq
        %v795 = vshrl.u32 %v794, 7
        %v796 = vsub.s32 0, %v795
        %v797 = vrot.slane %v792, %v796
        %v803 = vunpack.c.l.b16 %v788
        %v804 = vunpack.c.l.b16 %v789
        %v805 = vunpack.c.l.b16 %v790
        %v806 = vunpack.c.l.b16 %v791
        %v807 = vpack.c.b16 %v804, %v803
        %v808 = vpack.c.b16 %v806, %v805
        %811 = vmatprep.subr.bf16.mxu0 0
        %812 = vmatpush1.bf16.msra.mxu0 %v807
        %813 = vmatprep.subr.bf16.mxu0 0
        %814 = vmatpush1.bf16.msra.mxu0 %v808
        %815 = vmatprep.subr.bf16.mxu0 0
        %816 = vmatpush1.bf16.msra.mxu0 0
        %817 = vmatprep.subr.bf16.mxu0 0
        %818 = vmatpush1.bf16.msra.mxu0 0
        %819 = vmatprep.subr.bf16.mxu0 0
        %820 = vmatpush1.bf16.msra.mxu0 0
        %821 = vmatprep.subr.bf16.mxu0 0
        %822 = vmatpush1.bf16.msra.mxu0 0
        %823 = vmatprep.subr.bf16.mxu0 0
        %824 = vmatpush1.bf16.msra.mxu0 0
        %825 = vmatprep.subr.bf16.mxu0 0
        %826 = vmatpush1.bf16.msra.mxu0 0
        %827 = vmatprep.subr.bf16.mxu0 0
        %828 = vmatpush1.bf16.msra.mxu0 0
        %829 = vmatprep.subr.bf16.mxu0 0
        %830 = vmatpush1.bf16.msra.mxu0 0
        %831 = vmatprep.subr.bf16.mxu0 0
        %832 = vmatpush1.bf16.msra.mxu0 0
        %833 = vmatprep.subr.bf16.mxu0 0
        %834 = vmatpush1.bf16.msra.mxu0 0
        %835 = vmatprep.subr.bf16.mxu0 0
        %836 = vmatpush1.bf16.msra.mxu0 0
        %837 = vmatprep.subr.bf16.mxu0 0
        %838 = vmatpush1.bf16.msra.mxu0 0
        %839 = vmatprep.subr.bf16.mxu0 0
        %840 = vmatpush1.bf16.msra.mxu0 0
        %841 = vmatprep.subr.bf16.mxu0 0
        %842 = vmatpush1.bf16.msra.mxu0 0
        %843 = vmatprep.mubr.bf16.mxu0 0
        %844 = vmatmul.mubr.bf16.gmra.mrb[0].mxu0 %v683
        %v845 = vpop.f32.mrb[0].mxu0
        %v846 = vadd.f32 %v797, %v845
        %v847 = vpop.f32.mrb[0].mxu0
        %v848 = vpop.f32.mrb[0].mxu0
        %v849 = vpop.f32.mrb[0].mxu0
        %850 = vdwg.mxu0
        %v851 = vpack.c.bf16 %v720, %v720
        %v852 = vpack.c.bf16 %v783, %v783
        %vm853 = vcmask 64512
        %v855 = vsel %vm853, %v851, 0
        %v858 = vsel %vm853, %v852, 0
        %860 = vmatprep.subr.bf16.mxu0 0
        %861 = vmatpush1.bf16.xpose.msra.mxu0 %v858
        %862 = vmatprep.subr.bf16.mxu0 0
        %863 = vmatpush1.bf16.xpose.msra.mxu0 0
        %864 = vmatprep.subr.bf16.mxu0 0
        %865 = vmatpush1.bf16.xpose.msra.mxu0 0
        %866 = vmatprep.subr.bf16.mxu0 0
        %867 = vmatpush1.bf16.xpose.msra.mxu0 0
        %868 = vmatprep.subr.bf16.mxu0 0
        %869 = vmatpush1.bf16.xpose.msra.mxu0 0
        %870 = vmatprep.subr.bf16.mxu0 0
        %871 = vmatpush1.bf16.xpose.msra.mxu0 0
        %872 = vmatprep.subr.bf16.mxu0 0
        %873 = vmatpush1.bf16.xpose.msra.mxu0 0
        %874 = vmatprep.subr.bf16.mxu0 0
        %875 = vmatpush1.bf16.xpose.msra.mxu0 0
        %876 = vmatprep.subr.bf16.mxu0 0
        %877 = vmatpush1.bf16.xpose.msra.mxu0 0
        %878 = vmatprep.subr.bf16.mxu0 0
        %879 = vmatpush1.bf16.xpose.msra.mxu0 0
        %880 = vmatprep.subr.bf16.mxu0 0
        %881 = vmatpush1.bf16.xpose.msra.mxu0 0
        %882 = vmatprep.subr.bf16.mxu0 0
        %883 = vmatpush1.bf16.xpose.msra.mxu0 0
        %884 = vmatprep.subr.bf16.mxu0 0
        %885 = vmatpush1.bf16.xpose.msra.mxu0 0
        %886 = vmatprep.subr.bf16.mxu0 0
        %887 = vmatpush1.bf16.xpose.msra.mxu0 0
        %888 = vmatprep.subr.bf16.mxu0 0
        %889 = vmatpush1.bf16.xpose.msra.mxu0 0
        %890 = vmatprep.subr.bf16.mxu0 0
        %891 = vmatpush1.bf16.xpose.msra.mxu0 0
        %892 = vmatprep.mubr.bf16.mxu0 0
        %893 = vmatmul.mubr.bf16.gmra.mrb[0].mxu0 %v855
        %v894 = vpop.f32.mrb[0].mxu0
        %v895 = vadd.f32 0.0, %v894
        %v896 = vpop.f32.mrb[0].mxu0
        %v897 = vpop.f32.mrb[0].mxu0
        %v898 = vpop.f32.mrb[0].mxu0
        %899 = vdwg.mxu0
        %v900 = vmul.f32 %v895, 0.35355338
        %v901 = vadd.f32 %v900, %v649
        %v902 = vsel %vm853, %v901, -inf
        %903 = vmax.xlane.f32.xlu0 %v902
        %v904 = vpop.xlane.xlu0 %903
        %v905 = vsub.f32 %v901, %v904
        %v906 = vmul.f32 %v905, 1.442695
        %v907 = vpow.pop %v906
        %v908 = vsel %vm853, %v907, 0.0
        %909 = vadd.xlane.f32.xlu0 %v908
        %v910 = vpop.xlane.xlu0 %909
        %v911 = vrcp.pop %v910
        %v912 = vmul.f32 %v907, %v911
        %v913 = vpack.c.bf16 %v912, %v912
        %v914 = vpack.c.bf16 %v846, %v846
        %v916 = vsel %vm853, %v913, 0
        %vm918 = vcmask 1043456
        %v920 = vsel %vm918, %v914, 0
        %922 = vmatprep.subr.bf16.mxu0 0
        %923 = vmatpush1.bf16.msra.mxu0 %v920
        %924 = vmatprep.subr.bf16.mxu0 0
        %925 = vmatpush1.bf16.msra.mxu0 0
        %926 = vmatprep.subr.bf16.mxu0 0
        %927 = vmatpush1.bf16.msra.mxu0 0
        %928 = vmatprep.subr.bf16.mxu0 0
        %929 = vmatpush1.bf16.msra.mxu0 0
        %930 = vmatprep.subr.bf16.mxu0 0
        %931 = vmatpush1.bf16.msra.mxu0 0
        %932 = vmatprep.subr.bf16.mxu0 0
        %933 = vmatpush1.bf16.msra.mxu0 0
        %934 = vmatprep.subr.bf16.mxu0 0
        %935 = vmatpush1.bf16.msra.mxu0 0
        %936 = vmatprep.subr.bf16.mxu0 0
        %937 = vmatpush1.bf16.msra.mxu0 0
        %938 = vmatprep.subr.bf16.mxu0 0
        %939 = vmatpush1.bf16.msra.mxu0 0
        %940 = vmatprep.subr.bf16.mxu0 0
        %941 = vmatpush1.bf16.msra.mxu0 0
        %942 = vmatprep.subr.bf16.mxu0 0
        %943 = vmatpush1.bf16.msra.mxu0 0
        %944 = vmatprep.subr.bf16.mxu0 0
        %945 = vmatpush1.bf16.msra.mxu0 0
        %946 = vmatprep.subr.bf16.mxu0 0
        %947 = vmatpush1.bf16.msra.mxu0 0
        %948 = vmatprep.subr.bf16.mxu0 0
        %949 = vmatpush1.bf16.msra.mxu0 0
        %950 = vmatprep.subr.bf16.mxu0 0
        %951 = vmatpush1.bf16.msra.mxu0 0
        %952 = vmatprep.subr.bf16.mxu0 0
        %953 = vmatpush1.bf16.msra.mxu0 0
        %954 = vmatprep.mubr.bf16.mxu0 0
        %955 = vmatmul.mubr.bf16.gmra.mrb[0].mxu0 %v916
        %v956 = vpop.f32.mrb[0].mxu0
        %v957 = vadd.f32 0.0, %v956
        %v958 = vpop.f32.mrb[0].mxu0
        %v959 = vpop.f32.mrb[0].mxu0
        %v960 = vpop.f32.mrb[0].mxu0
        %961 = vdwg.mxu0
        %v962 = vpack.c.bf16 %v957, %v957
        %v963 = vld [vmem:[#allocation14] sm:$0xf]
        %v965 = vsel %vm853, %v962, 0
        %v968 = vsel %vm918, %v963, 0
        %970 = vmatprep.subr.bf16.mxu0 0
        %971 = vmatpush1.bf16.msra.mxu0 %v968
        %972 = vmatprep.subr.bf16.mxu0 0
        %973 = vmatpush1.bf16.msra.mxu0 0
        %974 = vmatprep.subr.bf16.mxu0 0
        %975 = vmatpush1.bf16.msra.mxu0 0
        %976 = vmatprep.subr.bf16.mxu0 0
        %977 = vmatpush1.bf16.msra.mxu0 0
        %978 = vmatprep.subr.bf16.mxu0 0
        %979 = vmatpush1.bf16.msra.mxu0 0
        %980 = vmatprep.subr.bf16.mxu0 0
        %981 = vmatpush1.bf16.msra.mxu0 0
        %982 = vmatprep.subr.bf16.mxu0 0
        %983 = vmatpush1.bf16.msra.mxu0 0
        %984 = vmatprep.subr.bf16.mxu0 0
        %985 = vmatpush1.bf16.msra.mxu0 0
        %986 = vmatprep.subr.bf16.mxu0 0
        %987 = vmatpush1.bf16.msra.mxu0 0
        %988 = vmatprep.subr.bf16.mxu0 0
        %989 = vmatpush1.bf16.msra.mxu0 0
        %990 = vmatprep.subr.bf16.mxu0 0
        %991 = vmatpush1.bf16.msra.mxu0 0
        %992 = vmatprep.subr.bf16.mxu0 0
        %993 = vmatpush1.bf16.msra.mxu0 0
        %994 = vmatprep.subr.bf16.mxu0 0
        %995 = vmatpush1.bf16.msra.mxu0 0
        %996 = vmatprep.subr.bf16.mxu0 0
        %997 = vmatpush1.bf16.msra.mxu0 0
        %998 = vmatprep.subr.bf16.mxu0 0
        %999 = vmatpush1.bf16.msra.mxu0 0
        %1000 = vmatprep.subr.bf16.mxu0 0
        %1001 = vmatpush1.bf16.msra.mxu0 0
        %1002 = vmatprep.mubr.bf16.mxu0 0
        %1003 = vmatmul.mubr.bf16.gmra.mrb[0].mxu0 %v965
        %v1004 = vpop.f32.mrb[0].mxu0
        %v1005 = vadd.f32 0.0, %v1004
        %v1006 = vpop.f32.mrb[0].mxu0
        %v1007 = vpop.f32.mrb[0].mxu0
        %v1008 = vpop.f32.mrb[0].mxu0
        %1009 = vdwg.mxu0
        %v1010 = vadd.f32 %v657, %v1005
        %s1011 = scalar_lea.vmem [#allocation5], 16
        %v1012 = vld [vmem:[%s1011] sm:$0xf]
        %v1013 = vld [vmem:[%s1011 + $0x4] sm:$0xf]
        %v1014 = vld [vmem:[%s1011 + $0x8] sm:$0xf]
        %v1015 = vld [vmem:[%s1011 + $0xc] sm:$0xf]
        %s1016 = scalar_lea.vmem [#allocation10], 1
        %v1017 = vld [vmem:[%s1016] sm:$0x1]
        %v1019 = vlaneseq
        %v1020 = vshrl.u32 %v1019, 7
        %v1021 = vsub.s32 0, %v1020
        %v1022 = vrot.slane %v1017, %v1021
        %v1028 = vunpack.c.l.b16 %v1012
        %v1029 = vunpack.c.l.b16 %v1013
        %v1030 = vunpack.c.l.b16 %v1014
        %v1031 = vunpack.c.l.b16 %v1015
        %v1032 = vpack.c.b16 %v1029, %v1028
        %v1033 = vpack.c.b16 %v1031, %v1030
        %1036 = vmatprep.subr.bf16.mxu0 0
        %1037 = vmatpush1.bf16.msra.mxu0 %v1032
        %1038 = vmatprep.subr.bf16.mxu0 0
        %1039 = vmatpush1.bf16.msra.mxu0 %v1033
        %1040 = vmatprep.subr.bf16.mxu0 0
        %1041 = vmatpush1.bf16.msra.mxu0 0
        %1042 = vmatprep.subr.bf16.mxu0 0
        %1043 = vmatpush1.bf16.msra.mxu0 0
        %1044 = vmatprep.subr.bf16.mxu0 0
        %1045 = vmatpush1.bf16.msra.mxu0 0
        %1046 = vmatprep.subr.bf16.mxu0 0
        %1047 = vmatpush1.bf16.msra.mxu0 0
        %1048 = vmatprep.subr.bf16.mxu0 0
        %1049 = vmatpush1.bf16.msra.mxu0 0
        %1050 = vmatprep.subr.bf16.mxu0 0
        %1051 = vmatpush1.bf16.msra.mxu0 0
        %1052 = vmatprep.subr.bf16.mxu0 0
        %1053 = vmatpush1.bf16.msra.mxu0 0
        %1054 = vmatprep.subr.bf16.mxu0 0
        %1055 = vmatpush1.bf16.msra.mxu0 0
        %1056 = vmatprep.subr.bf16.mxu0 0
        %1057 = vmatpush1.bf16.msra.mxu0 0
        %1058 = vmatprep.subr.bf16.mxu0 0
        %1059 = vmatpush1.bf16.msra.mxu0 0
        %1060 = vmatprep.subr.bf16.mxu0 0
        %1061 = vmatpush1.bf16.msra.mxu0 0
        %1062 = vmatprep.subr.bf16.mxu0 0
        %1063 = vmatpush1.bf16.msra.mxu0 0
        %1064 = vmatprep.subr.bf16.mxu0 0
        %1065 = vmatpush1.bf16.msra.mxu0 0
        %1066 = vmatprep.subr.bf16.mxu0 0
        %1067 = vmatpush1.bf16.msra.mxu0 0
        %1068 = vmatprep.mubr.bf16.mxu0 0
        %1069 = vmatmul.mubr.bf16.gmra.mrb[0].mxu0 %v683
        %v1070 = vpop.f32.mrb[0].mxu0
        %v1071 = vadd.f32 %v1022, %v1070
        %v1072 = vpop.f32.mrb[0].mxu0
        %v1073 = vpop.f32.mrb[0].mxu0
        %v1074 = vpop.f32.mrb[0].mxu0
        %1075 = vdwg.mxu0
        %s1076 = scalar_lea.vmem [#allocation7], 16
        %v1077 = vld [vmem:[%s1076] sm:$0xf]
        %v1078 = vld [vmem:[%s1076 + $0x4] sm:$0xf]
        %v1079 = vld [vmem:[%s1076 + $0x8] sm:$0xf]
        %v1080 = vld [vmem:[%s1076 + $0xc] sm:$0xf]
        %s1081 = scalar_lea.vmem [#allocation11], 1
        %v1082 = vld [vmem:[%s1081] sm:$0x1]
        %v1084 = vlaneseq
        %v1085 = vshrl.u32 %v1084, 7
        %v1086 = vsub.s32 0, %v1085
        %v1087 = vrot.slane %v1082, %v1086
        %v1093 = vunpack.c.l.b16 %v1077
        %v1094 = vunpack.c.l.b16 %v1078
        %v1095 = vunpack.c.l.b16 %v1079
        %v1096 = vunpack.c.l.b16 %v1080
        %v1097 = vpack.c.b16 %v1094, %v1093
        %v1098 = vpack.c.b16 %v1096, %v1095
        %1101 = vmatprep.subr.bf16.mxu0 0
        %1102 = vmatpush1.bf16.msra.mxu0 %v1097
        %1103 = vmatprep.subr.bf16.mxu0 0
        %1104 = vmatpush1.bf16.msra.mxu0 %v1098
        %1105 = vmatprep.subr.bf16.mxu0 0
        %1106 = vmatpush1.bf16.msra.mxu0 0
        %1107 = vmatprep.subr.bf16.mxu0 0
        %1108 = vmatpush1.bf16.msra.mxu0 0
        %1109 = vmatprep.subr.bf16.mxu0 0
        %1110 = vmatpush1.bf16.msra.mxu0 0
        %1111 = vmatprep.subr.bf16.mxu0 0
        %1112 = vmatpush1.bf16.msra.mxu0 0
        %1113 = vmatprep.subr.bf16.mxu0 0
        %1114 = vmatpush1.bf16.msra.mxu0 0
        %1115 = vmatprep.subr.bf16.mxu0 0
        %1116 = vmatpush1.bf16.msra.mxu0 0
        %1117 = vmatprep.subr.bf16.mxu0 0
        %1118 = vmatpush1.bf16.msra.mxu0 0
        %1119 = vmatprep.subr.bf16.mxu0 0
        %1120 = vmatpush1.bf16.msra.mxu0 0
        %1121 = vmatprep.subr.bf16.mxu0 0
        %1122 = vmatpush1.bf16.msra.mxu0 0
        %1123 = vmatprep.subr.bf16.mxu0 0
        %1124 = vmatpush1.bf16.msra.mxu0 0
        %1125 = vmatprep.subr.bf16.mxu0 0
        %1126 = vmatpush1.bf16.msra.mxu0 0
        %1127 = vmatprep.subr.bf16.mxu0 0
        %1128 = vmatpush1.bf16.msra.mxu0 0
        %1129 = vmatprep.subr.bf16.mxu0 0
        %1130 = vmatpush1.bf16.msra.mxu0 0
        %1131 = vmatprep.subr.bf16.mxu0 0
        %1132 = vmatpush1.bf16.msra.mxu0 0
        %1133 = vmatprep.mubr.bf16.mxu0 0
        %1134 = vmatmul.mubr.bf16.gmra.mrb[0].mxu0 %v683
        %v1135 = vpop.f32.mrb[0].mxu0
        %v1136 = vadd.f32 %v1087, %v1135
        %v1137 = vpop.f32.mrb[0].mxu0
        %v1138 = vpop.f32.mrb[0].mxu0
        %v1139 = vpop.f32.mrb[0].mxu0
        %1140 = vdwg.mxu0
        %s1141 = scalar_lea.vmem [#allocation8], 16
        %v1142 = vld [vmem:[%s1141] sm:$0xf]
        %v1143 = vld [vmem:[%s1141 + $0x4] sm:$0xf]
        %v1144 = vld [vmem:[%s1141 + $0x8] sm:$0xf]
        %v1145 = vld [vmem:[%s1141 + $0xc] sm:$0xf]
        %s1146 = scalar_lea.vmem [#allocation13], 1
        %v1147 = vld [vmem:[%s1146] sm:$0x1]
        %v1149 = vlaneseq
        %v1150 = vshrl.u32 %v1149, 7
        %v1151 = vsub.s32 0, %v1150
        %v1152 = vrot.slane %v1147, %v1151
        %v1158 = vunpack.c.l.b16 %v1142
        %v1159 = vunpack.c.l.b16 %v1143
        %v1160 = vunpack.c.l.b16 %v1144
        %v1161 = vunpack.c.l.b16 %v1145
        %v1162 = vpack.c.b16 %v1159, %v1158
        %v1163 = vpack.c.b16 %v1161, %v1160
        %1166 = vmatprep.subr.bf16.mxu0 0
        %1167 = vmatpush1.bf16.msra.mxu0 %v1162
        %1168 = vmatprep.subr.bf16.mxu0 0
        %1169 = vmatpush1.bf16.msra.mxu0 %v1163
        %1170 = vmatprep.subr.bf16.mxu0 0
        %1171 = vmatpush1.bf16.msra.mxu0 0
        %1172 = vmatprep.subr.bf16.mxu0 0
        %1173 = vmatpush1.bf16.msra.mxu0 0
        %1174 = vmatprep.subr.bf16.mxu0 0
        %1175 = vmatpush1.bf16.msra.mxu0 0
        %1176 = vmatprep.subr.bf16.mxu0 0
        %1177 = vmatpush1.bf16.msra.mxu0 0
        %1178 = vmatprep.subr.bf16.mxu0 0
        %1179 = vmatpush1.bf16.msra.mxu0 0
        %1180 = vmatprep.subr.bf16.mxu0 0
        %1181 = vmatpush1.bf16.msra.mxu0 0
        %1182 = vmatprep.subr.bf16.mxu0 0
        %1183 = vmatpush1.bf16.msra.mxu0 0
        %1184 = vmatprep.subr.bf16.mxu0 0
        %1185 = vmatpush1.bf16.msra.mxu0 0
        %1186 = vmatprep.subr.bf16.mxu0 0
        %1187 = vmatpush1.bf16.msra.mxu0 0
        %1188 = vmatprep.subr.bf16.mxu0 0
        %1189 = vmatpush1.bf16.msra.mxu0 0
        %1190 = vmatprep.subr.bf16.mxu0 0
        %1191 = vmatpush1.bf16.msra.mxu0 0
        %1192 = vmatprep.subr.bf16.mxu0 0
        %1193 = vmatpush1.bf16.msra.mxu0 0
        %1194 = vmatprep.subr.bf16.mxu0 0
        %1195 = vmatpush1.bf16.msra.mxu0 0
        %1196 = vmatprep.subr.bf16.mxu0 0
        %1197 = vmatpush1.bf16.msra.mxu0 0
        %1198 = vmatprep.mubr.bf16.mxu0 0
        %1199 = vmatmul.mubr.bf16.gmra.mrb[0].mxu0 %v683
        %v1200 = vpop.f32.mrb[0].mxu0
        %v1201 = vadd.f32 %v1152, %v1200
        %v1202 = vpop.f32.mrb[0].mxu0
        %v1203 = vpop.f32.mrb[0].mxu0
        %v1204 = vpop.f32.mrb[0].mxu0
        %1205 = vdwg.mxu0
        %v1206 = vpack.c.bf16 %v1071, %v1071
        %v1207 = vpack.c.bf16 %v1136, %v1136
        %v1209 = vsel %vm853, %v1206, 0
        %v1212 = vsel %vm853, %v1207, 0
        %1214 = vmatprep.subr.bf16.mxu0 0
        %1215 = vmatpush1.bf16.xpose.msra.mxu0 %v1212
        %1216 = vmatprep.subr.bf16.mxu0 0
        %1217 = vmatpush1.bf16.xpose.msra.mxu0 0
        %1218 = vmatprep.subr.bf16.mxu0 0
        %1219 = vmatpush1.bf16.xpose.msra.mxu0 0
        %1220 = vmatprep.subr.bf16.mxu0 0
        %1221 = vmatpush1.bf16.xpose.msra.mxu0 0
        %1222 = vmatprep.subr.bf16.mxu0 0
        %1223 = vmatpush1.bf16.xpose.msra.mxu0 0
        %1224 = vmatprep.subr.bf16.mxu0 0
        %1225 = vmatpush1.bf16.xpose.msra.mxu0 0
        %1226 = vmatprep.subr.bf16.mxu0 0
        %1227 = vmatpush1.bf16.xpose.msra.mxu0 0
        %1228 = vmatprep.subr.bf16.mxu0 0
        %1229 = vmatpush1.bf16.xpose.msra.mxu0 0
        %1230 = vmatprep.subr.bf16.mxu0 0
        %1231 = vmatpush1.bf16.xpose.msra.mxu0 0
        %1232 = vmatprep.subr.bf16.mxu0 0
        %1233 = vmatpush1.bf16.xpose.msra.mxu0 0
        %1234 = vmatprep.subr.bf16.mxu0 0
        %1235 = vmatpush1.bf16.xpose.msra.mxu0 0
        %1236 = vmatprep.subr.bf16.mxu0 0
        %1237 = vmatpush1.bf16.xpose.msra.mxu0 0
        %1238 = vmatprep.subr.bf16.mxu0 0
        %1239 = vmatpush1.bf16.xpose.msra.mxu0 0
        %1240 = vmatprep.subr.bf16.mxu0 0
        %1241 = vmatpush1.bf16.xpose.msra.mxu0 0
        %1242 = vmatprep.subr.bf16.mxu0 0
        %1243 = vmatpush1.bf16.xpose.msra.mxu0 0
        %1244 = vmatprep.subr.bf16.mxu0 0
        %1245 = vmatpush1.bf16.xpose.msra.mxu0 0
        %1246 = vmatprep.mubr.bf16.mxu0 0
        %1247 = vmatmul.mubr.bf16.gmra.mrb[0].mxu0 %v1209
        %v1248 = vpop.f32.mrb[0].mxu0
        %v1249 = vadd.f32 0.0, %v1248
        %v1250 = vpop.f32.mrb[0].mxu0
        %v1251 = vpop.f32.mrb[0].mxu0
        %v1252 = vpop.f32.mrb[0].mxu0
        %1253 = vdwg.mxu0
        %v1254 = vmul.f32 %v1249, 0.35355338
        %v1255 = vadd.f32 %v1254, %v649
        %v1256 = vsel %vm853, %v1255, -inf
        %1257 = vmax.xlane.f32.xlu0 %v1256
        %v1258 = vpop.xlane.xlu0 %1257
        %v1259 = vsub.f32 %v1255, %v1258
        %v1260 = vmul.f32 %v1259, 1.442695
        %v1261 = vpow.pop %v1260
        %v1262 = vsel %vm853, %v1261, 0.0
        %1263 = vadd.xlane.f32.xlu0 %v1262
        %v1264 = vpop.xlane.xlu0 %1263
        %v1265 = vrcp.pop %v1264
        %v1266 = vmul.f32 %v1261, %v1265
        %v1267 = vpack.c.bf16 %v1266, %v1266
        %v1268 = vpack.c.bf16 %v1201, %v1201
        %v1270 = vsel %vm853, %v1267, 0
        %v1273 = vsel %vm918, %v1268, 0
        %1275 = vmatprep.subr.bf16.mxu0 0
        %1276 = vmatpush1.bf16.msra.mxu0 %v1273
        %1277 = vmatprep.subr.bf16.mxu0 0
        %1278 = vmatpush1.bf16.msra.mxu0 0
        %1279 = vmatprep.subr.bf16.mxu0 0
        %1280 = vmatpush1.bf16.msra.mxu0 0
        %1281 = vmatprep.subr.bf16.mxu0 0
        %1282 = vmatpush1.bf16.msra.mxu0 0
        %1283 = vmatprep.subr.bf16.mxu0 0
        %1284 = vmatpush1.bf16.msra.mxu0 0
        %1285 = vmatprep.subr.bf16.mxu0 0
        %1286 = vmatpush1.bf16.msra.mxu0 0
        %1287 = vmatprep.subr.bf16.mxu0 0
        %1288 = vmatpush1.bf16.msra.mxu0 0
        %1289 = vmatprep.subr.bf16.mxu0 0
        %1290 = vmatpush1.bf16.msra.mxu0 0
        %1291 = vmatprep.subr.bf16.mxu0 0
        %1292 = vmatpush1.bf16.msra.mxu0 0
        %1293 = vmatprep.subr.bf16.mxu0 0
        %1294 = vmatpush1.bf16.msra.mxu0 0
        %1295 = vmatprep.subr.bf16.mxu0 0
        %1296 = vmatpush1.bf16.msra.mxu0 0
        %1297 = vmatprep.subr.bf16.mxu0 0
        %1298 = vmatpush1.bf16.msra.mxu0 0
        %1299 = vmatprep.subr.bf16.mxu0 0
        %1300 = vmatpush1.bf16.msra.mxu0 0
        %1301 = vmatprep.subr.bf16.mxu0 0
        %1302 = vmatpush1.bf16.msra.mxu0 0
        %1303 = vmatprep.subr.bf16.mxu0 0
        %1304 = vmatpush1.bf16.msra.mxu0 0
        %1305 = vmatprep.subr.bf16.mxu0 0
        %1306 = vmatpush1.bf16.msra.mxu0 0
        %1307 = vmatprep.mubr.bf16.mxu0 0
        %1308 = vmatmul.mubr.bf16.gmra.mrb[0].mxu0 %v1270
        %v1309 = vpop.f32.mrb[0].mxu0
        %v1310 = vadd.f32 0.0, %v1309
        %v1311 = vpop.f32.mrb[0].mxu0
        %v1312 = vpop.f32.mrb[0].mxu0
        %v1313 = vpop.f32.mrb[0].mxu0
        %1314 = vdwg.mxu0
        %v1315 = vpack.c.bf16 %v1310, %v1310
        %s1316 = scalar_lea.vmem [#allocation14], 4
        %v1317 = vld [vmem:[%s1316] sm:$0xf]
        %v1319 = vsel %vm853, %v1315, 0
        %v1322 = vsel %vm918, %v1317, 0
        %1324 = vmatprep.subr.bf16.mxu0 0
        %1325 = vmatpush1.bf16.msra.mxu0 %v1322
        %1326 = vmatprep.subr.bf16.mxu0 0
        %1327 = vmatpush1.bf16.msra.mxu0 0
        %1328 = vmatprep.subr.bf16.mxu0 0
        %1329 = vmatpush1.bf16.msra.mxu0 0
        %1330 = vmatprep.subr.bf16.mxu0 0
        %1331 = vmatpush1.bf16.msra.mxu0 0
        %1332 = vmatprep.subr.bf16.mxu0 0
        %1333 = vmatpush1.bf16.msra.mxu0 0
        %1334 = vmatprep.subr.bf16.mxu0 0
        %1335 = vmatpush1.bf16.msra.mxu0 0
        %1336 = vmatprep.subr.bf16.mxu0 0
        %1337 = vmatpush1.bf16.msra.mxu0 0
        %1338 = vmatprep.subr.bf16.mxu0 0
        %1339 = vmatpush1.bf16.msra.mxu0 0
        %1340 = vmatprep.subr.bf16.mxu0 0
        %1341 = vmatpush1.bf16.msra.mxu0 0
        %1342 = vmatprep.subr.bf16.mxu0 0
        %1343 = vmatpush1.bf16.msra.mxu0 0
        %1344 = vmatprep.subr.bf16.mxu0 0
        %1345 = vmatpush1.bf16.msra.mxu0 0
        %1346 = vmatprep.subr.bf16.mxu0 0
        %1347 = vmatpush1.bf16.msra.mxu0 0
        %1348 = vmatprep.subr.bf16.mxu0 0
        %1349 = vmatpush1.bf16.msra.mxu0 0
        %1350 = vmatprep.subr.bf16.mxu0 0
        %1351 = vmatpush1.bf16.msra.mxu0 0
        %1352 = vmatprep.subr.bf16.mxu0 0
        %1353 = vmatpush1.bf16.msra.mxu0 0
        %1354 = vmatprep.subr.bf16.mxu0 0
        %1355 = vmatpush1.bf16.msra.mxu0 0
        %1356 = vmatprep.mubr.bf16.mxu0 0
        %1357 = vmatmul.mubr.bf16.gmra.mrb[0].mxu0 %v1319
        %v1358 = vpop.f32.mrb[0].mxu0
        %v1359 = vadd.f32 0.0, %v1358
        %v1360 = vpop.f32.mrb[0].mxu0
        %v1361 = vpop.f32.mrb[0].mxu0
        %v1362 = vpop.f32.mrb[0].mxu0
        %1363 = vdwg.mxu0
        %v1364 = vadd.f32 %v1010, %v1359
        %s1365 = scalar_lea.vmem [#allocation5], 32
        %v1366 = vld [vmem:[%s1365] sm:$0xf]
        %v1367 = vld [vmem:[%s1365 + $0x4] sm:$0xf]
        %v1368 = vld [vmem:[%s1365 + $0x8] sm:$0xf]
        %v1369 = vld [vmem:[%s1365 + $0xc] sm:$0xf]
        %s1370 = scalar_lea.vmem [#allocation10], 2
        %v1371 = vld [vmem:[%s1370] sm:$0x1]
        %v1373 = vlaneseq
        %v1374 = vshrl.u32 %v1373, 7
        %v1375 = vsub.s32 0, %v1374
        %v1376 = vrot.slane %v1371, %v1375
        %v1382 = vunpack.c.l.b16 %v1366
        %v1383 = vunpack.c.l.b16 %v1367
        %v1384 = vunpack.c.l.b16 %v1368
        %v1385 = vunpack.c.l.b16 %v1369
        %v1386 = vpack.c.b16 %v1383, %v1382
        %v1387 = vpack.c.b16 %v1385, %v1384
        %1390 = vmatprep.subr.bf16.mxu0 0
        %1391 = vmatpush1.bf16.msra.mxu0 %v1386
        %1392 = vmatprep.subr.bf16.mxu0 0
        %1393 = vmatpush1.bf16.msra.mxu0 %v1387
        %1394 = vmatprep.subr.bf16.mxu0 0
        %1395 = vmatpush1.bf16.msra.mxu0 0
        %1396 = vmatprep.subr.bf16.mxu0 0
        %1397 = vmatpush1.bf16.msra.mxu0 0
        %1398 = vmatprep.subr.bf16.mxu0 0
        %1399 = vmatpush1.bf16.msra.mxu0 0
        %1400 = vmatprep.subr.bf16.mxu0 0
        %1401 = vmatpush1.bf16.msra.mxu0 0
        %1402 = vmatprep.subr.bf16.mxu0 0
        %1403 = vmatpush1.bf16.msra.mxu0 0
        %1404 = vmatprep.subr.bf16.mxu0 0
        %1405 = vmatpush1.bf16.msra.mxu0 0
        %1406 = vmatprep.subr.bf16.mxu0 0
        %1407 = vmatpush1.bf16.msra.mxu0 0
        %1408 = vmatprep.subr.bf16.mxu0 0
        %1409 = vmatpush1.bf16.msra.mxu0 0
        %1410 = vmatprep.subr.bf16.mxu0 0
        %1411 = vmatpush1.bf16.msra.mxu0 0
        %1412 = vmatprep.subr.bf16.mxu0 0
        %1413 = vmatpush1.bf16.msra.mxu0 0
        %1414 = vmatprep.subr.bf16.mxu0 0
        %1415 = vmatpush1.bf16.msra.mxu0 0
        %1416 = vmatprep.subr.bf16.mxu0 0
        %1417 = vmatpush1.bf16.msra.mxu0 0
        %1418 = vmatprep.subr.bf16.mxu0 0
        %1419 = vmatpush1.bf16.msra.mxu0 0
        %1420 = vmatprep.subr.bf16.mxu0 0
        %1421 = vmatpush1.bf16.msra.mxu0 0
        %1422 = vmatprep.mubr.bf16.mxu0 0
        %1423 = vmatmul.mubr.bf16.gmra.mrb[0].mxu0 %v683
        %v1424 = vpop.f32.mrb[0].mxu0
        %v1425 = vadd.f32 %v1376, %v1424
        %v1426 = vpop.f32.mrb[0].mxu0
        %v1427 = vpop.f32.mrb[0].mxu0
        %v1428 = vpop.f32.mrb[0].mxu0
        %1429 = vdwg.mxu0
        %s1430 = scalar_lea.vmem [#allocation7], 32
        %v1431 = vld [vmem:[%s1430] sm:$0xf]
        %v1432 = vld [vmem:[%s1430 + $0x4] sm:$0xf]
        %v1433 = vld [vmem:[%s1430 + $0x8] sm:$0xf]
        %v1434 = vld [vmem:[%s1430 + $0xc] sm:$0xf]
        %s1435 = scalar_lea.vmem [#allocation11], 2
        %v1436 = vld [vmem:[%s1435] sm:$0x1]
        %v1438 = vlaneseq
        %v1439 = vshrl.u32 %v1438, 7
        %v1440 = vsub.s32 0, %v1439
        %v1441 = vrot.slane %v1436, %v1440
        %v1447 = vunpack.c.l.b16 %v1431
        %v1448 = vunpack.c.l.b16 %v1432
        %v1449 = vunpack.c.l.b16 %v1433
        %v1450 = vunpack.c.l.b16 %v1434
        %v1451 = vpack.c.b16 %v1448, %v1447
        %v1452 = vpack.c.b16 %v1450, %v1449
        %1455 = vmatprep.subr.bf16.mxu0 0
        %1456 = vmatpush1.bf16.msra.mxu0 %v1451
        %1457 = vmatprep.subr.bf16.mxu0 0
        %1458 = vmatpush1.bf16.msra.mxu0 %v1452
        %1459 = vmatprep.subr.bf16.mxu0 0
        %1460 = vmatpush1.bf16.msra.mxu0 0
        %1461 = vmatprep.subr.bf16.mxu0 0
        %1462 = vmatpush1.bf16.msra.mxu0 0
        %1463 = vmatprep.subr.bf16.mxu0 0
        %1464 = vmatpush1.bf16.msra.mxu0 0
        %1465 = vmatprep.subr.bf16.mxu0 0
        %1466 = vmatpush1.bf16.msra.mxu0 0
        %1467 = vmatprep.subr.bf16.mxu0 0
        %1468 = vmatpush1.bf16.msra.mxu0 0
        %1469 = vmatprep.subr.bf16.mxu0 0
        %1470 = vmatpush1.bf16.msra.mxu0 0
        %1471 = vmatprep.subr.bf16.mxu0 0
        %1472 = vmatpush1.bf16.msra.mxu0 0
        %1473 = vmatprep.subr.bf16.mxu0 0
        %1474 = vmatpush1.bf16.msra.mxu0 0
        %1475 = vmatprep.subr.bf16.mxu0 0
        %1476 = vmatpush1.bf16.msra.mxu0 0
        %1477 = vmatprep.subr.bf16.mxu0 0
        %1478 = vmatpush1.bf16.msra.mxu0 0
        %1479 = vmatprep.subr.bf16.mxu0 0
        %1480 = vmatpush1.bf16.msra.mxu0 0
        %1481 = vmatprep.subr.bf16.mxu0 0
        %1482 = vmatpush1.bf16.msra.mxu0 0
        %1483 = vmatprep.subr.bf16.mxu0 0
        %1484 = vmatpush1.bf16.msra.mxu0 0
        %1485 = vmatprep.subr.bf16.mxu0 0
        %1486 = vmatpush1.bf16.msra.mxu0 0
        %1487 = vmatprep.mubr.bf16.mxu0 0
        %1488 = vmatmul.mubr.bf16.gmra.mrb[0].mxu0 %v683
        %v1489 = vpop.f32.mrb[0].mxu0
        %v1490 = vadd.f32 %v1441, %v1489
        %v1491 = vpop.f32.mrb[0].mxu0
        %v1492 = vpop.f32.mrb[0].mxu0
        %v1493 = vpop.f32.mrb[0].mxu0
        %1494 = vdwg.mxu0
        %s1495 = scalar_lea.vmem [#allocation8], 32
        %v1496 = vld [vmem:[%s1495] sm:$0xf]
        %v1497 = vld [vmem:[%s1495 + $0x4] sm:$0xf]
        %v1498 = vld [vmem:[%s1495 + $0x8] sm:$0xf]
        %v1499 = vld [vmem:[%s1495 + $0xc] sm:$0xf]
        %s1500 = scalar_lea.vmem [#allocation13], 2
        %v1501 = vld [vmem:[%s1500] sm:$0x1]
        %v1503 = vlaneseq
        %v1504 = vshrl.u32 %v1503, 7
        %v1505 = vsub.s32 0, %v1504
        %v1506 = vrot.slane %v1501, %v1505
        %v1512 = vunpack.c.l.b16 %v1496
        %v1513 = vunpack.c.l.b16 %v1497
        %v1514 = vunpack.c.l.b16 %v1498
        %v1515 = vunpack.c.l.b16 %v1499
        %v1516 = vpack.c.b16 %v1513, %v1512
        %v1517 = vpack.c.b16 %v1515, %v1514
        %1520 = vmatprep.subr.bf16.mxu0 0
        %1521 = vmatpush1.bf16.msra.mxu0 %v1516
        %1522 = vmatprep.subr.bf16.mxu0 0
        %1523 = vmatpush1.bf16.msra.mxu0 %v1517
        %1524 = vmatprep.subr.bf16.mxu0 0
        %1525 = vmatpush1.bf16.msra.mxu0 0
        %1526 = vmatprep.subr.bf16.mxu0 0
        %1527 = vmatpush1.bf16.msra.mxu0 0
        %1528 = vmatprep.subr.bf16.mxu0 0
        %1529 = vmatpush1.bf16.msra.mxu0 0
        %1530 = vmatprep.subr.bf16.mxu0 0
        %1531 = vmatpush1.bf16.msra.mxu0 0
        %1532 = vmatprep.subr.bf16.mxu0 0
        %1533 = vmatpush1.bf16.msra.mxu0 0
        %1534 = vmatprep.subr.bf16.mxu0 0
        %1535 = vmatpush1.bf16.msra.mxu0 0
        %1536 = vmatprep.subr.bf16.mxu0 0
        %1537 = vmatpush1.bf16.msra.mxu0 0
        %1538 = vmatprep.subr.bf16.mxu0 0
        %1539 = vmatpush1.bf16.msra.mxu0 0
        %1540 = vmatprep.subr.bf16.mxu0 0
        %1541 = vmatpush1.bf16.msra.mxu0 0
        %1542 = vmatprep.subr.bf16.mxu0 0
        %1543 = vmatpush1.bf16.msra.mxu0 0
        %1544 = vmatprep.subr.bf16.mxu0 0
        %1545 = vmatpush1.bf16.msra.mxu0 0
        %1546 = vmatprep.subr.bf16.mxu0 0
        %1547 = vmatpush1.bf16.msra.mxu0 0
        %1548 = vmatprep.subr.bf16.mxu0 0
        %1549 = vmatpush1.bf16.msra.mxu0 0
        %1550 = vmatprep.subr.bf16.mxu0 0
        %1551 = vmatpush1.bf16.msra.mxu0 0
        %1552 = vmatprep.mubr.bf16.mxu0 0
        %1553 = vmatmul.mubr.bf16.gmra.mrb[0].mxu0 %v683
        %v1554 = vpop.f32.mrb[0].mxu0
        %v1555 = vadd.f32 %v1506, %v1554
        %v1556 = vpop.f32.mrb[0].mxu0
        %v1557 = vpop.f32.mrb[0].mxu0
        %v1558 = vpop.f32.mrb[0].mxu0
        %1559 = vdwg.mxu0
        %v1560 = vpack.c.bf16 %v1425, %v1425
        %v1561 = vpack.c.bf16 %v1490, %v1490
        %v1563 = vsel %vm853, %v1560, 0
        %v1566 = vsel %vm853, %v1561, 0
        %1568 = vmatprep.subr.bf16.mxu0 0
        %1569 = vmatpush1.bf16.xpose.msra.mxu0 %v1566
        %1570 = vmatprep.subr.bf16.mxu0 0
        %1571 = vmatpush1.bf16.xpose.msra.mxu0 0
        %1572 = vmatprep.subr.bf16.mxu0 0
        %1573 = vmatpush1.bf16.xpose.msra.mxu0 0
        %1574 = vmatprep.subr.bf16.mxu0 0
        %1575 = vmatpush1.bf16.xpose.msra.mxu0 0
        %1576 = vmatprep.subr.bf16.mxu0 0
        %1577 = vmatpush1.bf16.xpose.msra.mxu0 0
        %1578 = vmatprep.subr.bf16.mxu0 0
        %1579 = vmatpush1.bf16.xpose.msra.mxu0 0
        %1580 = vmatprep.subr.bf16.mxu0 0
        %1581 = vmatpush1.bf16.xpose.msra.mxu0 0
        %1582 = vmatprep.subr.bf16.mxu0 0
        %1583 = vmatpush1.bf16.xpose.msra.mxu0 0
        %1584 = vmatprep.subr.bf16.mxu0 0
        %1585 = vmatpush1.bf16.xpose.msra.mxu0 0
        %1586 = vmatprep.subr.bf16.mxu0 0
        %1587 = vmatpush1.bf16.xpose.msra.mxu0 0
        %1588 = vmatprep.subr.bf16.mxu0 0
        %1589 = vmatpush1.bf16.xpose.msra.mxu0 0
        %1590 = vmatprep.subr.bf16.mxu0 0
        %1591 = vmatpush1.bf16.xpose.msra.mxu0 0
        %1592 = vmatprep.subr.bf16.mxu0 0
        %1593 = vmatpush1.bf16.xpose.msra.mxu0 0
        %1594 = vmatprep.subr.bf16.mxu0 0
        %1595 = vmatpush1.bf16.xpose.msra.mxu0 0
        %1596 = vmatprep.subr.bf16.mxu0 0
        %1597 = vmatpush1.bf16.xpose.msra.mxu0 0
        %1598 = vmatprep.subr.bf16.mxu0 0
        %1599 = vmatpush1.bf16.xpose.msra.mxu0 0
        %1600 = vmatprep.mubr.bf16.mxu0 0
        %1601 = vmatmul.mubr.bf16.gmra.mrb[0].mxu0 %v1563
        %v1602 = vpop.f32.mrb[0].mxu0
        %v1603 = vadd.f32 0.0, %v1602
        %v1604 = vpop.f32.mrb[0].mxu0
        %v1605 = vpop.f32.mrb[0].mxu0
        %v1606 = vpop.f32.mrb[0].mxu0
        %1607 = vdwg.mxu0
        %v1608 = vmul.f32 %v1603, 0.35355338
        %v1609 = vadd.f32 %v1608, %v649
        %v1610 = vsel %vm853, %v1609, -inf
        %1611 = vmax.xlane.f32.xlu0 %v1610
        %v1612 = vpop.xlane.xlu0 %1611
        %v1613 = vsub.f32 %v1609, %v1612
        %v1614 = vmul.f32 %v1613, 1.442695
        %v1615 = vpow.pop %v1614
        %v1616 = vsel %vm853, %v1615, 0.0
        %1617 = vadd.xlane.f32.xlu0 %v1616
        %v1618 = vpop.xlane.xlu0 %1617
        %v1619 = vrcp.pop %v1618
        %v1620 = vmul.f32 %v1615, %v1619
        %v1621 = vpack.c.bf16 %v1620, %v1620
        %v1622 = vpack.c.bf16 %v1555, %v1555
        %v1624 = vsel %vm853, %v1621, 0
        %v1627 = vsel %vm918, %v1622, 0
        %1629 = vmatprep.subr.bf16.mxu0 0
        %1630 = vmatpush1.bf16.msra.mxu0 %v1627
        %1631 = vmatprep.subr.bf16.mxu0 0
        %1632 = vmatpush1.bf16.msra.mxu0 0
        %1633 = vmatprep.subr.bf16.mxu0 0
        %1634 = vmatpush1.bf16.msra.mxu0 0
        %1635 = vmatprep.subr.bf16.mxu0 0
        %1636 = vmatpush1.bf16.msra.mxu0 0
        %1637 = vmatprep.subr.bf16.mxu0 0
        %1638 = vmatpush1.bf16.msra.mxu0 0
        %1639 = vmatprep.subr.bf16.mxu0 0
        %1640 = vmatpush1.bf16.msra.mxu0 0
        %1641 = vmatprep.subr.bf16.mxu0 0
        %1642 = vmatpush1.bf16.msra.mxu0 0
        %1643 = vmatprep.subr.bf16.mxu0 0
        %1644 = vmatpush1.bf16.msra.mxu0 0
        %1645 = vmatprep.subr.bf16.mxu0 0
        %1646 = vmatpush1.bf16.msra.mxu0 0
        %1647 = vmatprep.subr.bf16.mxu0 0
        %1648 = vmatpush1.bf16.msra.mxu0 0
        %1649 = vmatprep.subr.bf16.mxu0 0
        %1650 = vmatpush1.bf16.msra.mxu0 0
        %1651 = vmatprep.subr.bf16.mxu0 0
        %1652 = vmatpush1.bf16.msra.mxu0 0
        %1653 = vmatprep.subr.bf16.mxu0 0
        %1654 = vmatpush1.bf16.msra.mxu0 0
        %1655 = vmatprep.subr.bf16.mxu0 0
        %1656 = vmatpush1.bf16.msra.mxu0 0
        %1657 = vmatprep.subr.bf16.mxu0 0
        %1658 = vmatpush1.bf16.msra.mxu0 0
        %1659 = vmatprep.subr.bf16.mxu0 0
        %1660 = vmatpush1.bf16.msra.mxu0 0
        %1661 = vmatprep.mubr.bf16.mxu0 0
        %1662 = vmatmul.mubr.bf16.gmra.mrb[0].mxu0 %v1624
        %v1663 = vpop.f32.mrb[0].mxu0
        %v1664 = vadd.f32 0.0, %v1663
        %v1665 = vpop.f32.mrb[0].mxu0
        %v1666 = vpop.f32.mrb[0].mxu0
        %v1667 = vpop.f32.mrb[0].mxu0
        %1668 = vdwg.mxu0
        %v1669 = vpack.c.bf16 %v1664, %v1664
        %s1670 = scalar_lea.vmem [#allocation14], 8
        %v1671 = vld [vmem:[%s1670] sm:$0xf]
        %v1673 = vsel %vm853, %v1669, 0
        %v1676 = vsel %vm918, %v1671, 0
        %1678 = vmatprep.subr.bf16.mxu0 0
        %1679 = vmatpush1.bf16.msra.mxu0 %v1676
        %1680 = vmatprep.subr.bf16.mxu0 0
        %1681 = vmatpush1.bf16.msra.mxu0 0
        %1682 = vmatprep.subr.bf16.mxu0 0
        %1683 = vmatpush1.bf16.msra.mxu0 0
        %1684 = vmatprep.subr.bf16.mxu0 0
        %1685 = vmatpush1.bf16.msra.mxu0 0
        %1686 = vmatprep.subr.bf16.mxu0 0
        %1687 = vmatpush1.bf16.msra.mxu0 0
        %1688 = vmatprep.subr.bf16.mxu0 0
        %1689 = vmatpush1.bf16.msra.mxu0 0
        %1690 = vmatprep.subr.bf16.mxu0 0
        %1691 = vmatpush1.bf16.msra.mxu0 0
        %1692 = vmatprep.subr.bf16.mxu0 0
        %1693 = vmatpush1.bf16.msra.mxu0 0
        %1694 = vmatprep.subr.bf16.mxu0 0
        %1695 = vmatpush1.bf16.msra.mxu0 0
        %1696 = vmatprep.subr.bf16.mxu0 0
        %1697 = vmatpush1.bf16.msra.mxu0 0
        %1698 = vmatprep.subr.bf16.mxu0 0
        %1699 = vmatpush1.bf16.msra.mxu0 0
        %1700 = vmatprep.subr.bf16.mxu0 0
        %1701 = vmatpush1.bf16.msra.mxu0 0
        %1702 = vmatprep.subr.bf16.mxu0 0
        %1703 = vmatpush1.bf16.msra.mxu0 0
        %1704 = vmatprep.subr.bf16.mxu0 0
        %1705 = vmatpush1.bf16.msra.mxu0 0
        %1706 = vmatprep.subr.bf16.mxu0 0
        %1707 = vmatpush1.bf16.msra.mxu0 0
        %1708 = vmatprep.subr.bf16.mxu0 0
        %1709 = vmatpush1.bf16.msra.mxu0 0
        %1710 = vmatprep.mubr.bf16.mxu0 0
        %1711 = vmatmul.mubr.bf16.gmra.mrb[0].mxu0 %v1673
        %v1712 = vpop.f32.mrb[0].mxu0
        %v1713 = vadd.f32 0.0, %v1712
        %v1714 = vpop.f32.mrb[0].mxu0
        %v1715 = vpop.f32.mrb[0].mxu0
        %v1716 = vpop.f32.mrb[0].mxu0
        %1717 = vdwg.mxu0
        %v1718 = vadd.f32 %v1364, %v1713
        %s1719 = scalar_lea.vmem [#allocation5], 48
        %v1720 = vld [vmem:[%s1719] sm:$0xf]
        %v1721 = vld [vmem:[%s1719 + $0x4] sm:$0xf]
        %v1722 = vld [vmem:[%s1719 + $0x8] sm:$0xf]
        %v1723 = vld [vmem:[%s1719 + $0xc] sm:$0xf]
        %s1724 = scalar_lea.vmem [#allocation10], 3
        %v1725 = vld [vmem:[%s1724] sm:$0x1]
        %v1727 = vlaneseq
        %v1728 = vshrl.u32 %v1727, 7
        %v1729 = vsub.s32 0, %v1728
        %v1730 = vrot.slane %v1725, %v1729
        %v1736 = vunpack.c.l.b16 %v1720
        %v1737 = vunpack.c.l.b16 %v1721
        %v1738 = vunpack.c.l.b16 %v1722
        %v1739 = vunpack.c.l.b16 %v1723
        %v1740 = vpack.c.b16 %v1737, %v1736
        %v1741 = vpack.c.b16 %v1739, %v1738
        %1744 = vmatprep.subr.bf16.mxu0 0
        %1745 = vmatpush1.bf16.msra.mxu0 %v1740
        %1746 = vmatprep.subr.bf16.mxu0 0
        %1747 = vmatpush1.bf16.msra.mxu0 %v1741
        %1748 = vmatprep.subr.bf16.mxu0 0
        %1749 = vmatpush1.bf16.msra.mxu0 0
        %1750 = vmatprep.subr.bf16.mxu0 0
        %1751 = vmatpush1.bf16.msra.mxu0 0
        %1752 = vmatprep.subr.bf16.mxu0 0
        %1753 = vmatpush1.bf16.msra.mxu0 0
        %1754 = vmatprep.subr.bf16.mxu0 0
        %1755 = vmatpush1.bf16.msra.mxu0 0
        %1756 = vmatprep.subr.bf16.mxu0 0
        %1757 = vmatpush1.bf16.msra.mxu0 0
        %1758 = vmatprep.subr.bf16.mxu0 0
        %1759 = vmatpush1.bf16.msra.mxu0 0
        %1760 = vmatprep.subr.bf16.mxu0 0
        %1761 = vmatpush1.bf16.msra.mxu0 0
        %1762 = vmatprep.subr.bf16.mxu0 0
        %1763 = vmatpush1.bf16.msra.mxu0 0
        %1764 = vmatprep.subr.bf16.mxu0 0
        %1765 = vmatpush1.bf16.msra.mxu0 0
        %1766 = vmatprep.subr.bf16.mxu0 0
        %1767 = vmatpush1.bf16.msra.mxu0 0
        %1768 = vmatprep.subr.bf16.mxu0 0
        %1769 = vmatpush1.bf16.msra.mxu0 0
        %1770 = vmatprep.subr.bf16.mxu0 0
        %1771 = vmatpush1.bf16.msra.mxu0 0
        %1772 = vmatprep.subr.bf16.mxu0 0
        %1773 = vmatpush1.bf16.msra.mxu0 0
        %1774 = vmatprep.subr.bf16.mxu0 0
        %1775 = vmatpush1.bf16.msra.mxu0 0
        %1776 = vmatprep.mubr.bf16.mxu0 0
        %1777 = vmatmul.mubr.bf16.gmra.mrb[0].mxu0 %v683
        %v1778 = vpop.f32.mrb[0].mxu0
        %v1779 = vadd.f32 %v1730, %v1778
        %v1780 = vpop.f32.mrb[0].mxu0
        %v1781 = vpop.f32.mrb[0].mxu0
        %v1782 = vpop.f32.mrb[0].mxu0
        %1783 = vdwg.mxu0
        %s1784 = scalar_lea.vmem [#allocation7], 48
        %v1785 = vld [vmem:[%s1784] sm:$0xf]
        %v1786 = vld [vmem:[%s1784 + $0x4] sm:$0xf]
        %v1787 = vld [vmem:[%s1784 + $0x8] sm:$0xf]
        %v1788 = vld [vmem:[%s1784 + $0xc] sm:$0xf]
        %s1789 = scalar_lea.vmem [#allocation11], 3
        %v1790 = vld [vmem:[%s1789] sm:$0x1]
        %v1792 = vlaneseq
        %v1793 = vshrl.u32 %v1792, 7
        %v1794 = vsub.s32 0, %v1793
        %v1795 = vrot.slane %v1790, %v1794
        %v1801 = vunpack.c.l.b16 %v1785
        %v1802 = vunpack.c.l.b16 %v1786
        %v1803 = vunpack.c.l.b16 %v1787
        %v1804 = vunpack.c.l.b16 %v1788
        %v1805 = vpack.c.b16 %v1802, %v1801
        %v1806 = vpack.c.b16 %v1804, %v1803
        %1809 = vmatprep.subr.bf16.mxu0 0
        %1810 = vmatpush1.bf16.msra.mxu0 %v1805
        %1811 = vmatprep.subr.bf16.mxu0 0
        %1812 = vmatpush1.bf16.msra.mxu0 %v1806
        %1813 = vmatprep.subr.bf16.mxu0 0
        %1814 = vmatpush1.bf16.msra.mxu0 0
        %1815 = vmatprep.subr.bf16.mxu0 0
        %1816 = vmatpush1.bf16.msra.mxu0 0
        %1817 = vmatprep.subr.bf16.mxu0 0
        %1818 = vmatpush1.bf16.msra.mxu0 0
        %1819 = vmatprep.subr.bf16.mxu0 0
        %1820 = vmatpush1.bf16.msra.mxu0 0
        %1821 = vmatprep.subr.bf16.mxu0 0
        %1822 = vmatpush1.bf16.msra.mxu0 0
        %1823 = vmatprep.subr.bf16.mxu0 0
        %1824 = vmatpush1.bf16.msra.mxu0 0
        %1825 = vmatprep.subr.bf16.mxu0 0
        %1826 = vmatpush1.bf16.msra.mxu0 0
        %1827 = vmatprep.subr.bf16.mxu0 0
        %1828 = vmatpush1.bf16.msra.mxu0 0
        %1829 = vmatprep.subr.bf16.mxu0 0
        %1830 = vmatpush1.bf16.msra.mxu0 0
        %1831 = vmatprep.subr.bf16.mxu0 0
        %1832 = vmatpush1.bf16.msra.mxu0 0
        %1833 = vmatprep.subr.bf16.mxu0 0
        %1834 = vmatpush1.bf16.msra.mxu0 0
        %1835 = vmatprep.subr.bf16.mxu0 0
        %1836 = vmatpush1.bf16.msra.mxu0 0
        %1837 = vmatprep.subr.bf16.mxu0 0
        %1838 = vmatpush1.bf16.msra.mxu0 0
        %1839 = vmatprep.subr.bf16.mxu0 0
        %1840 = vmatpush1.bf16.msra.mxu0 0
        %1841 = vmatprep.mubr.bf16.mxu0 0
        %1842 = vmatmul.mubr.bf16.gmra.mrb[0].mxu0 %v683
        %v1843 = vpop.f32.mrb[0].mxu0
        %v1844 = vadd.f32 %v1795, %v1843
        %v1845 = vpop.f32.mrb[0].mxu0
        %v1846 = vpop.f32.mrb[0].mxu0
        %v1847 = vpop.f32.mrb[0].mxu0
        %1848 = vdwg.mxu0
        %s1849 = scalar_lea.vmem [#allocation8], 48
        %v1850 = vld [vmem:[%s1849] sm:$0xf]
        %v1851 = vld [vmem:[%s1849 + $0x4] sm:$0xf]
        %v1852 = vld [vmem:[%s1849 + $0x8] sm:$0xf]
        %v1853 = vld [vmem:[%s1849 + $0xc] sm:$0xf]
        %s1854 = scalar_lea.vmem [#allocation13], 3
        %v1855 = vld [vmem:[%s1854] sm:$0x1]
        %v1857 = vlaneseq
        %v1858 = vshrl.u32 %v1857, 7
        %v1859 = vsub.s32 0, %v1858
        %v1860 = vrot.slane %v1855, %v1859
        %v1866 = vunpack.c.l.b16 %v1850
        %v1867 = vunpack.c.l.b16 %v1851
        %v1868 = vunpack.c.l.b16 %v1852
        %v1869 = vunpack.c.l.b16 %v1853
        %v1870 = vpack.c.b16 %v1867, %v1866
        %v1871 = vpack.c.b16 %v1869, %v1868
        %1874 = vmatprep.subr.bf16.mxu0 0
        %1875 = vmatpush1.bf16.msra.mxu0 %v1870
        %1876 = vmatprep.subr.bf16.mxu0 0
        %1877 = vmatpush1.bf16.msra.mxu0 %v1871
        %1878 = vmatprep.subr.bf16.mxu0 0
        %1879 = vmatpush1.bf16.msra.mxu0 0
        %1880 = vmatprep.subr.bf16.mxu0 0
        %1881 = vmatpush1.bf16.msra.mxu0 0
        %1882 = vmatprep.subr.bf16.mxu0 0
        %1883 = vmatpush1.bf16.msra.mxu0 0
        %1884 = vmatprep.subr.bf16.mxu0 0
        %1885 = vmatpush1.bf16.msra.mxu0 0
        %1886 = vmatprep.subr.bf16.mxu0 0
        %1887 = vmatpush1.bf16.msra.mxu0 0
        %1888 = vmatprep.subr.bf16.mxu0 0
        %1889 = vmatpush1.bf16.msra.mxu0 0
        %1890 = vmatprep.subr.bf16.mxu0 0
        %1891 = vmatpush1.bf16.msra.mxu0 0
        %1892 = vmatprep.subr.bf16.mxu0 0
        %1893 = vmatpush1.bf16.msra.mxu0 0
        %1894 = vmatprep.subr.bf16.mxu0 0
        %1895 = vmatpush1.bf16.msra.mxu0 0
        %1896 = vmatprep.subr.bf16.mxu0 0
        %1897 = vmatpush1.bf16.msra.mxu0 0
        %1898 = vmatprep.subr.bf16.mxu0 0
        %1899 = vmatpush1.bf16.msra.mxu0 0
        %1900 = vmatprep.subr.bf16.mxu0 0
        %1901 = vmatpush1.bf16.msra.mxu0 0
        %1902 = vmatprep.subr.bf16.mxu0 0
        %1903 = vmatpush1.bf16.msra.mxu0 0
        %1904 = vmatprep.subr.bf16.mxu0 0
        %1905 = vmatpush1.bf16.msra.mxu0 0
        %1906 = vmatprep.mubr.bf16.mxu0 0
        %1907 = vmatmul.mubr.bf16.gmra.mrb[0].mxu0 %v683
        %v1908 = vpop.f32.mrb[0].mxu0
        %v1909 = vadd.f32 %v1860, %v1908
        %v1910 = vpop.f32.mrb[0].mxu0
        %v1911 = vpop.f32.mrb[0].mxu0
        %v1912 = vpop.f32.mrb[0].mxu0
        %1913 = vdwg.mxu0
        %v1914 = vpack.c.bf16 %v1779, %v1779
        %v1915 = vpack.c.bf16 %v1844, %v1844
        %v1917 = vsel %vm853, %v1914, 0
        %v1920 = vsel %vm853, %v1915, 0
        %1922 = vmatprep.subr.bf16.mxu0 0
        %1923 = vmatpush1.bf16.xpose.msra.mxu0 %v1920
        %1924 = vmatprep.subr.bf16.mxu0 0
        %1925 = vmatpush1.bf16.xpose.msra.mxu0 0
        %1926 = vmatprep.subr.bf16.mxu0 0
        %1927 = vmatpush1.bf16.xpose.msra.mxu0 0
        %1928 = vmatprep.subr.bf16.mxu0 0
        %1929 = vmatpush1.bf16.xpose.msra.mxu0 0
        %1930 = vmatprep.subr.bf16.mxu0 0
        %1931 = vmatpush1.bf16.xpose.msra.mxu0 0
        %1932 = vmatprep.subr.bf16.mxu0 0
        %1933 = vmatpush1.bf16.xpose.msra.mxu0 0
        %1934 = vmatprep.subr.bf16.mxu0 0
        %1935 = vmatpush1.bf16.xpose.msra.mxu0 0
        %1936 = vmatprep.subr.bf16.mxu0 0
        %1937 = vmatpush1.bf16.xpose.msra.mxu0 0
        %1938 = vmatprep.subr.bf16.mxu0 0
        %1939 = vmatpush1.bf16.xpose.msra.mxu0 0
        %1940 = vmatprep.subr.bf16.mxu0 0
        %1941 = vmatpush1.bf16.xpose.msra.mxu0 0
        %1942 = vmatprep.subr.bf16.mxu0 0
        %1943 = vmatpush1.bf16.xpose.msra.mxu0 0
        %1944 = vmatprep.subr.bf16.mxu0 0
        %1945 = vmatpush1.bf16.xpose.msra.mxu0 0
        %1946 = vmatprep.subr.bf16.mxu0 0
        %1947 = vmatpush1.bf16.xpose.msra.mxu0 0
        %1948 = vmatprep.subr.bf16.mxu0 0
        %1949 = vmatpush1.bf16.xpose.msra.mxu0 0
        %1950 = vmatprep.subr.bf16.mxu0 0
        %1951 = vmatpush1.bf16.xpose.msra.mxu0 0
        %1952 = vmatprep.subr.bf16.mxu0 0
        %1953 = vmatpush1.bf16.xpose.msra.mxu0 0
        %1954 = vmatprep.mubr.bf16.mxu0 0
        %1955 = vmatmul.mubr.bf16.gmra.mrb[0].mxu0 %v1917
        %v1956 = vpop.f32.mrb[0].mxu0
        %v1957 = vadd.f32 0.0, %v1956
        %v1958 = vpop.f32.mrb[0].mxu0
        %v1959 = vpop.f32.mrb[0].mxu0
        %v1960 = vpop.f32.mrb[0].mxu0
        %1961 = vdwg.mxu0
        %v1962 = vmul.f32 %v1957, 0.35355338
        %v1963 = vadd.f32 %v1962, %v649
        %v1964 = vsel %vm853, %v1963, -inf
        %1965 = vmax.xlane.f32.xlu0 %v1964
        %v1966 = vpop.xlane.xlu0 %1965
        %v1967 = vsub.f32 %v1963, %v1966
        %v1968 = vmul.f32 %v1967, 1.442695
        %v1969 = vpow.pop %v1968
        %v1970 = vsel %vm853, %v1969, 0.0
        %1971 = vadd.xlane.f32.xlu0 %v1970
        %v1972 = vpop.xlane.xlu0 %1971
        %v1973 = vrcp.pop %v1972
        %v1974 = vmul.f32 %v1969, %v1973
        %v1975 = vpack.c.bf16 %v1974, %v1974
        %v1976 = vpack.c.bf16 %v1909, %v1909
        %v1978 = vsel %vm853, %v1975, 0
        %v1981 = vsel %vm918, %v1976, 0
        %1983 = vmatprep.subr.bf16.mxu0 0
        %1984 = vmatpush1.bf16.msra.mxu0 %v1981
        %1985 = vmatprep.subr.bf16.mxu0 0
        %1986 = vmatpush1.bf16.msra.mxu0 0
        %1987 = vmatprep.subr.bf16.mxu0 0
        %1988 = vmatpush1.bf16.msra.mxu0 0
        %1989 = vmatprep.subr.bf16.mxu0 0
        %1990 = vmatpush1.bf16.msra.mxu0 0
        %1991 = vmatprep.subr.bf16.mxu0 0
        %1992 = vmatpush1.bf16.msra.mxu0 0
        %1993 = vmatprep.subr.bf16.mxu0 0
        %1994 = vmatpush1.bf16.msra.mxu0 0
        %1995 = vmatprep.subr.bf16.mxu0 0
        %1996 = vmatpush1.bf16.msra.mxu0 0
        %1997 = vmatprep.subr.bf16.mxu0 0
        %1998 = vmatpush1.bf16.msra.mxu0 0
        %1999 = vmatprep.subr.bf16.mxu0 0
        %2000 = vmatpush1.bf16.msra.mxu0 0
        %2001 = vmatprep.subr.bf16.mxu0 0
        %2002 = vmatpush1.bf16.msra.mxu0 0
        %2003 = vmatprep.subr.bf16.mxu0 0
        %2004 = vmatpush1.bf16.msra.mxu0 0
        %2005 = vmatprep.subr.bf16.mxu0 0
        %2006 = vmatpush1.bf16.msra.mxu0 0
        %2007 = vmatprep.subr.bf16.mxu0 0
        %2008 = vmatpush1.bf16.msra.mxu0 0
        %2009 = vmatprep.subr.bf16.mxu0 0
        %2010 = vmatpush1.bf16.msra.mxu0 0
        %2011 = vmatprep.subr.bf16.mxu0 0
        %2012 = vmatpush1.bf16.msra.mxu0 0
        %2013 = vmatprep.subr.bf16.mxu0 0
        %2014 = vmatpush1.bf16.msra.mxu0 0
        %2015 = vmatprep.mubr.bf16.mxu0 0
        %2016 = vmatmul.mubr.bf16.gmra.mrb[0].mxu0 %v1978
        %v2017 = vpop.f32.mrb[0].mxu0
        %v2018 = vadd.f32 0.0, %v2017
        %v2019 = vpop.f32.mrb[0].mxu0
        %v2020 = vpop.f32.mrb[0].mxu0
        %v2021 = vpop.f32.mrb[0].mxu0
        %2022 = vdwg.mxu0
        %v2023 = vpack.c.bf16 %v2018, %v2018
        %s2024 = scalar_lea.vmem [#allocation14], 12
        %v2025 = vld [vmem:[%s2024] sm:$0xf]
        %v2027 = vsel %vm853, %v2023, 0
        %v2030 = vsel %vm918, %v2025, 0
        %2032 = vmatprep.subr.bf16.mxu0 0
        %2033 = vmatpush1.bf16.msra.mxu0 %v2030
        %2034 = vmatprep.subr.bf16.mxu0 0
        %2035 = vmatpush1.bf16.msra.mxu0 0
        %2036 = vmatprep.subr.bf16.mxu0 0
        %2037 = vmatpush1.bf16.msra.mxu0 0
        %2038 = vmatprep.subr.bf16.mxu0 0
        %2039 = vmatpush1.bf16.msra.mxu0 0
        %2040 = vmatprep.subr.bf16.mxu0 0
        %2041 = vmatpush1.bf16.msra.mxu0 0
        %2042 = vmatprep.subr.bf16.mxu0 0
        %2043 = vmatpush1.bf16.msra.mxu0 0
        %2044 = vmatprep.subr.bf16.mxu0 0
        %2045 = vmatpush1.bf16.msra.mxu0 0
        %2046 = vmatprep.subr.bf16.mxu0 0
        %2047 = vmatpush1.bf16.msra.mxu0 0
        %2048 = vmatprep.subr.bf16.mxu0 0
        %2049 = vmatpush1.bf16.msra.mxu0 0
        %2050 = vmatprep.subr.bf16.mxu0 0
        %2051 = vmatpush1.bf16.msra.mxu0 0
        %2052 = vmatprep.subr.bf16.mxu0 0
        %2053 = vmatpush1.bf16.msra.mxu0 0
        %2054 = vmatprep.subr.bf16.mxu0 0
        %2055 = vmatpush1.bf16.msra.mxu0 0
        %2056 = vmatprep.subr.bf16.mxu0 0
        %2057 = vmatpush1.bf16.msra.mxu0 0
        %2058 = vmatprep.subr.bf16.mxu0 0
        %2059 = vmatpush1.bf16.msra.mxu0 0
        %2060 = vmatprep.subr.bf16.mxu0 0
        %2061 = vmatpush1.bf16.msra.mxu0 0
        %2062 = vmatprep.subr.bf16.mxu0 0
        %2063 = vmatpush1.bf16.msra.mxu0 0
        %2064 = vmatprep.mubr.bf16.mxu0 0
        %2065 = vmatmul.mubr.bf16.gmra.mrb[0].mxu0 %v2027
        %v2066 = vpop.f32.mrb[0].mxu0
        %v2067 = vadd.f32 0.0, %v2066
        %v2068 = vpop.f32.mrb[0].mxu0
        %v2069 = vpop.f32.mrb[0].mxu0
        %v2070 = vpop.f32.mrb[0].mxu0
        %2071 = vdwg.mxu0
        %v2072 = vadd.f32 %v1718, %v2067
        %v2073 = vsel %vm681, %v2072, 0.0
        %2074 = vadd.xlane.f32.xlu0 %v2073
        %v2075 = vpop.xlane.xlu0 %2074
        %v2076 = vrcp.pop 32.0
        %v2077 = vmul.f32 %v2075, %v2076
        %v2078 = vsub.f32 %v2072, %v2077
        %v2079 = vmul.f32 %v2078, %v2078
        %v2080 = vsel %vm681, %v2079, 0.0
        %2081 = vadd.xlane.f32.xlu0 %v2080
        %v2082 = vpop.xlane.xlu0 %2081
        %v2083 = vmul.f32 %v2082, %v2076
        %v2084 = vadd.f32 %v2083, 1e-05
        %v2085 = vrsqrt.pop %v2084
        %v2086 = vmul.f32 %v2078, %v2085
        %v2087 = vld [vmem:[#allocation20] sm:$0x1]
        %v2089 = vlaneseq
        %v2090 = vshrl.u32 %v2089, 7
        %v2091 = vsub.s32 0, %v2090
        %v2092 = vrot.slane %v2087, %v2091
        %v2094 = vmul.f32 %v2086, %v2092
        %v2095 = vld [vmem:[#allocation21] sm:$0x1]
        %v2097 = vlaneseq
        %v2098 = vshrl.u32 %v2097, 7
        %v2099 = vsub.s32 0, %v2098
        %v2100 = vrot.slane %v2095, %v2099
        %v2102 = vadd.f32 %v2094, %v2100
        %2103 = vst.msk [vmem:[%s637] sm:$0xff] %vm681, %v2102
        %s2104 = sand.u32 %s326, 1
        %s2105 = scalar_lea.sflag [#allocation4], %s2104
        %s2106 = sand.u32 %s326, 1
        %s2107 = smul.addr %s2106, 8
        %s2108 = scalar_lea.vmem [#allocation22], %s2107
        // Predicated region
        $region125: #{tpu_custom_call.1} parent=71 // pred_check
          %p2109 = pneg %p336
        $region126: #{tpu_custom_call.1} parent=71 // pred_check_branch
          %2111 = sbr.rel (%p2109) target = $region128
        $region127: #{tpu_custom_call.1} parent=71 // pred_region
          %s2113 = ssub.s32 128, 128
          %2114 = vsyncadd %s2105, %s2113
          %s2115 = smul.addr %s35, 128
          %s2116 = scalar_lea.hbm %s13, %s2115
          %s2118 = sshll.u32 %s2108, 4
          %s2119 = int_to_ptr.vmem [resolvable:$true] %s2118
          %2121 = dma.vmem_to_hbm [thread:$0]  %s2119, 128, %s2116, %s2105
        $region128: #{tpu_custom_call.1} parent=71 // pred_fallthru
          _
      $region72: #{tpu_custom_call.1} parent=5 // pred_fallthru
        _
      %p2122 = scmp.le.s32.totalorder 2, %s30
      // Predicated region
      $region129: #{tpu_custom_call.1} parent=5 // pred_check
        %p2123 = pneg %p2122
      $region130: #{tpu_custom_call.1} parent=5 // pred_check_branch
        %2125 = sbr.rel (%p2123) target = $region132
      $region131: #{tpu_custom_call.1} parent=5 // pred_region
        %s2126 = ssub.s32 %s30, 2
        // Predicated region
        $region133: #{tpu_custom_call.1} parent=131 // pred_check
          %p2127 = pneg %p342
        $region134: #{tpu_custom_call.1} parent=131 // pred_check_branch
          %2129 = sbr.rel (%p2127) target = $region136
        $region135: #{tpu_custom_call.1} parent=131 // pred_region
          %s2130 = sand.u32 %s327, 1
          %s2131 = scalar_lea.sflag [#allocation4], %s2130
          %s2132 = sand.u32 %s327, 1
          %s2133 = smul.addr %s2132, 8
          %s2134 = scalar_lea.vmem [#allocation22], %s2133
          %2135 = dma.done %s2131, 128
        $region136: #{tpu_custom_call.1} parent=131 // pred_fallthru
          _
      $region132: #{tpu_custom_call.1} parent=5 // pred_fallthru
        _
    $region6: #{tpu_custom_call.1} parent=1 // loop_footer
      %s34 = sadd.s32 1, %s30
    $region7: #{tpu_custom_call.1} parent=1 // loop_footer_branch
      %29 = sbr.rel target = $region3
    $region8: #{tpu_custom_call.1} parent=1 // loop_exit
      _
    %2136 = vsyncpa [#allocation3], 1
    %s2137 = scalar_lea.sflag [#allocation3], 1
    %2138 = vsyncpa %s2137, 1
    %2139 = vsyncpa [#allocation6], 1
    %2140 = vsyncpa [#allocation9], 1
    %2141 = vsyncpa [#allocation12], 1
    %2142 = vsyncpa [#allocation15], 1
    %2143 = vsyncpa [#allocation18], 1
    %2144 = vsyncpa [#allocation4], 1
    %s2145 = scalar_lea.sflag [#allocation4], 1
    %2146 = vsyncpa %s2145, 1

</llo_original>
